<compile_context>
chip_gen: v5e
topology: v5e:2x2
jax: 0.10.0
libtpu: 0.0.40
codegen_flags: <defaults>
</compile_context>

<pallas_src>
import jax
import jax.numpy as jnp
from jax import lax
from jax.experimental import pallas as pl
from jax.experimental.pallas import tpu as pltpu


def conv_block_forward(x_nchw, conv_w, conv_b, bn_gamma, bn_beta, *, eps=1e-5):
    """ConvBlock forward: Conv2d(3,3,s=1,p=1) -> BatchNorm2d(train) -> ReLU -> MaxPool2d(2)."""
    N, Cin, H, W = x_nchw.shape
    Cout, Cin2, KH, KW = conv_w.shape
    assert Cin2 == Cin and KH == 3 and KW == 3
    assert H % 2 == 0 and W % 2 == 0 and W % 8 == 0
    Ho, Wo = H // 2, W // 2
    Hp, Wp = H + 2, W + 2
    M = H * W                      # spatial positions per image

    # ---- layout glue (cheap, one pass in XLA) -------------------------------
    x = jnp.transpose(x_nchw, (0, 2, 3, 1)).astype(jnp.bfloat16)      # NHWC, bf16 MXU operand
    xp = jnp.pad(x, ((0, 0), (1, 1), (1, 1), (0, 0)))                 # zero pad 1
    # PyTorch (Cout, Cin, KH, KW) -> (KH*KW, Cin, Cout), bf16.
    wmat = jnp.transpose(conv_w, (2, 3, 1, 0)).reshape(KH * KW, Cin, Cout).astype(jnp.bfloat16)
    # Conv bias dropped on purpose: train-mode BatchNorm subtracts the batch
    # mean, so a constant per-channel bias cancels exactly (identical output).
    del conv_b

    # ---- stage 1: direct 3x3 conv (9 shifted bf16 dots) + BN batch stats ----
    def conv_stats_kernel(x_ref, w_ref, y_ref, sum_ref, ssq_ref):
        # x_ref: (1, Hp, Wp, Cin) bf16 ; w_ref: (KH*KW, Cin, Cout) bf16
        acc = jnp.zeros((M, Cout), jnp.float32)
        for dw in range(KW):
            xw = x_ref[0, :, pl.ds(dw, W), :]          # (Hp, W, Cin): one sublane realign per column tap
            xf = xw.reshape(Hp * W, Cin)               # trivial collapse (W % 8 == 0)
            for dh in range(KH):
                xs = xf[dh * W:dh * W + M]             # aligned row window (no data movement)
                acc = acc + jnp.dot(xs, w_ref[dh * KW + dw],
                                    preferred_element_type=jnp.float32)
        y_ref[...] = acc[None]                                          # (1, M, Cout) f32
        sum_ref[...] = jnp.sum(acc, axis=0, keepdims=True)[None]        # (1, 1, Cout)
        ssq_ref[...] = jnp.sum(acc * acc, axis=0, keepdims=True)[None]  # (1, 1, Cout)

    y_flat, sums, ssqs = pl.pallas_call(
        conv_stats_kernel,
        out_shape=(
            jax.ShapeDtypeStruct((N, M, Cout), jnp.float32),
            jax.ShapeDtypeStruct((N, 1, Cout), jnp.float32),
            jax.ShapeDtypeStruct((N, 1, Cout), jnp.float32),
        ),
        grid=(N,),
        in_specs=[
            pl.BlockSpec((1, Hp, Wp, Cin), lambda n: (n, 0, 0, 0)),
            pl.BlockSpec((KH * KW, Cin, Cout), lambda n: (0, 0, 0)),
        ],
        out_specs=(
            pl.BlockSpec((1, M, Cout), lambda n: (n, 0, 0)),
            pl.BlockSpec((1, 1, Cout), lambda n: (n, 0, 0)),
            pl.BlockSpec((1, 1, Cout), lambda n: (n, 0, 0)),
        ),
        compiler_params=pltpu.CompilerParams(
            dimension_semantics=("parallel",)),
    )(xp, wmat)

    # BatchNorm2d (training mode): batch mean + biased variance over (N, H, W),
    # folded into a per-channel affine. Per-image partial sums are combined
    # here so the grid axis above stays megacore-parallel.
    cnt = jnp.float32(N * M)
    mean = jnp.sum(sums[:, 0, :], axis=0) / cnt
    var = jnp.maximum(jnp.sum(ssqs[:, 0, :], axis=0) / cnt - mean * mean, 0.0)
    scale = bn_gamma.astype(jnp.float32) * lax.rsqrt(var + eps)
    shift = bn_beta.astype(jnp.float32) - mean * scale

    y = y_flat.reshape(N, H, W, Cout)   # contiguous -> free metadata reshape

    # ---- stage 2: folded BN affine + ReLU + 2x2 max pool ---------------------
    # (pooling done on the loaded VALUE via reshape + axis reductions;
    #  no strided ref indexers)
    def bn_relu_pool_kernel(y_ref, scale_ref, shift_ref, o_ref):
        s = scale_ref[...]                       # (1, Cout) f32
        t = shift_ref[...]
        v = y_ref[...]                           # (1, H, W, Cout) f32
        v = jnp.maximum(v * s + t, 0.0)          # BN affine + ReLU
        v = v.reshape(H, Wo, 2, Cout)            # pool along W ...
        v = jnp.max(v, axis=2)                   # (H, Wo, Cout)
        v = v.reshape(Ho, 2, Wo, Cout)           # ... then along H
        v = jnp.max(v, axis=1)                   # (Ho, Wo, Cout)
        o_ref[...] = v[None]

    out = pl.pallas_call(
        bn_relu_pool_kernel,
        out_shape=jax.ShapeDtypeStruct((N, Ho, Wo, Cout), jnp.float32),
        grid=(N,),
        in_specs=[
            pl.BlockSpec((1, H, W, Cout), lambda n: (n, 0, 0, 0)),
            pl.BlockSpec((1, Cout), lambda n: (0, 0)),
            pl.BlockSpec((1, Cout), lambda n: (0, 0)),
        ],
        out_specs=pl.BlockSpec((1, Ho, Wo, Cout), lambda n: (n, 0, 0, 0)),
        compiler_params=pltpu.CompilerParams(
            dimension_semantics=("parallel",)),
    )(y, scale.reshape(1, Cout), shift.reshape(1, Cout))

    return jnp.transpose(out, (0, 3, 1, 2))   # back to NCHW


def conv_block_reference(x, conv_w, conv_b, bn_gamma, bn_beta, *, eps=1e-5,
                         cast_conv_inputs_to_bf16=False):
    """Pure-JAX reference matching PyTorch ConvBlock.forward (train-mode BN)."""
    xf = x.astype(jnp.float32)
    wf = conv_w.astype(jnp.float32)
    if cast_conv_inputs_to_bf16:   # model the kernel's bf16 MXU operands
        xf = xf.astype(jnp.bfloat16).astype(jnp.float32)
        wf = wf.astype(jnp.bfloat16).astype(jnp.float32)
    y = lax.conv_general_dilated(
        xf, wf, window_strides=(1, 1), padding=((1, 1), (1, 1)),
        dimension_numbers=("NCHW", "OIHW", "NCHW"))
    y = y + conv_b.reshape(1, -1, 1, 1).astype(jnp.float32)
    mean = jnp.mean(y, axis=(0, 2, 3), keepdims=True)
    var = jnp.mean((y - mean) ** 2, axis=(0, 2, 3), keepdims=True)
    y = (y - mean) / jnp.sqrt(var + eps)
    y = y * bn_gamma.reshape(1, -1, 1, 1) + bn_beta.reshape(1, -1, 1, 1)
    y = jnp.maximum(y, 0.0)
    y = lax.reduce_window(y, -jnp.inf, lax.max, (1, 1, 2, 2), (1, 1, 2, 2), "VALID")
    return y


if __name__ == "__main__":
    key = jax.random.PRNGKey(0)
    k1, k2, k3 = jax.random.split(key, 3)
    N, Cin, H, W = 2, 4, 16, 16
    Cout = 8

    x = jax.random.normal(k1, (N, Cin, H, W), jnp.float32)
    # Deterministic Conv2d-style init (uniform in +-1/sqrt(fan_in)).
    fan_in = Cin * 3 * 3
    bound = 1.0 / (fan_in ** 0.5)
    conv_w = jax.random.uniform(k2, (Cout, Cin, 3, 3), jnp.float32, -bound, bound)
    conv_b = jax.random.uniform(k3, (Cout,), jnp.float32, -bound, bound)
    # BatchNorm2d default init.
    bn_gamma = jnp.ones((Cout,), jnp.float32)
    bn_beta = jnp.zeros((Cout,), jnp.float32)

    fwd = jax.jit(conv_block_forward)
    out = jax.block_until_ready(fwd(x, conv_w, conv_b, bn_gamma, bn_beta))
    assert out.shape == (N, Cout, H // 2, W // 2), out.shape

    # Tight check vs. a reference using the same bf16-rounded conv operands.
    ref_bf16 = conv_block_reference(x, conv_w, conv_b, bn_gamma, bn_beta,
                                    cast_conv_inputs_to_bf16=True)
    assert jnp.allclose(out, ref_bf16, atol=2e-3, rtol=2e-3), \
        float(jnp.max(jnp.abs(out - ref_bf16)))
    # Loose check vs. the full-f32 PyTorch-equivalent reference (bf16 MXU rounding).
    ref_f32 = conv_block_reference(x, conv_w, conv_b, bn_gamma, bn_beta)
    assert jnp.allclose(out, ref_f32, atol=5e-2, rtol=5e-2), \
        float(jnp.max(jnp.abs(out - ref_f32)))
    print("KERNEL_OK")
</pallas_src>

<mosaic_0001>
module attributes {stable_mosaic.version = 11 : i64} {
  func.func @conv_stats_kernel(%arg0: i32, %arg1: memref<1x18x18x4xbf16, #tpu.memory_space<vmem>>, %arg2: memref<9x4x8xbf16, #tpu.memory_space<vmem>>, %arg3: memref<1x256x8xf32, #tpu.memory_space<vmem>>, %arg4: memref<1x1x8xf32, #tpu.memory_space<vmem>>, %arg5: memref<1x1x8xf32, #tpu.memory_space<vmem>>) attributes {dimension_semantics = [#tpu.dimension_semantics<parallel>], iteration_bounds = array<i64: 2>, scalar_prefetch = 0 : i64, scratch_operands = 0 : i64, tpu.core_type = #tpu.core_type<tc>, window_params = [{transform_indices = @transform_0, window_bounds = array<i64: 1, 18, 18, 4>}, {pipeline_mode = #tpu.pipeline_mode<synchronous>, transform_indices = @transform_1, window_bounds = array<i64: 9, 4, 8>}, {transform_indices = @transform_2, window_bounds = array<i64: 1, 256, 8>}, {transform_indices = @transform_3, window_bounds = array<i64: 1, 1, 8>}, {transform_indices = @transform_4, window_bounds = array<i64: 1, 1, 8>}]} {
    %cst = arith.constant 0.000000e+00 : f32
    %0 = vector.broadcast %cst : f32 to vector<256x8xf32>
    %c0 = arith.constant 0 : index
    %c0_0 = arith.constant 0 : index
    %c0_1 = arith.constant 0 : index
    %c0_2 = arith.constant 0 : index
    %1 = vector.load %arg1[%c0, %c0_0, %c0_1, %c0_2] : memref<1x18x18x4xbf16, #tpu.memory_space<vmem>>, vector<1x18x16x4xbf16>
    %2 = vector.shape_cast %1 : vector<1x18x16x4xbf16> to vector<18x16x4xbf16>
    %3 = vector.shape_cast %2 : vector<18x16x4xbf16> to vector<288x4xbf16>
    %4 = vector.extract_strided_slice %3 {offsets = [0, 0], sizes = [256, 4], strides = [1, 1]} : vector<288x4xbf16> to vector<256x4xbf16>
    %c0_3 = arith.constant 0 : index
    %c0_4 = arith.constant 0 : index
    %c0_5 = arith.constant 0 : index
    %5 = vector.load %arg2[%c0_3, %c0_4, %c0_5] : memref<9x4x8xbf16, #tpu.memory_space<vmem>>, vector<1x4x8xbf16>
    %6 = vector.shape_cast %5 : vector<1x4x8xbf16> to vector<4x8xbf16>
    %cst_6 = arith.constant dense<0.000000e+00> : vector<256x8xf32>
    %7 = tpu.matmul %4, %6, %cst_6 {dimension_numbers = #tpu.dot_dimension_numbers<[1], [0], [0], [1], [0, 0, 1, 1], [], []>} : vector<256x4xbf16>, vector<4x8xbf16>, vector<256x8xf32> -> vector<256x8xf32>
    %8 = arith.addf %0, %7 : vector<256x8xf32>
    %9 = vector.extract_strided_slice %3 {offsets = [16, 0], sizes = [256, 4], strides = [1, 1]} : vector<288x4xbf16> to vector<256x4xbf16>
    %c3 = arith.constant 3 : index
    %c0_7 = arith.constant 0 : index
    %c0_8 = arith.constant 0 : index
    %10 = vector.load %arg2[%c3, %c0_7, %c0_8] : memref<9x4x8xbf16, #tpu.memory_space<vmem>>, vector<1x4x8xbf16>
    %11 = vector.shape_cast %10 : vector<1x4x8xbf16> to vector<4x8xbf16>
    %cst_9 = arith.constant dense<0.000000e+00> : vector<256x8xf32>
    %12 = tpu.matmul %9, %11, %cst_9 {dimension_numbers = #tpu.dot_dimension_numbers<[1], [0], [0], [1], [0, 0, 1, 1], [], []>} : vector<256x4xbf16>, vector<4x8xbf16>, vector<256x8xf32> -> vector<256x8xf32>
    %13 = arith.addf %8, %12 : vector<256x8xf32>
    %14 = vector.extract_strided_slice %3 {offsets = [32, 0], sizes = [256, 4], strides = [1, 1]} : vector<288x4xbf16> to vector<256x4xbf16>
    %c6 = arith.constant 6 : index
    %c0_10 = arith.constant 0 : index
    %c0_11 = arith.constant 0 : index
    %15 = vector.load %arg2[%c6, %c0_10, %c0_11] : memref<9x4x8xbf16, #tpu.memory_space<vmem>>, vector<1x4x8xbf16>
    %16 = vector.shape_cast %15 : vector<1x4x8xbf16> to vector<4x8xbf16>
    %cst_12 = arith.constant dense<0.000000e+00> : vector<256x8xf32>
    %17 = tpu.matmul %14, %16, %cst_12 {dimension_numbers = #tpu.dot_dimension_numbers<[1], [0], [0], [1], [0, 0, 1, 1], [], []>} : vector<256x4xbf16>, vector<4x8xbf16>, vector<256x8xf32> -> vector<256x8xf32>
    %18 = arith.addf %13, %17 : vector<256x8xf32>
    %c0_13 = arith.constant 0 : index
    %c0_14 = arith.constant 0 : index
    %c1 = arith.constant 1 : index
    %c0_15 = arith.constant 0 : index
    %19 = vector.load %arg1[%c0_13, %c0_14, %c1, %c0_15] : memref<1x18x18x4xbf16, #tpu.memory_space<vmem>>, vector<1x18x16x4xbf16>
    %20 = vector.shape_cast %19 : vector<1x18x16x4xbf16> to vector<18x16x4xbf16>
    %21 = vector.shape_cast %20 : vector<18x16x4xbf16> to vector<288x4xbf16>
    %22 = vector.extract_strided_slice %21 {offsets = [0, 0], sizes = [256, 4], strides = [1, 1]} : vector<288x4xbf16> to vector<256x4xbf16>
    %c1_16 = arith.constant 1 : index
    %c0_17 = arith.constant 0 : index
    %c0_18 = arith.constant 0 : index
    %23 = vector.load %arg2[%c1_16, %c0_17, %c0_18] : memref<9x4x8xbf16, #tpu.memory_space<vmem>>, vector<1x4x8xbf16>
    %24 = vector.shape_cast %23 : vector<1x4x8xbf16> to vector<4x8xbf16>
    %cst_19 = arith.constant dense<0.000000e+00> : vector<256x8xf32>
    %25 = tpu.matmul %22, %24, %cst_19 {dimension_numbers = #tpu.dot_dimension_numbers<[1], [0], [0], [1], [0, 0, 1, 1], [], []>} : vector<256x4xbf16>, vector<4x8xbf16>, vector<256x8xf32> -> vector<256x8xf32>
    %26 = arith.addf %18, %25 : vector<256x8xf32>
    %27 = vector.extract_strided_slice %21 {offsets = [16, 0], sizes = [256, 4], strides = [1, 1]} : vector<288x4xbf16> to vector<256x4xbf16>
    %c4 = arith.constant 4 : index
    %c0_20 = arith.constant 0 : index
    %c0_21 = arith.constant 0 : index
    %28 = vector.load %arg2[%c4, %c0_20, %c0_21] : memref<9x4x8xbf16, #tpu.memory_space<vmem>>, vector<1x4x8xbf16>
    %29 = vector.shape_cast %28 : vector<1x4x8xbf16> to vector<4x8xbf16>
    %cst_22 = arith.constant dense<0.000000e+00> : vector<256x8xf32>
    %30 = tpu.matmul %27, %29, %cst_22 {dimension_numbers = #tpu.dot_dimension_numbers<[1], [0], [0], [1], [0, 0, 1, 1], [], []>} : vector<256x4xbf16>, vector<4x8xbf16>, vector<256x8xf32> -> vector<256x8xf32>
    %31 = arith.addf %26, %30 : vector<256x8xf32>
    %32 = vector.extract_strided_slice %21 {offsets = [32, 0], sizes = [256, 4], strides = [1, 1]} : vector<288x4xbf16> to vector<256x4xbf16>
    %c7 = arith.constant 7 : index
    %c0_23 = arith.constant 0 : index
    %c0_24 = arith.constant 0 : index
    %33 = vector.load %arg2[%c7, %c0_23, %c0_24] : memref<9x4x8xbf16, #tpu.memory_space<vmem>>, vector<1x4x8xbf16>
    %34 = vector.shape_cast %33 : vector<1x4x8xbf16> to vector<4x8xbf16>
    %cst_25 = arith.constant dense<0.000000e+00> : vector<256x8xf32>
    %35 = tpu.matmul %32, %34, %cst_25 {dimension_numbers = #tpu.dot_dimension_numbers<[1], [0], [0], [1], [0, 0, 1, 1], [], []>} : vector<256x4xbf16>, vector<4x8xbf16>, vector<256x8xf32> -> vector<256x8xf32>
    %36 = arith.addf %31, %35 : vector<256x8xf32>
    %c0_26 = arith.constant 0 : index
    %c0_27 = arith.constant 0 : index
    %c2 = arith.constant 2 : index
    %c0_28 = arith.constant 0 : index
    %37 = vector.load %arg1[%c0_26, %c0_27, %c2, %c0_28] : memref<1x18x18x4xbf16, #tpu.memory_space<vmem>>, vector<1x18x16x4xbf16>
    %38 = vector.shape_cast %37 : vector<1x18x16x4xbf16> to vector<18x16x4xbf16>
    %39 = vector.shape_cast %38 : vector<18x16x4xbf16> to vector<288x4xbf16>
    %40 = vector.extract_strided_slice %39 {offsets = [0, 0], sizes = [256, 4], strides = [1, 1]} : vector<288x4xbf16> to vector<256x4xbf16>
    %c2_29 = arith.constant 2 : index
    %c0_30 = arith.constant 0 : index
    %c0_31 = arith.constant 0 : index
    %41 = vector.load %arg2[%c2_29, %c0_30, %c0_31] : memref<9x4x8xbf16, #tpu.memory_space<vmem>>, vector<1x4x8xbf16>
    %42 = vector.shape_cast %41 : vector<1x4x8xbf16> to vector<4x8xbf16>
    %cst_32 = arith.constant dense<0.000000e+00> : vector<256x8xf32>
    %43 = tpu.matmul %40, %42, %cst_32 {dimension_numbers = #tpu.dot_dimension_numbers<[1], [0], [0], [1], [0, 0, 1, 1], [], []>} : vector<256x4xbf16>, vector<4x8xbf16>, vector<256x8xf32> -> vector<256x8xf32>
    %44 = arith.addf %36, %43 : vector<256x8xf32>
    %45 = vector.extract_strided_slice %39 {offsets = [16, 0], sizes = [256, 4], strides = [1, 1]} : vector<288x4xbf16> to vector<256x4xbf16>
    %c5 = arith.constant 5 : index
    %c0_33 = arith.constant 0 : index
    %c0_34 = arith.constant 0 : index
    %46 = vector.load %arg2[%c5, %c0_33, %c0_34] : memref<9x4x8xbf16, #tpu.memory_space<vmem>>, vector<1x4x8xbf16>
    %47 = vector.shape_cast %46 : vector<1x4x8xbf16> to vector<4x8xbf16>
    %cst_35 = arith.constant dense<0.000000e+00> : vector<256x8xf32>
    %48 = tpu.matmul %45, %47, %cst_35 {dimension_numbers = #tpu.dot_dimension_numbers<[1], [0], [0], [1], [0, 0, 1, 1], [], []>} : vector<256x4xbf16>, vector<4x8xbf16>, vector<256x8xf32> -> vector<256x8xf32>
    %49 = arith.addf %44, %48 : vector<256x8xf32>
    %50 = vector.extract_strided_slice %39 {offsets = [32, 0], sizes = [256, 4], strides = [1, 1]} : vector<288x4xbf16> to vector<256x4xbf16>
    %c8 = arith.constant 8 : index
    %c0_36 = arith.constant 0 : index
    %c0_37 = arith.constant 0 : index
    %51 = vector.load %arg2[%c8, %c0_36, %c0_37] : memref<9x4x8xbf16, #tpu.memory_space<vmem>>, vector<1x4x8xbf16>
    %52 = vector.shape_cast %51 : vector<1x4x8xbf16> to vector<4x8xbf16>
    %cst_38 = arith.constant dense<0.000000e+00> : vector<256x8xf32>
    %53 = tpu.matmul %50, %52, %cst_38 {dimension_numbers = #tpu.dot_dimension_numbers<[1], [0], [0], [1], [0, 0, 1, 1], [], []>} : vector<256x4xbf16>, vector<4x8xbf16>, vector<256x8xf32> -> vector<256x8xf32>
    %54 = arith.addf %49, %53 : vector<256x8xf32>
    %55 = vector.shape_cast %54 : vector<256x8xf32> to vector<1x256x8xf32>
    %c0_39 = arith.constant 0 : index
    %c0_40 = arith.constant 0 : index
    %c0_41 = arith.constant 0 : index
    %56 = vector.load %arg3[%c0_39, %c0_40, %c0_41] : memref<1x256x8xf32, #tpu.memory_space<vmem>>, vector<1x256x8xf32>
    tpu.vector_store %arg3[%c0_39, %c0_40, %c0_41], %55 {strides = array<i32>} : memref<1x256x8xf32, #tpu.memory_space<vmem>>, vector<1x256x8xf32>,
    %cst_42 = arith.constant dense<0.000000e+00> : vector<8xf32>
    %57 = vector.multi_reduction <add>, %54, %cst_42 [0] : vector<256x8xf32> to vector<8xf32>
    %58 = vector.shape_cast %57 : vector<8xf32> to vector<1x8xf32>
    %59 = vector.shape_cast %58 : vector<1x8xf32> to vector<1x1x8xf32>
    %c0_43 = arith.constant 0 : index
    %c0_44 = arith.constant 0 : index
    %c0_45 = arith.constant 0 : index
    %60 = vector.load %arg4[%c0_43, %c0_44, %c0_45] : memref<1x1x8xf32, #tpu.memory_space<vmem>>, vector<1x1x8xf32>
    tpu.vector_store %arg4[%c0_43, %c0_44, %c0_45], %59 {strides = array<i32>} : memref<1x1x8xf32, #tpu.memory_space<vmem>>, vector<1x1x8xf32>,
    %61 = arith.mulf %54, %54 : vector<256x8xf32>
    %cst_46 = arith.constant dense<0.000000e+00> : vector<8xf32>
    %62 = vector.multi_reduction <add>, %61, %cst_46 [0] : vector<256x8xf32> to vector<8xf32>
    %63 = vector.shape_cast %62 : vector<8xf32> to vector<1x8xf32>
    %64 = vector.shape_cast %63 : vector<1x8xf32> to vector<1x1x8xf32>
    %c0_47 = arith.constant 0 : index
    %c0_48 = arith.constant 0 : index
    %c0_49 = arith.constant 0 : index
    %65 = vector.load %arg5[%c0_47, %c0_48, %c0_49] : memref<1x1x8xf32, #tpu.memory_space<vmem>>, vector<1x1x8xf32>
    tpu.vector_store %arg5[%c0_47, %c0_48, %c0_49], %64 {strides = array<i32>} : memref<1x1x8xf32, #tpu.memory_space<vmem>>, vector<1x1x8xf32>,
    return
  }
  func.func @transform_0(%arg0: i32) -> (i32, i32, i32, i32) {
    %c0_i32 = arith.constant 0 : i32
    %c0_i32_0 = arith.constant 0 : i32
    %c0_i32_1 = arith.constant 0 : i32
    %c0_i32_2 = arith.constant 0 : i32
    return %arg0, %c0_i32, %c0_i32_0, %c0_i32_1 : i32, i32, i32, i32
  }
  func.func @transform_1(%arg0: i32) -> (i32, i32, i32) {
    %c0_i32 = arith.constant 0 : i32
    %c0_i32_0 = arith.constant 0 : i32
    %c0_i32_1 = arith.constant 0 : i32
    %c0_i32_2 = arith.constant 0 : i32
    return %c0_i32, %c0_i32_0, %c0_i32_1 : i32, i32, i32
  }
  func.func @transform_2(%arg0: i32) -> (i32, i32, i32) {
    %c0_i32 = arith.constant 0 : i32
    %c0_i32_0 = arith.constant 0 : i32
    %c0_i32_1 = arith.constant 0 : i32
    return %arg0, %c0_i32, %c0_i32_0 : i32, i32, i32
  }
  func.func @transform_3(%arg0: i32) -> (i32, i32, i32) {
    %c0_i32 = arith.constant 0 : i32
    %c0_i32_0 = arith.constant 0 : i32
    %c0_i32_1 = arith.constant 0 : i32
    return %arg0, %c0_i32, %c0_i32_0 : i32, i32, i32
  }
  func.func @transform_4(%arg0: i32) -> (i32, i32, i32) {
    %c0_i32 = arith.constant 0 : i32
    %c0_i32_0 = arith.constant 0 : i32
    %c0_i32_1 = arith.constant 0 : i32
    return %arg0, %c0_i32, %c0_i32_0 : i32, i32, i32
  }
}

module attributes {stable_mosaic.version = 11 : i64} {
  func.func @bn_relu_pool_kernel(%arg0: i32, %arg1: memref<1x16x16x8xf32, #tpu.memory_space<vmem>>, %arg2: memref<1x8xf32, #tpu.memory_space<vmem>>, %arg3: memref<1x8xf32, #tpu.memory_space<vmem>>, %arg4: memref<1x8x8x8xf32, #tpu.memory_space<vmem>>) attributes {dimension_semantics = [#tpu.dimension_semantics<parallel>], iteration_bounds = array<i64: 2>, scalar_prefetch = 0 : i64, scratch_operands = 0 : i64, tpu.core_type = #tpu.core_type<tc>, window_params = [{transform_indices = @transform_0, window_bounds = array<i64: 1, 16, 16, 8>}, {pipeline_mode = #tpu.pipeline_mode<synchronous>, transform_indices = @transform_1, window_bounds = array<i64: 1, 8>}, {pipeline_mode = #tpu.pipeline_mode<synchronous>, transform_indices = @transform_2, window_bounds = array<i64: 1, 8>}, {transform_indices = @transform_3, window_bounds = array<i64: 1, 8, 8, 8>}]} {
    %c0 = arith.constant 0 : index
    %c0_0 = arith.constant 0 : index
    %0 = vector.load %arg2[%c0, %c0_0] : memref<1x8xf32, #tpu.memory_space<vmem>>, vector<1x8xf32>
    %c0_1 = arith.constant 0 : index
    %c0_2 = arith.constant 0 : index
    %1 = vector.load %arg3[%c0_1, %c0_2] : memref<1x8xf32, #tpu.memory_space<vmem>>, vector<1x8xf32>
    %c0_3 = arith.constant 0 : index
    %c0_4 = arith.constant 0 : index
    %c0_5 = arith.constant 0 : index
    %c0_6 = arith.constant 0 : index
    %2 = vector.load %arg1[%c0_3, %c0_4, %c0_5, %c0_6] : memref<1x16x16x8xf32, #tpu.memory_space<vmem>>, vector<1x16x16x8xf32>
    %3 = vector.shape_cast %0 : vector<1x8xf32> to vector<1x1x1x8xf32>
    %4 = vector.broadcast %3 : vector<1x1x1x8xf32> to vector<1x16x16x8xf32>
    %5 = arith.mulf %2, %4 : vector<1x16x16x8xf32>
    %6 = vector.shape_cast %1 : vector<1x8xf32> to vector<1x1x1x8xf32>
    %7 = vector.broadcast %6 : vector<1x1x1x8xf32> to vector<1x16x16x8xf32>
    %8 = arith.addf %5, %7 : vector<1x16x16x8xf32>
    %cst = arith.constant 0.000000e+00 : f32
    %9 = vector.broadcast %cst : f32 to vector<1x16x16x8xf32>
    %10 = arith.maximumf %8, %9 : vector<1x16x16x8xf32>
    %11 = vector.shape_cast %10 : vector<1x16x16x8xf32> to vector<16x8x2x8xf32>
    %cst_7 = arith.constant dense<0xFF800000> : vector<16x8x8xf32>
    %12 = vector.multi_reduction <maximumf>, %11, %cst_7 [2] : vector<16x8x2x8xf32> to vector<16x8x8xf32>
    %13 = vector.shape_cast %12 : vector<16x8x8xf32> to vector<8x2x8x8xf32>
    %cst_8 = arith.constant dense<0xFF800000> : vector<8x8x8xf32>
    %14 = vector.multi_reduction <maximumf>, %13, %cst_8 [1] : vector<8x2x8x8xf32> to vector<8x8x8xf32>
    %15 = vector.shape_cast %14 : vector<8x8x8xf32> to vector<1x8x8x8xf32>
    %c0_9 = arith.constant 0 : index
    %c0_10 = arith.constant 0 : index
    %c0_11 = arith.constant 0 : index
    %c0_12 = arith.constant 0 : index
    %16 = vector.load %arg4[%c0_9, %c0_10, %c0_11, %c0_12] : memref<1x8x8x8xf32, #tpu.memory_space<vmem>>, vector<1x8x8x8xf32>
    tpu.vector_store %arg4[%c0_9, %c0_10, %c0_11, %c0_12], %15 {strides = array<i32>} : memref<1x8x8x8xf32, #tpu.memory_space<vmem>>, vector<1x8x8x8xf32>,
    return
  }
  func.func @transform_0(%arg0: i32) -> (i32, i32, i32, i32) {
    %c0_i32 = arith.constant 0 : i32
    %c0_i32_0 = arith.constant 0 : i32
    %c0_i32_1 = arith.constant 0 : i32
    %c0_i32_2 = arith.constant 0 : i32
    return %arg0, %c0_i32, %c0_i32_0, %c0_i32_1 : i32, i32, i32, i32
  }
  func.func @transform_1(%arg0: i32) -> (i32, i32) {
    %c0_i32 = arith.constant 0 : i32
    %c0_i32_0 = arith.constant 0 : i32
    %c0_i32_1 = arith.constant 0 : i32
    return %c0_i32, %c0_i32_0 : i32, i32
  }
  func.func @transform_2(%arg0: i32) -> (i32, i32) {
    %c0_i32 = arith.constant 0 : i32
    %c0_i32_0 = arith.constant 0 : i32
    %c0_i32_1 = arith.constant 0 : i32
    return %c0_i32, %c0_i32_0 : i32, i32
  }
  func.func @transform_3(%arg0: i32) -> (i32, i32, i32, i32) {
    %c0_i32 = arith.constant 0 : i32
    %c0_i32_0 = arith.constant 0 : i32
    %c0_i32_1 = arith.constant 0 : i32
    %c0_i32_2 = arith.constant 0 : i32
    return %arg0, %c0_i32, %c0_i32_0, %c0_i32_1 : i32, i32, i32, i32
  }
}

</mosaic_0001>

<llo_original>
// kernel: conv_block_forward.3
$region0: #{conv_block_forward.3}
  #allocation0 [shape = 'u32[]', space=smem, size = 0x4, offset = 0x4, fixed_abs, tag = 'smem constant byte address 0x4 - core index']
  #allocation1 [shape = 'u32[72,128]{1,0:T(1,128)}', space=vmem, size = 0x9000, scoped, tag = 'internal scratch']
  %s0 = inlined_call_operand.vmem [shape: f32[2,16,16,8], index: 0, kind: input, shape index: {}]
  %s1 = inlined_call_operand.vmem [shape: f32[1,8], index: 1, kind: input, shape index: {}]
  %s2 = inlined_call_operand.vmem [shape: f32[1,8], index: 2, kind: input, shape index: {}]
  %s3 = inlined_call_operand.vmem [shape: f32[2,8,8,8], index: 3, kind: output, shape index: {}]
  %s4 = sld [smem:[#allocation0]]
  $region45: #{conv_block_forward.3} parent=0
    _
  %s6 = ssub.s32 1, %s4
  %s7 = scalar_select 0, %s6, %s4
  loop: start=0, step=1, limit=4
  $region2: #{conv_block_forward.3} parent=0 // loop_pre_header
    _
  $region3: #{conv_block_forward.3} parent=0 // loop_header
    %s9 = sphi 0, %s13
    %p10 = scmp.ge.s32.totalorder %s9, 4
    %s19 = sphi 0, %s21
    %s22 = sphi 0, %s19
    %s23 = sphi 0, %s22
    %s39 = sphi 0, %s23
    %s43 = sphi 0, %s43
    %s45 = sphi 0, %s43
    %s46 = sphi 0, %s45
    %s60 = sphi 0, %s46
    %s64 = sphi 0, %s64
    %s66 = sphi 0, %s64
    %s67 = sphi 0, %s66
    %s81 = sphi 0, %s67
    %s87 = sphi 0, %s89
    %s90 = sphi 0, %s87
    %s91 = sphi 0, %s90
    %s107 = sphi 0, %s91
  $region4: #{conv_block_forward.3} parent=0 // loop_header_branch
    %12 = sbr.rel (%p10) target = $region8
  $region5: #{conv_block_forward.3} parent=0 // loop_body
    %s14 = ssub.s32 %s9, 1
    %s15 = ssub.s32 %s9, 2
    %s16 = sadd.s32 %s9, 1
    %s17 = ssub.s32 %s9, %s16
    %p18 = scmp.eq.s32.totalorder %s17, 0
    %s20 = sadd.s32 %s19, 1
    %s21 = scalar_select %p18, %s19, %s20
    %p24 = pneg %p18
    %p25 = scmp.eq.s32.totalorder %s9, 1
    %p26 = por %p24, %p25
    %p27 = scmp.ne.s32.totalorder %s19, %s22
    %p28 = scmp.eq.s32.totalorder %s9, 0
    %p29 = por %p27, %p28
    %p30 = scmp.ne.s32.totalorder %s19, %s22
    %p31 = scmp.eq.s32.totalorder %s14, 1
    %p32 = por %p30, %p31
    %p33 = scmp.ne.s32.totalorder %s22, %s23
    %p34 = scmp.eq.s32.totalorder %s14, 0
    %p35 = por %p33, %p34
    %p36 = scmp.ne.s32.totalorder %s22, %s23
    %p37 = scmp.eq.s32.totalorder %s15, 1
    %p38 = por %p36, %p37
    %p40 = scmp.ne.s32.totalorder %s23, %s39
    %p41 = scmp.eq.s32.totalorder %s15, 0
    %p42 = por %p40, %p41
    %s44 = sadd.s32 %s43, 1
    %p47 = scmp.eq.s32.totalorder %s9, 1
    %p48 = scmp.ne.s32.totalorder %s43, %s45
    %p49 = scmp.eq.s32.totalorder %s9, 0
    %p50 = por %p48, %p49
    %p51 = scmp.ne.s32.totalorder %s43, %s45
    %p52 = scmp.eq.s32.totalorder %s14, 1
    %p53 = por %p51, %p52
    %p54 = scmp.ne.s32.totalorder %s45, %s46
    %p55 = scmp.eq.s32.totalorder %s14, 0
    %p56 = por %p54, %p55
    %p57 = scmp.ne.s32.totalorder %s45, %s46
    %p58 = scmp.eq.s32.totalorder %s15, 1
    %p59 = por %p57, %p58
    %p61 = scmp.ne.s32.totalorder %s46, %s60
    %p62 = scmp.eq.s32.totalorder %s15, 0
    %p63 = por %p61, %p62
    %s65 = sadd.s32 %s64, 1
    %p68 = scmp.eq.s32.totalorder %s9, 1
    %p69 = scmp.ne.s32.totalorder %s64, %s66
    %p70 = scmp.eq.s32.totalorder %s9, 0
    %p71 = por %p69, %p70
    %p72 = scmp.ne.s32.totalorder %s64, %s66
    %p73 = scmp.eq.s32.totalorder %s14, 1
    %p74 = por %p72, %p73
    %p75 = scmp.ne.s32.totalorder %s66, %s67
    %p76 = scmp.eq.s32.totalorder %s14, 0
    %p77 = por %p75, %p76
    %p78 = scmp.ne.s32.totalorder %s66, %s67
    %p79 = scmp.eq.s32.totalorder %s15, 1
    %p80 = por %p78, %p79
    %p82 = scmp.ne.s32.totalorder %s67, %s81
    %p83 = scmp.eq.s32.totalorder %s15, 0
    %p84 = por %p82, %p83
    %s85 = ssub.s32 %s9, %s16
    %p86 = scmp.eq.s32.totalorder %s85, 0
    %s88 = sadd.s32 %s87, 1
    %s89 = scalar_select %p86, %s87, %s88
    %p92 = pneg %p86
    %p93 = scmp.eq.s32.totalorder %s9, 1
    %p94 = por %p92, %p93
    %p95 = scmp.ne.s32.totalorder %s87, %s90
    %p96 = scmp.eq.s32.totalorder %s9, 0
    %p97 = por %p95, %p96
    %p98 = scmp.ne.s32.totalorder %s87, %s90
    %p99 = scmp.eq.s32.totalorder %s14, 1
    %p100 = por %p98, %p99
    %p101 = scmp.ne.s32.totalorder %s90, %s91
    %p102 = scmp.eq.s32.totalorder %s14, 0
    %p103 = por %p101, %p102
    %p104 = scmp.ne.s32.totalorder %s90, %s91
    %p105 = scmp.eq.s32.totalorder %s15, 1
    %p106 = por %p104, %p105
    %p108 = scmp.ne.s32.totalorder %s91, %s107
    %p109 = scmp.eq.s32.totalorder %s15, 0
    %p110 = por %p108, %p109
    %p111 = scmp.le.s32.totalorder 1, %s9
    %p112 = scmp.lt.s32.totalorder %s9, 3
    %p113 = pnand %p111, %p112
    %p114 = pneg %p113
    // Predicated region
    $region9: #{conv_block_forward.3} parent=5 // pred_check
      _
    $region10: #{conv_block_forward.3} parent=5 // pred_check_branch
      %116 = sbr.rel (%p113) target = $region12
    $region11: #{conv_block_forward.3} parent=5 // pred_region
      %s117 = ssub.s32 %s9, 1
      // Predicated region
      $region13: #{conv_block_forward.3} parent=11 // pred_check
        %p118 = pneg %p56
      $region14: #{conv_block_forward.3} parent=11 // pred_check_branch
        %120 = sbr.rel (%p118) target = $region16
      $region15: #{conv_block_forward.3} parent=11 // pred_region
        _
      $region16: #{conv_block_forward.3} parent=11 // pred_fallthru
        _
      // Predicated region
      $region17: #{conv_block_forward.3} parent=11 // pred_check
        %p121 = pneg %p77
      $region18: #{conv_block_forward.3} parent=11 // pred_check_branch
        %123 = sbr.rel (%p121) target = $region20
      $region19: #{conv_block_forward.3} parent=11 // pred_region
        _
      $region20: #{conv_block_forward.3} parent=11 // pred_fallthru
        _
    $region12: #{conv_block_forward.3} parent=5 // pred_fallthru
      _
    %p124 = scmp.lt.s32.totalorder %s9, 2
    // Predicated region
    $region21: #{conv_block_forward.3} parent=5 // pred_check
      %p125 = pneg %p124
    $region22: #{conv_block_forward.3} parent=5 // pred_check_branch
      %127 = sbr.rel (%p125) target = $region24
    $region23: #{conv_block_forward.3} parent=5 // pred_region
      // Predicated region
      $region25: #{conv_block_forward.3} parent=23 // pred_check
        %p128 = pneg %p29
      $region26: #{conv_block_forward.3} parent=23 // pred_check_branch
        %130 = sbr.rel (%p128) target = $region28
      $region27: #{conv_block_forward.3} parent=23 // pred_region
        %p131 = scmp.lt.s32.totalorder %s9, 1
        %s132 = scalar_select %p131, %s9, 1
        %s133 = smul.addr %s132, 32
        %s134 = smul.addr %s133, 8
        %s135 = scalar_lea.vmem %s0, %s134
      $region28: #{conv_block_forward.3} parent=23 // pred_fallthru
        _
    $region24: #{conv_block_forward.3} parent=5 // pred_fallthru
      _
    %p136 = scmp.le.s32.totalorder 1, %s9
    %p137 = scmp.lt.s32.totalorder %s9, 3
    %p138 = pnand %p136, %p137
    %p139 = pneg %p138
    // Predicated region
    $region29: #{conv_block_forward.3} parent=5 // pred_check
      _
    $region30: #{conv_block_forward.3} parent=5 // pred_check_branch
      %141 = sbr.rel (%p138) target = $region32
    $region31: #{conv_block_forward.3} parent=5 // pred_region
      %s142 = ssub.s32 %s9, 1
      %p143 = scmp.lt.s32.totalorder %s14, 1
      %s144 = scalar_select %p143, %s14, 1
      %s145 = smul.addr %s144, 32
      %s146 = smul.addr %s145, 8
      %s147 = scalar_lea.vmem %s0, %s146
      %p148 = pneg %p35
      %p149 = pneg %p32
      %p150 = pneg %p56
      %p151 = pneg %p53
      %p152 = pneg %p77
      %p153 = pneg %p74
      %p154 = pneg %p103
      %p155 = pneg %p100
      %p156 = scmp.lt.s32.totalorder %s14, 1
      %s157 = scalar_select %p156, %s14, 1
      %s158 = smul.addr %s157, 8
      %s159 = smul.addr %s158, 8
      %s160 = scalar_lea.vmem %s3, %s159
      %p161 = scmp.lt.s32.totalorder %s14, 1
      %s162 = scalar_select %p161, %s14, 1
      %s163 = smul.addr %s162, 32
      %s164 = smul.addr %s163, 8
      %s165 = scalar_lea.vmem %s0, %s164
      %p166 = scmp.lt.s32.totalorder %s14, 1
      %s167 = scalar_select %p166, %s14, 1
      %s168 = smul.addr %s167, 8
      %s169 = smul.addr %s168, 8
      %s170 = scalar_lea.vmem %s3, %s169
      %v171 = vld [vmem:[%s1] sm:$0x1]
      %v172 = vld [vmem:[%s2] sm:$0x1]
      %v173 = vld [vmem:[%s165] sm:$0xff]
      %v174 = vld [vmem:[%s165 + $0x8] sm:$0xff]
      %v175 = vld [vmem:[%s165 + $0x10] sm:$0xff]
      %v176 = vld [vmem:[%s165 + $0x18] sm:$0xff]
      %v177 = vld [vmem:[%s165 + $0x20] sm:$0xff]
      %v178 = vld [vmem:[%s165 + $0x28] sm:$0xff]
      %v179 = vld [vmem:[%s165 + $0x30] sm:$0xff]
      %v180 = vld [vmem:[%s165 + $0x38] sm:$0xff]
      %v181 = vld [vmem:[%s165 + $0x40] sm:$0xff]
      %v182 = vld [vmem:[%s165 + $0x48] sm:$0xff]
      %v183 = vld [vmem:[%s165 + $0x50] sm:$0xff]
      %v184 = vld [vmem:[%s165 + $0x58] sm:$0xff]
      %v185 = vld [vmem:[%s165 + $0x60] sm:$0xff]
      %v186 = vld [vmem:[%s165 + $0x68] sm:$0xff]
      %v187 = vld [vmem:[%s165 + $0x70] sm:$0xff]
      %v188 = vld [vmem:[%s165 + $0x78] sm:$0xff]
      %v189 = vld [vmem:[%s165 + $0x80] sm:$0xff]
      %v190 = vld [vmem:[%s165 + $0x88] sm:$0xff]
      %v191 = vld [vmem:[%s165 + $0x90] sm:$0xff]
      %v192 = vld [vmem:[%s165 + $0x98] sm:$0xff]
      %v193 = vld [vmem:[%s165 + $0xa0] sm:$0xff]
      %v194 = vld [vmem:[%s165 + $0xa8] sm:$0xff]
      %v195 = vld [vmem:[%s165 + $0xb0] sm:$0xff]
      %v196 = vld [vmem:[%s165 + $0xb8] sm:$0xff]
      %v197 = vld [vmem:[%s165 + $0xc0] sm:$0xff]
      %v198 = vld [vmem:[%s165 + $0xc8] sm:$0xff]
      %v199 = vld [vmem:[%s165 + $0xd0] sm:$0xff]
      %v200 = vld [vmem:[%s165 + $0xd8] sm:$0xff]
      %v201 = vld [vmem:[%s165 + $0xe0] sm:$0xff]
      %v202 = vld [vmem:[%s165 + $0xe8] sm:$0xff]
      %v203 = vld [vmem:[%s165 + $0xf0] sm:$0xff]
      %v204 = vld [vmem:[%s165 + $0xf8] sm:$0xff]
      %v206 = vperm.slane %v171, 0
      %v208 = vmul.f32 %v173, %v206
      %v209 = vmul.f32 %v174, %v206
      %v210 = vmul.f32 %v175, %v206
      %v211 = vmul.f32 %v176, %v206
      %v212 = vmul.f32 %v177, %v206
      %v213 = vmul.f32 %v178, %v206
      %v214 = vmul.f32 %v179, %v206
      %v215 = vmul.f32 %v180, %v206
      %v216 = vmul.f32 %v181, %v206
      %v217 = vmul.f32 %v182, %v206
      %v218 = vmul.f32 %v183, %v206
      %v219 = vmul.f32 %v184, %v206
      %v220 = vmul.f32 %v185, %v206
      %v221 = vmul.f32 %v186, %v206
      %v222 = vmul.f32 %v187, %v206
      %v223 = vmul.f32 %v188, %v206
      %v224 = vmul.f32 %v189, %v206
      %v225 = vmul.f32 %v190, %v206
      %v226 = vmul.f32 %v191, %v206
      %v227 = vmul.f32 %v192, %v206
      %v228 = vmul.f32 %v193, %v206
      %v229 = vmul.f32 %v194, %v206
      %v230 = vmul.f32 %v195, %v206
      %v231 = vmul.f32 %v196, %v206
      %v232 = vmul.f32 %v197, %v206
      %v233 = vmul.f32 %v198, %v206
      %v234 = vmul.f32 %v199, %v206
      %v235 = vmul.f32 %v200, %v206
      %v236 = vmul.f32 %v201, %v206
      %v237 = vmul.f32 %v202, %v206
      %v238 = vmul.f32 %v203, %v206
      %v239 = vmul.f32 %v204, %v206
      %v241 = vperm.slane %v172, 0
      %v243 = vadd.f32 %v208, %v241
      %v244 = vadd.f32 %v209, %v241
      %v245 = vadd.f32 %v210, %v241
      %v246 = vadd.f32 %v211, %v241
      %v247 = vadd.f32 %v212, %v241
      %v248 = vadd.f32 %v213, %v241
      %v249 = vadd.f32 %v214, %v241
      %v250 = vadd.f32 %v215, %v241
      %v251 = vadd.f32 %v216, %v241
      %v252 = vadd.f32 %v217, %v241
      %v253 = vadd.f32 %v218, %v241
      %v254 = vadd.f32 %v219, %v241
      %v255 = vadd.f32 %v220, %v241
      %v256 = vadd.f32 %v221, %v241
      %v257 = vadd.f32 %v222, %v241
      %v258 = vadd.f32 %v223, %v241
      %v259 = vadd.f32 %v224, %v241
      %v260 = vadd.f32 %v225, %v241
      %v261 = vadd.f32 %v226, %v241
      %v262 = vadd.f32 %v227, %v241
      %v263 = vadd.f32 %v228, %v241
      %v264 = vadd.f32 %v229, %v241
      %v265 = vadd.f32 %v230, %v241
      %v266 = vadd.f32 %v231, %v241
      %v267 = vadd.f32 %v232, %v241
      %v268 = vadd.f32 %v233, %v241
      %v269 = vadd.f32 %v234, %v241
      %v270 = vadd.f32 %v235, %v241
      %v271 = vadd.f32 %v236, %v241
      %v272 = vadd.f32 %v237, %v241
      %v273 = vadd.f32 %v238, %v241
      %v274 = vadd.f32 %v239, %v241
      %v275 = vmax.f32 %v243, 0.0
      %v276 = vmax.f32 %v244, 0.0
      %v277 = vmax.f32 %v245, 0.0
      %v278 = vmax.f32 %v246, 0.0
      %v279 = vmax.f32 %v247, 0.0
      %v280 = vmax.f32 %v248, 0.0
      %v281 = vmax.f32 %v249, 0.0
      %v282 = vmax.f32 %v250, 0.0
      %v283 = vmax.f32 %v251, 0.0
      %v284 = vmax.f32 %v252, 0.0
      %v285 = vmax.f32 %v253, 0.0
      %v286 = vmax.f32 %v254, 0.0
      %v287 = vmax.f32 %v255, 0.0
      %v288 = vmax.f32 %v256, 0.0
      %v289 = vmax.f32 %v257, 0.0
      %v290 = vmax.f32 %v258, 0.0
      %v291 = vmax.f32 %v259, 0.0
      %v292 = vmax.f32 %v260, 0.0
      %v293 = vmax.f32 %v261, 0.0
      %v294 = vmax.f32 %v262, 0.0
      %v295 = vmax.f32 %v263, 0.0
      %v296 = vmax.f32 %v264, 0.0
      %v297 = vmax.f32 %v265, 0.0
      %v298 = vmax.f32 %v266, 0.0
      %v299 = vmax.f32 %v267, 0.0
      %v300 = vmax.f32 %v268, 0.0
      %v301 = vmax.f32 %v269, 0.0
      %v302 = vmax.f32 %v270, 0.0
      %v303 = vmax.f32 %v271, 0.0
      %v304 = vmax.f32 %v272, 0.0
      %v305 = vmax.f32 %v273, 0.0
      %v306 = vmax.f32 %v274, 0.0
      %v339 = vrot.slane %v275, 2
      %v340 = vrot.slane %v275, 4
      %v341 = vrot.slane %v275, 6
      %v342 = vrot.slane %v276, 2
      %v343 = vrot.slane %v276, 4
      %v344 = vrot.slane %v276, 6
      %v345 = vrot.slane %v277, 2
      %v346 = vrot.slane %v277, 4
      %v347 = vrot.slane %v277, 6
      %v348 = vrot.slane %v278, 2
      %v349 = vrot.slane %v278, 4
      %v350 = vrot.slane %v278, 6
      %v351 = vrot.slane %v279, 2
      %v352 = vrot.slane %v279, 4
      %v353 = vrot.slane %v279, 6
      %v354 = vrot.slane %v280, 2
      %v355 = vrot.slane %v280, 4
      %v356 = vrot.slane %v280, 6
      %v357 = vrot.slane %v281, 2
      %v358 = vrot.slane %v281, 4
      %v359 = vrot.slane %v281, 6
      %v360 = vrot.slane %v282, 2
      %v361 = vrot.slane %v282, 4
      %v362 = vrot.slane %v282, 6
      %v363 = vrot.slane %v283, 2
      %v364 = vrot.slane %v283, 4
      %v365 = vrot.slane %v283, 6
      %v366 = vrot.slane %v284, 2
      %v367 = vrot.slane %v284, 4
      %v368 = vrot.slane %v284, 6
      %v369 = vrot.slane %v285, 2
      %v370 = vrot.slane %v285, 4
      %v371 = vrot.slane %v285, 6
      %v372 = vrot.slane %v286, 2
      %v373 = vrot.slane %v286, 4
      %v374 = vrot.slane %v286, 6
      %v375 = vrot.slane %v287, 2
      %v376 = vrot.slane %v287, 4
      %v377 = vrot.slane %v287, 6
      %v378 = vrot.slane %v288, 2
      %v379 = vrot.slane %v288, 4
      %v380 = vrot.slane %v288, 6
      %v381 = vrot.slane %v289, 2
      %v382 = vrot.slane %v289, 4
      %v383 = vrot.slane %v289, 6
      %v384 = vrot.slane %v290, 2
      %v385 = vrot.slane %v290, 4
      %v386 = vrot.slane %v290, 6
      %v387 = vrot.slane %v291, 2
      %v388 = vrot.slane %v291, 4
      %v389 = vrot.slane %v291, 6
      %v390 = vrot.slane %v292, 2
      %v391 = vrot.slane %v292, 4
      %v392 = vrot.slane %v292, 6
      %v393 = vrot.slane %v293, 2
      %v394 = vrot.slane %v293, 4
      %v395 = vrot.slane %v293, 6
      %v396 = vrot.slane %v294, 2
      %v397 = vrot.slane %v294, 4
      %v398 = vrot.slane %v294, 6
      %v399 = vrot.slane %v295, 2
      %v400 = vrot.slane %v295, 4
      %v401 = vrot.slane %v295, 6
      %v402 = vrot.slane %v296, 2
      %v403 = vrot.slane %v296, 4
      %v404 = vrot.slane %v296, 6
      %v405 = vrot.slane %v297, 2
      %v406 = vrot.slane %v297, 4
      %v407 = vrot.slane %v297, 6
      %v408 = vrot.slane %v298, 2
      %v409 = vrot.slane %v298, 4
      %v410 = vrot.slane %v298, 6
      %v411 = vrot.slane %v299, 2
      %v412 = vrot.slane %v299, 4
      %v413 = vrot.slane %v299, 6
      %v414 = vrot.slane %v300, 2
      %v415 = vrot.slane %v300, 4
      %v416 = vrot.slane %v300, 6
      %v417 = vrot.slane %v301, 2
      %v418 = vrot.slane %v301, 4
      %v419 = vrot.slane %v301, 6
      %v420 = vrot.slane %v302, 2
      %v421 = vrot.slane %v302, 4
      %v422 = vrot.slane %v302, 6
      %v423 = vrot.slane %v303, 2
      %v424 = vrot.slane %v303, 4
      %v425 = vrot.slane %v303, 6
      %v426 = vrot.slane %v304, 2
      %v427 = vrot.slane %v304, 4
      %v428 = vrot.slane %v304, 6
      %v429 = vrot.slane %v305, 2
      %v430 = vrot.slane %v305, 4
      %v431 = vrot.slane %v305, 6
      %v432 = vrot.slane %v306, 2
      %v433 = vrot.slane %v306, 4
      %v434 = vrot.slane %v306, 6
      %vm531 = vcmask 58368
      %v532 = vsel %vm531, %v275, -inf
      %v533 = vrot.slane %v532, 4
      %v534 = vmax.f32 %v532, %v533
      %v535 = vrot.slane %v534, 2
      %v536 = vmax.f32 %v534, %v535
      %v537 = vrot.slane %v536, 1
      %v538 = vmax.f32 %v536, %v537
      %v539 = vsel %vm531, %v339, -inf
      %v540 = vrot.slane %v539, 4
      %v541 = vmax.f32 %v539, %v540
      %v542 = vrot.slane %v541, 2
      %v543 = vmax.f32 %v541, %v542
      %v544 = vrot.slane %v543, 1
      %v545 = vmax.f32 %v543, %v544
      %v546 = vsel %vm531, %v340, -inf
      %v547 = vrot.slane %v546, 4
      %v548 = vmax.f32 %v546, %v547
      %v549 = vrot.slane %v548, 2
      %v550 = vmax.f32 %v548, %v549
      %v551 = vrot.slane %v550, 1
      %v552 = vmax.f32 %v550, %v551
      %v553 = vsel %vm531, %v341, -inf
      %v554 = vrot.slane %v553, 4
      %v555 = vmax.f32 %v553, %v554
      %v556 = vrot.slane %v555, 2
      %v557 = vmax.f32 %v555, %v556
      %v558 = vrot.slane %v557, 1
      %v559 = vmax.f32 %v557, %v558
      %v560 = vsel %vm531, %v276, -inf
      %v561 = vrot.slane %v560, 4
      %v562 = vmax.f32 %v560, %v561
      %v563 = vrot.slane %v562, 2
      %v564 = vmax.f32 %v562, %v563
      %v565 = vrot.slane %v564, 1
      %v566 = vmax.f32 %v564, %v565
      %v567 = vsel %vm531, %v342, -inf
      %v568 = vrot.slane %v567, 4
      %v569 = vmax.f32 %v567, %v568
      %v570 = vrot.slane %v569, 2
      %v571 = vmax.f32 %v569, %v570
      %v572 = vrot.slane %v571, 1
      %v573 = vmax.f32 %v571, %v572
      %v574 = vsel %vm531, %v343, -inf
      %v575 = vrot.slane %v574, 4
      %v576 = vmax.f32 %v574, %v575
      %v577 = vrot.slane %v576, 2
      %v578 = vmax.f32 %v576, %v577
      %v579 = vrot.slane %v578, 1
      %v580 = vmax.f32 %v578, %v579
      %v581 = vsel %vm531, %v344, -inf
      %v582 = vrot.slane %v581, 4
      %v583 = vmax.f32 %v581, %v582
      %v584 = vrot.slane %v583, 2
      %v585 = vmax.f32 %v583, %v584
      %v586 = vrot.slane %v585, 1
      %v587 = vmax.f32 %v585, %v586
      %v588 = vsel %vm531, %v277, -inf
      %v589 = vrot.slane %v588, 4
      %v590 = vmax.f32 %v588, %v589
      %v591 = vrot.slane %v590, 2
      %v592 = vmax.f32 %v590, %v591
      %v593 = vrot.slane %v592, 1
      %v594 = vmax.f32 %v592, %v593
      %v595 = vsel %vm531, %v345, -inf
      %v596 = vrot.slane %v595, 4
      %v597 = vmax.f32 %v595, %v596
      %v598 = vrot.slane %v597, 2
      %v599 = vmax.f32 %v597, %v598
      %v600 = vrot.slane %v599, 1
      %v601 = vmax.f32 %v599, %v600
      %v602 = vsel %vm531, %v346, -inf
      %v603 = vrot.slane %v602, 4
      %v604 = vmax.f32 %v602, %v603
      %v605 = vrot.slane %v604, 2
      %v606 = vmax.f32 %v604, %v605
      %v607 = vrot.slane %v606, 1
      %v608 = vmax.f32 %v606, %v607
      %v609 = vsel %vm531, %v347, -inf
      %v610 = vrot.slane %v609, 4
      %v611 = vmax.f32 %v609, %v610
      %v612 = vrot.slane %v611, 2
      %v613 = vmax.f32 %v611, %v612
      %v614 = vrot.slane %v613, 1
      %v615 = vmax.f32 %v613, %v614
      %v616 = vsel %vm531, %v278, -inf
      %v617 = vrot.slane %v616, 4
      %v618 = vmax.f32 %v616, %v617
      %v619 = vrot.slane %v618, 2
      %v620 = vmax.f32 %v618, %v619
      %v621 = vrot.slane %v620, 1
      %v622 = vmax.f32 %v620, %v621
      %v623 = vsel %vm531, %v348, -inf
      %v624 = vrot.slane %v623, 4
      %v625 = vmax.f32 %v623, %v624
      %v626 = vrot.slane %v625, 2
      %v627 = vmax.f32 %v625, %v626
      %v628 = vrot.slane %v627, 1
      %v629 = vmax.f32 %v627, %v628
      %v630 = vsel %vm531, %v349, -inf
      %v631 = vrot.slane %v630, 4
      %v632 = vmax.f32 %v630, %v631
      %v633 = vrot.slane %v632, 2
      %v634 = vmax.f32 %v632, %v633
      %v635 = vrot.slane %v634, 1
      %v636 = vmax.f32 %v634, %v635
      %v637 = vsel %vm531, %v350, -inf
      %v638 = vrot.slane %v637, 4
      %v639 = vmax.f32 %v637, %v638
      %v640 = vrot.slane %v639, 2
      %v641 = vmax.f32 %v639, %v640
      %v642 = vrot.slane %v641, 1
      %v643 = vmax.f32 %v641, %v642
      %v644 = vsel %vm531, %v279, -inf
      %v645 = vrot.slane %v644, 4
      %v646 = vmax.f32 %v644, %v645
      %v647 = vrot.slane %v646, 2
      %v648 = vmax.f32 %v646, %v647
      %v649 = vrot.slane %v648, 1
      %v650 = vmax.f32 %v648, %v649
      %v651 = vsel %vm531, %v351, -inf
      %v652 = vrot.slane %v651, 4
      %v653 = vmax.f32 %v651, %v652
      %v654 = vrot.slane %v653, 2
      %v655 = vmax.f32 %v653, %v654
      %v656 = vrot.slane %v655, 1
      %v657 = vmax.f32 %v655, %v656
      %v658 = vsel %vm531, %v352, -inf
      %v659 = vrot.slane %v658, 4
      %v660 = vmax.f32 %v658, %v659
      %v661 = vrot.slane %v660, 2
      %v662 = vmax.f32 %v660, %v661
      %v663 = vrot.slane %v662, 1
      %v664 = vmax.f32 %v662, %v663
      %v665 = vsel %vm531, %v353, -inf
      %v666 = vrot.slane %v665, 4
      %v667 = vmax.f32 %v665, %v666
      %v668 = vrot.slane %v667, 2
      %v669 = vmax.f32 %v667, %v668
      %v670 = vrot.slane %v669, 1
      %v671 = vmax.f32 %v669, %v670
      %v672 = vsel %vm531, %v280, -inf
      %v673 = vrot.slane %v672, 4
      %v674 = vmax.f32 %v672, %v673
      %v675 = vrot.slane %v674, 2
      %v676 = vmax.f32 %v674, %v675
      %v677 = vrot.slane %v676, 1
      %v678 = vmax.f32 %v676, %v677
      %v679 = vsel %vm531, %v354, -inf
      %v680 = vrot.slane %v679, 4
      %v681 = vmax.f32 %v679, %v680
      %v682 = vrot.slane %v681, 2
      %v683 = vmax.f32 %v681, %v682
      %v684 = vrot.slane %v683, 1
      %v685 = vmax.f32 %v683, %v684
      %v686 = vsel %vm531, %v355, -inf
      %v687 = vrot.slane %v686, 4
      %v688 = vmax.f32 %v686, %v687
      %v689 = vrot.slane %v688, 2
      %v690 = vmax.f32 %v688, %v689
      %v691 = vrot.slane %v690, 1
      %v692 = vmax.f32 %v690, %v691
      %v693 = vsel %vm531, %v356, -inf
      %v694 = vrot.slane %v693, 4
      %v695 = vmax.f32 %v693, %v694
      %v696 = vrot.slane %v695, 2
      %v697 = vmax.f32 %v695, %v696
      %v698 = vrot.slane %v697, 1
      %v699 = vmax.f32 %v697, %v698
      %v700 = vsel %vm531, %v281, -inf
      %v701 = vrot.slane %v700, 4
      %v702 = vmax.f32 %v700, %v701
      %v703 = vrot.slane %v702, 2
      %v704 = vmax.f32 %v702, %v703
      %v705 = vrot.slane %v704, 1
      %v706 = vmax.f32 %v704, %v705
      %v707 = vsel %vm531, %v357, -inf
      %v708 = vrot.slane %v707, 4
      %v709 = vmax.f32 %v707, %v708
      %v710 = vrot.slane %v709, 2
      %v711 = vmax.f32 %v709, %v710
      %v712 = vrot.slane %v711, 1
      %v713 = vmax.f32 %v711, %v712
      %v714 = vsel %vm531, %v358, -inf
      %v715 = vrot.slane %v714, 4
      %v716 = vmax.f32 %v714, %v715
      %v717 = vrot.slane %v716, 2
      %v718 = vmax.f32 %v716, %v717
      %v719 = vrot.slane %v718, 1
      %v720 = vmax.f32 %v718, %v719
      %v721 = vsel %vm531, %v359, -inf
      %v722 = vrot.slane %v721, 4
      %v723 = vmax.f32 %v721, %v722
      %v724 = vrot.slane %v723, 2
      %v725 = vmax.f32 %v723, %v724
      %v726 = vrot.slane %v725, 1
      %v727 = vmax.f32 %v725, %v726
      %v728 = vsel %vm531, %v282, -inf
      %v729 = vrot.slane %v728, 4
      %v730 = vmax.f32 %v728, %v729
      %v731 = vrot.slane %v730, 2
      %v732 = vmax.f32 %v730, %v731
      %v733 = vrot.slane %v732, 1
      %v734 = vmax.f32 %v732, %v733
      %v735 = vsel %vm531, %v360, -inf
      %v736 = vrot.slane %v735, 4
      %v737 = vmax.f32 %v735, %v736
      %v738 = vrot.slane %v737, 2
      %v739 = vmax.f32 %v737, %v738
      %v740 = vrot.slane %v739, 1
      %v741 = vmax.f32 %v739, %v740
      %v742 = vsel %vm531, %v361, -inf
      %v743 = vrot.slane %v742, 4
      %v744 = vmax.f32 %v742, %v743
      %v745 = vrot.slane %v744, 2
      %v746 = vmax.f32 %v744, %v745
      %v747 = vrot.slane %v746, 1
      %v748 = vmax.f32 %v746, %v747
      %v749 = vsel %vm531, %v362, -inf
      %v750 = vrot.slane %v749, 4
      %v751 = vmax.f32 %v749, %v750
      %v752 = vrot.slane %v751, 2
      %v753 = vmax.f32 %v751, %v752
      %v754 = vrot.slane %v753, 1
      %v755 = vmax.f32 %v753, %v754
      %v756 = vsel %vm531, %v283, -inf
      %v757 = vrot.slane %v756, 4
      %v758 = vmax.f32 %v756, %v757
      %v759 = vrot.slane %v758, 2
      %v760 = vmax.f32 %v758, %v759
      %v761 = vrot.slane %v760, 1
      %v762 = vmax.f32 %v760, %v761
      %v763 = vsel %vm531, %v363, -inf
      %v764 = vrot.slane %v763, 4
      %v765 = vmax.f32 %v763, %v764
      %v766 = vrot.slane %v765, 2
      %v767 = vmax.f32 %v765, %v766
      %v768 = vrot.slane %v767, 1
      %v769 = vmax.f32 %v767, %v768
      %v770 = vsel %vm531, %v364, -inf
      %v771 = vrot.slane %v770, 4
      %v772 = vmax.f32 %v770, %v771
      %v773 = vrot.slane %v772, 2
      %v774 = vmax.f32 %v772, %v773
      %v775 = vrot.slane %v774, 1
      %v776 = vmax.f32 %v774, %v775
      %v777 = vsel %vm531, %v365, -inf
      %v778 = vrot.slane %v777, 4
      %v779 = vmax.f32 %v777, %v778
      %v780 = vrot.slane %v779, 2
      %v781 = vmax.f32 %v779, %v780
      %v782 = vrot.slane %v781, 1
      %v783 = vmax.f32 %v781, %v782
      %v784 = vsel %vm531, %v284, -inf
      %v785 = vrot.slane %v784, 4
      %v786 = vmax.f32 %v784, %v785
      %v787 = vrot.slane %v786, 2
      %v788 = vmax.f32 %v786, %v787
      %v789 = vrot.slane %v788, 1
      %v790 = vmax.f32 %v788, %v789
      %v791 = vsel %vm531, %v366, -inf
      %v792 = vrot.slane %v791, 4
      %v793 = vmax.f32 %v791, %v792
      %v794 = vrot.slane %v793, 2
      %v795 = vmax.f32 %v793, %v794
      %v796 = vrot.slane %v795, 1
      %v797 = vmax.f32 %v795, %v796
      %v798 = vsel %vm531, %v367, -inf
      %v799 = vrot.slane %v798, 4
      %v800 = vmax.f32 %v798, %v799
      %v801 = vrot.slane %v800, 2
      %v802 = vmax.f32 %v800, %v801
      %v803 = vrot.slane %v802, 1
      %v804 = vmax.f32 %v802, %v803
      %v805 = vsel %vm531, %v368, -inf
      %v806 = vrot.slane %v805, 4
      %v807 = vmax.f32 %v805, %v806
      %v808 = vrot.slane %v807, 2
      %v809 = vmax.f32 %v807, %v808
      %v810 = vrot.slane %v809, 1
      %v811 = vmax.f32 %v809, %v810
      %v812 = vsel %vm531, %v285, -inf
      %v813 = vrot.slane %v812, 4
      %v814 = vmax.f32 %v812, %v813
      %v815 = vrot.slane %v814, 2
      %v816 = vmax.f32 %v814, %v815
      %v817 = vrot.slane %v816, 1
      %v818 = vmax.f32 %v816, %v817
      %v819 = vsel %vm531, %v369, -inf
      %v820 = vrot.slane %v819, 4
      %v821 = vmax.f32 %v819, %v820
      %v822 = vrot.slane %v821, 2
      %v823 = vmax.f32 %v821, %v822
      %v824 = vrot.slane %v823, 1
      %v825 = vmax.f32 %v823, %v824
      %v826 = vsel %vm531, %v370, -inf
      %v827 = vrot.slane %v826, 4
      %v828 = vmax.f32 %v826, %v827
      %v829 = vrot.slane %v828, 2
      %v830 = vmax.f32 %v828, %v829
      %v831 = vrot.slane %v830, 1
      %v832 = vmax.f32 %v830, %v831
      %v833 = vsel %vm531, %v371, -inf
      %v834 = vrot.slane %v833, 4
      %v835 = vmax.f32 %v833, %v834
      %v836 = vrot.slane %v835, 2
      %v837 = vmax.f32 %v835, %v836
      %v838 = vrot.slane %v837, 1
      %v839 = vmax.f32 %v837, %v838
      %v840 = vsel %vm531, %v286, -inf
      %v841 = vrot.slane %v840, 4
      %v842 = vmax.f32 %v840, %v841
      %v843 = vrot.slane %v842, 2
      %v844 = vmax.f32 %v842, %v843
      %v845 = vrot.slane %v844, 1
      %v846 = vmax.f32 %v844, %v845
      %v847 = vsel %vm531, %v372, -inf
      %v848 = vrot.slane %v847, 4
      %v849 = vmax.f32 %v847, %v848
      %v850 = vrot.slane %v849, 2
      %v851 = vmax.f32 %v849, %v850
      %v852 = vrot.slane %v851, 1
      %v853 = vmax.f32 %v851, %v852
      %v854 = vsel %vm531, %v373, -inf
      %v855 = vrot.slane %v854, 4
      %v856 = vmax.f32 %v854, %v855
      %v857 = vrot.slane %v856, 2
      %v858 = vmax.f32 %v856, %v857
      %v859 = vrot.slane %v858, 1
      %v860 = vmax.f32 %v858, %v859
      %v861 = vsel %vm531, %v374, -inf
      %v862 = vrot.slane %v861, 4
      %v863 = vmax.f32 %v861, %v862
      %v864 = vrot.slane %v863, 2
      %v865 = vmax.f32 %v863, %v864
      %v866 = vrot.slane %v865, 1
      %v867 = vmax.f32 %v865, %v866
      %v868 = vsel %vm531, %v287, -inf
      %v869 = vrot.slane %v868, 4
      %v870 = vmax.f32 %v868, %v869
      %v871 = vrot.slane %v870, 2
      %v872 = vmax.f32 %v870, %v871
      %v873 = vrot.slane %v872, 1
      %v874 = vmax.f32 %v872, %v873
      %v875 = vsel %vm531, %v375, -inf
      %v876 = vrot.slane %v875, 4
      %v877 = vmax.f32 %v875, %v876
      %v878 = vrot.slane %v877, 2
      %v879 = vmax.f32 %v877, %v878
      %v880 = vrot.slane %v879, 1
      %v881 = vmax.f32 %v879, %v880
      %v882 = vsel %vm531, %v376, -inf
      %v883 = vrot.slane %v882, 4
      %v884 = vmax.f32 %v882, %v883
      %v885 = vrot.slane %v884, 2
      %v886 = vmax.f32 %v884, %v885
      %v887 = vrot.slane %v886, 1
      %v888 = vmax.f32 %v886, %v887
      %v889 = vsel %vm531, %v377, -inf
      %v890 = vrot.slane %v889, 4
      %v891 = vmax.f32 %v889, %v890
      %v892 = vrot.slane %v891, 2
      %v893 = vmax.f32 %v891, %v892
      %v894 = vrot.slane %v893, 1
      %v895 = vmax.f32 %v893, %v894
      %v896 = vsel %vm531, %v288, -inf
      %v897 = vrot.slane %v896, 4
      %v898 = vmax.f32 %v896, %v897
      %v899 = vrot.slane %v898, 2
      %v900 = vmax.f32 %v898, %v899
      %v901 = vrot.slane %v900, 1
      %v902 = vmax.f32 %v900, %v901
      %v903 = vsel %vm531, %v378, -inf
      %v904 = vrot.slane %v903, 4
      %v905 = vmax.f32 %v903, %v904
      %v906 = vrot.slane %v905, 2
      %v907 = vmax.f32 %v905, %v906
      %v908 = vrot.slane %v907, 1
      %v909 = vmax.f32 %v907, %v908
      %v910 = vsel %vm531, %v379, -inf
      %v911 = vrot.slane %v910, 4
      %v912 = vmax.f32 %v910, %v911
      %v913 = vrot.slane %v912, 2
      %v914 = vmax.f32 %v912, %v913
      %v915 = vrot.slane %v914, 1
      %v916 = vmax.f32 %v914, %v915
      %v917 = vsel %vm531, %v380, -inf
      %v918 = vrot.slane %v917, 4
      %v919 = vmax.f32 %v917, %v918
      %v920 = vrot.slane %v919, 2
      %v921 = vmax.f32 %v919, %v920
      %v922 = vrot.slane %v921, 1
      %v923 = vmax.f32 %v921, %v922
      %v924 = vsel %vm531, %v289, -inf
      %v925 = vrot.slane %v924, 4
      %v926 = vmax.f32 %v924, %v925
      %v927 = vrot.slane %v926, 2
      %v928 = vmax.f32 %v926, %v927
      %v929 = vrot.slane %v928, 1
      %v930 = vmax.f32 %v928, %v929
      %v931 = vsel %vm531, %v381, -inf
      %v932 = vrot.slane %v931, 4
      %v933 = vmax.f32 %v931, %v932
      %v934 = vrot.slane %v933, 2
      %v935 = vmax.f32 %v933, %v934
      %v936 = vrot.slane %v935, 1
      %v937 = vmax.f32 %v935, %v936
      %v938 = vsel %vm531, %v382, -inf
      %v939 = vrot.slane %v938, 4
      %v940 = vmax.f32 %v938, %v939
      %v941 = vrot.slane %v940, 2
      %v942 = vmax.f32 %v940, %v941
      %v943 = vrot.slane %v942, 1
      %v944 = vmax.f32 %v942, %v943
      %v945 = vsel %vm531, %v383, -inf
      %v946 = vrot.slane %v945, 4
      %v947 = vmax.f32 %v945, %v946
      %v948 = vrot.slane %v947, 2
      %v949 = vmax.f32 %v947, %v948
      %v950 = vrot.slane %v949, 1
      %v951 = vmax.f32 %v949, %v950
      %v952 = vsel %vm531, %v290, -inf
      %v953 = vrot.slane %v952, 4
      %v954 = vmax.f32 %v952, %v953
      %v955 = vrot.slane %v954, 2
      %v956 = vmax.f32 %v954, %v955
      %v957 = vrot.slane %v956, 1
      %v958 = vmax.f32 %v956, %v957
      %v959 = vsel %vm531, %v384, -inf
      %v960 = vrot.slane %v959, 4
      %v961 = vmax.f32 %v959, %v960
      %v962 = vrot.slane %v961, 2
      %v963 = vmax.f32 %v961, %v962
      %v964 = vrot.slane %v963, 1
      %v965 = vmax.f32 %v963, %v964
      %v966 = vsel %vm531, %v385, -inf
      %v967 = vrot.slane %v966, 4
      %v968 = vmax.f32 %v966, %v967
      %v969 = vrot.slane %v968, 2
      %v970 = vmax.f32 %v968, %v969
      %v971 = vrot.slane %v970, 1
      %v972 = vmax.f32 %v970, %v971
      %v973 = vsel %vm531, %v386, -inf
      %v974 = vrot.slane %v973, 4
      %v975 = vmax.f32 %v973, %v974
      %v976 = vrot.slane %v975, 2
      %v977 = vmax.f32 %v975, %v976
      %v978 = vrot.slane %v977, 1
      %v979 = vmax.f32 %v977, %v978
      %v980 = vsel %vm531, %v291, -inf
      %v981 = vrot.slane %v980, 4
      %v982 = vmax.f32 %v980, %v981
      %v983 = vrot.slane %v982, 2
      %v984 = vmax.f32 %v982, %v983
      %v985 = vrot.slane %v984, 1
      %v986 = vmax.f32 %v984, %v985
      %v987 = vsel %vm531, %v387, -inf
      %v988 = vrot.slane %v987, 4
      %v989 = vmax.f32 %v987, %v988
      %v990 = vrot.slane %v989, 2
      %v991 = vmax.f32 %v989, %v990
      %v992 = vrot.slane %v991, 1
      %v993 = vmax.f32 %v991, %v992
      %v994 = vsel %vm531, %v388, -inf
      %v995 = vrot.slane %v994, 4
      %v996 = vmax.f32 %v994, %v995
      %v997 = vrot.slane %v996, 2
      %v998 = vmax.f32 %v996, %v997
      %v999 = vrot.slane %v998, 1
      %v1000 = vmax.f32 %v998, %v999
      %v1001 = vsel %vm531, %v389, -inf
      %v1002 = vrot.slane %v1001, 4
      %v1003 = vmax.f32 %v1001, %v1002
      %v1004 = vrot.slane %v1003, 2
      %v1005 = vmax.f32 %v1003, %v1004
      %v1006 = vrot.slane %v1005, 1
      %v1007 = vmax.f32 %v1005, %v1006
      %v1008 = vsel %vm531, %v292, -inf
      %v1009 = vrot.slane %v1008, 4
      %v1010 = vmax.f32 %v1008, %v1009
      %v1011 = vrot.slane %v1010, 2
      %v1012 = vmax.f32 %v1010, %v1011
      %v1013 = vrot.slane %v1012, 1
      %v1014 = vmax.f32 %v1012, %v1013
      %v1015 = vsel %vm531, %v390, -inf
      %v1016 = vrot.slane %v1015, 4
      %v1017 = vmax.f32 %v1015, %v1016
      %v1018 = vrot.slane %v1017, 2
      %v1019 = vmax.f32 %v1017, %v1018
      %v1020 = vrot.slane %v1019, 1
      %v1021 = vmax.f32 %v1019, %v1020
      %v1022 = vsel %vm531, %v391, -inf
      %v1023 = vrot.slane %v1022, 4
      %v1024 = vmax.f32 %v1022, %v1023
      %v1025 = vrot.slane %v1024, 2
      %v1026 = vmax.f32 %v1024, %v1025
      %v1027 = vrot.slane %v1026, 1
      %v1028 = vmax.f32 %v1026, %v1027
      %v1029 = vsel %vm531, %v392, -inf
      %v1030 = vrot.slane %v1029, 4
      %v1031 = vmax.f32 %v1029, %v1030
      %v1032 = vrot.slane %v1031, 2
      %v1033 = vmax.f32 %v1031, %v1032
      %v1034 = vrot.slane %v1033, 1
      %v1035 = vmax.f32 %v1033, %v1034
      %v1036 = vsel %vm531, %v293, -inf
      %v1037 = vrot.slane %v1036, 4
      %v1038 = vmax.f32 %v1036, %v1037
      %v1039 = vrot.slane %v1038, 2
      %v1040 = vmax.f32 %v1038, %v1039
      %v1041 = vrot.slane %v1040, 1
      %v1042 = vmax.f32 %v1040, %v1041
      %v1043 = vsel %vm531, %v393, -inf
      %v1044 = vrot.slane %v1043, 4
      %v1045 = vmax.f32 %v1043, %v1044
      %v1046 = vrot.slane %v1045, 2
      %v1047 = vmax.f32 %v1045, %v1046
      %v1048 = vrot.slane %v1047, 1
      %v1049 = vmax.f32 %v1047, %v1048
      %v1050 = vsel %vm531, %v394, -inf
      %v1051 = vrot.slane %v1050, 4
      %v1052 = vmax.f32 %v1050, %v1051
      %v1053 = vrot.slane %v1052, 2
      %v1054 = vmax.f32 %v1052, %v1053
      %v1055 = vrot.slane %v1054, 1
      %v1056 = vmax.f32 %v1054, %v1055
      %v1057 = vsel %vm531, %v395, -inf
      %v1058 = vrot.slane %v1057, 4
      %v1059 = vmax.f32 %v1057, %v1058
      %v1060 = vrot.slane %v1059, 2
      %v1061 = vmax.f32 %v1059, %v1060
      %v1062 = vrot.slane %v1061, 1
      %v1063 = vmax.f32 %v1061, %v1062
      %v1064 = vsel %vm531, %v294, -inf
      %v1065 = vrot.slane %v1064, 4
      %v1066 = vmax.f32 %v1064, %v1065
      %v1067 = vrot.slane %v1066, 2
      %v1068 = vmax.f32 %v1066, %v1067
      %v1069 = vrot.slane %v1068, 1
      %v1070 = vmax.f32 %v1068, %v1069
      %v1071 = vsel %vm531, %v396, -inf
      %v1072 = vrot.slane %v1071, 4
      %v1073 = vmax.f32 %v1071, %v1072
      %v1074 = vrot.slane %v1073, 2
      %v1075 = vmax.f32 %v1073, %v1074
      %v1076 = vrot.slane %v1075, 1
      %v1077 = vmax.f32 %v1075, %v1076
      %v1078 = vsel %vm531, %v397, -inf
      %v1079 = vrot.slane %v1078, 4
      %v1080 = vmax.f32 %v1078, %v1079
      %v1081 = vrot.slane %v1080, 2
      %v1082 = vmax.f32 %v1080, %v1081
      %v1083 = vrot.slane %v1082, 1
      %v1084 = vmax.f32 %v1082, %v1083
      %v1085 = vsel %vm531, %v398, -inf
      %v1086 = vrot.slane %v1085, 4
      %v1087 = vmax.f32 %v1085, %v1086
      %v1088 = vrot.slane %v1087, 2
      %v1089 = vmax.f32 %v1087, %v1088
      %v1090 = vrot.slane %v1089, 1
      %v1091 = vmax.f32 %v1089, %v1090
      %v1092 = vsel %vm531, %v295, -inf
      %v1093 = vrot.slane %v1092, 4
      %v1094 = vmax.f32 %v1092, %v1093
      %v1095 = vrot.slane %v1094, 2
      %v1096 = vmax.f32 %v1094, %v1095
      %v1097 = vrot.slane %v1096, 1
      %v1098 = vmax.f32 %v1096, %v1097
      %v1099 = vsel %vm531, %v399, -inf
      %v1100 = vrot.slane %v1099, 4
      %v1101 = vmax.f32 %v1099, %v1100
      %v1102 = vrot.slane %v1101, 2
      %v1103 = vmax.f32 %v1101, %v1102
      %v1104 = vrot.slane %v1103, 1
      %v1105 = vmax.f32 %v1103, %v1104
      %v1106 = vsel %vm531, %v400, -inf
      %v1107 = vrot.slane %v1106, 4
      %v1108 = vmax.f32 %v1106, %v1107
      %v1109 = vrot.slane %v1108, 2
      %v1110 = vmax.f32 %v1108, %v1109
      %v1111 = vrot.slane %v1110, 1
      %v1112 = vmax.f32 %v1110, %v1111
      %v1113 = vsel %vm531, %v401, -inf
      %v1114 = vrot.slane %v1113, 4
      %v1115 = vmax.f32 %v1113, %v1114
      %v1116 = vrot.slane %v1115, 2
      %v1117 = vmax.f32 %v1115, %v1116
      %v1118 = vrot.slane %v1117, 1
      %v1119 = vmax.f32 %v1117, %v1118
      %v1120 = vsel %vm531, %v296, -inf
      %v1121 = vrot.slane %v1120, 4
      %v1122 = vmax.f32 %v1120, %v1121
      %v1123 = vrot.slane %v1122, 2
      %v1124 = vmax.f32 %v1122, %v1123
      %v1125 = vrot.slane %v1124, 1
      %v1126 = vmax.f32 %v1124, %v1125
      %v1127 = vsel %vm531, %v402, -inf
      %v1128 = vrot.slane %v1127, 4
      %v1129 = vmax.f32 %v1127, %v1128
      %v1130 = vrot.slane %v1129, 2
      %v1131 = vmax.f32 %v1129, %v1130
      %v1132 = vrot.slane %v1131, 1
      %v1133 = vmax.f32 %v1131, %v1132
      %v1134 = vsel %vm531, %v403, -inf
      %v1135 = vrot.slane %v1134, 4
      %v1136 = vmax.f32 %v1134, %v1135
      %v1137 = vrot.slane %v1136, 2
      %v1138 = vmax.f32 %v1136, %v1137
      %v1139 = vrot.slane %v1138, 1
      %v1140 = vmax.f32 %v1138, %v1139
      %v1141 = vsel %vm531, %v404, -inf
      %v1142 = vrot.slane %v1141, 4
      %v1143 = vmax.f32 %v1141, %v1142
      %v1144 = vrot.slane %v1143, 2
      %v1145 = vmax.f32 %v1143, %v1144
      %v1146 = vrot.slane %v1145, 1
      %v1147 = vmax.f32 %v1145, %v1146
      %v1148 = vsel %vm531, %v297, -inf
      %v1149 = vrot.slane %v1148, 4
      %v1150 = vmax.f32 %v1148, %v1149
      %v1151 = vrot.slane %v1150, 2
      %v1152 = vmax.f32 %v1150, %v1151
      %v1153 = vrot.slane %v1152, 1
      %v1154 = vmax.f32 %v1152, %v1153
      %v1155 = vsel %vm531, %v405, -inf
      %v1156 = vrot.slane %v1155, 4
      %v1157 = vmax.f32 %v1155, %v1156
      %v1158 = vrot.slane %v1157, 2
      %v1159 = vmax.f32 %v1157, %v1158
      %v1160 = vrot.slane %v1159, 1
      %v1161 = vmax.f32 %v1159, %v1160
      %v1162 = vsel %vm531, %v406, -inf
      %v1163 = vrot.slane %v1162, 4
      %v1164 = vmax.f32 %v1162, %v1163
      %v1165 = vrot.slane %v1164, 2
      %v1166 = vmax.f32 %v1164, %v1165
      %v1167 = vrot.slane %v1166, 1
      %v1168 = vmax.f32 %v1166, %v1167
      %v1169 = vsel %vm531, %v407, -inf
      %v1170 = vrot.slane %v1169, 4
      %v1171 = vmax.f32 %v1169, %v1170
      %v1172 = vrot.slane %v1171, 2
      %v1173 = vmax.f32 %v1171, %v1172
      %v1174 = vrot.slane %v1173, 1
      %v1175 = vmax.f32 %v1173, %v1174
      %v1176 = vsel %vm531, %v298, -inf
      %v1177 = vrot.slane %v1176, 4
      %v1178 = vmax.f32 %v1176, %v1177
      %v1179 = vrot.slane %v1178, 2
      %v1180 = vmax.f32 %v1178, %v1179
      %v1181 = vrot.slane %v1180, 1
      %v1182 = vmax.f32 %v1180, %v1181
      %v1183 = vsel %vm531, %v408, -inf
      %v1184 = vrot.slane %v1183, 4
      %v1185 = vmax.f32 %v1183, %v1184
      %v1186 = vrot.slane %v1185, 2
      %v1187 = vmax.f32 %v1185, %v1186
      %v1188 = vrot.slane %v1187, 1
      %v1189 = vmax.f32 %v1187, %v1188
      %v1190 = vsel %vm531, %v409, -inf
      %v1191 = vrot.slane %v1190, 4
      %v1192 = vmax.f32 %v1190, %v1191
      %v1193 = vrot.slane %v1192, 2
      %v1194 = vmax.f32 %v1192, %v1193
      %v1195 = vrot.slane %v1194, 1
      %v1196 = vmax.f32 %v1194, %v1195
      %v1197 = vsel %vm531, %v410, -inf
      %v1198 = vrot.slane %v1197, 4
      %v1199 = vmax.f32 %v1197, %v1198
      %v1200 = vrot.slane %v1199, 2
      %v1201 = vmax.f32 %v1199, %v1200
      %v1202 = vrot.slane %v1201, 1
      %v1203 = vmax.f32 %v1201, %v1202
      %v1204 = vsel %vm531, %v299, -inf
      %v1205 = vrot.slane %v1204, 4
      %v1206 = vmax.f32 %v1204, %v1205
      %v1207 = vrot.slane %v1206, 2
      %v1208 = vmax.f32 %v1206, %v1207
      %v1209 = vrot.slane %v1208, 1
      %v1210 = vmax.f32 %v1208, %v1209
      %v1211 = vsel %vm531, %v411, -inf
      %v1212 = vrot.slane %v1211, 4
      %v1213 = vmax.f32 %v1211, %v1212
      %v1214 = vrot.slane %v1213, 2
      %v1215 = vmax.f32 %v1213, %v1214
      %v1216 = vrot.slane %v1215, 1
      %v1217 = vmax.f32 %v1215, %v1216
      %v1218 = vsel %vm531, %v412, -inf
      %v1219 = vrot.slane %v1218, 4
      %v1220 = vmax.f32 %v1218, %v1219
      %v1221 = vrot.slane %v1220, 2
      %v1222 = vmax.f32 %v1220, %v1221
      %v1223 = vrot.slane %v1222, 1
      %v1224 = vmax.f32 %v1222, %v1223
      %v1225 = vsel %vm531, %v413, -inf
      %v1226 = vrot.slane %v1225, 4
      %v1227 = vmax.f32 %v1225, %v1226
      %v1228 = vrot.slane %v1227, 2
      %v1229 = vmax.f32 %v1227, %v1228
      %v1230 = vrot.slane %v1229, 1
      %v1231 = vmax.f32 %v1229, %v1230
      %v1232 = vsel %vm531, %v300, -inf
      %v1233 = vrot.slane %v1232, 4
      %v1234 = vmax.f32 %v1232, %v1233
      %v1235 = vrot.slane %v1234, 2
      %v1236 = vmax.f32 %v1234, %v1235
      %v1237 = vrot.slane %v1236, 1
      %v1238 = vmax.f32 %v1236, %v1237
      %v1239 = vsel %vm531, %v414, -inf
      %v1240 = vrot.slane %v1239, 4
      %v1241 = vmax.f32 %v1239, %v1240
      %v1242 = vrot.slane %v1241, 2
      %v1243 = vmax.f32 %v1241, %v1242
      %v1244 = vrot.slane %v1243, 1
      %v1245 = vmax.f32 %v1243, %v1244
      %v1246 = vsel %vm531, %v415, -inf
      %v1247 = vrot.slane %v1246, 4
      %v1248 = vmax.f32 %v1246, %v1247
      %v1249 = vrot.slane %v1248, 2
      %v1250 = vmax.f32 %v1248, %v1249
      %v1251 = vrot.slane %v1250, 1
      %v1252 = vmax.f32 %v1250, %v1251
      %v1253 = vsel %vm531, %v416, -inf
      %v1254 = vrot.slane %v1253, 4
      %v1255 = vmax.f32 %v1253, %v1254
      %v1256 = vrot.slane %v1255, 2
      %v1257 = vmax.f32 %v1255, %v1256
      %v1258 = vrot.slane %v1257, 1
      %v1259 = vmax.f32 %v1257, %v1258
      %v1260 = vsel %vm531, %v301, -inf
      %v1261 = vrot.slane %v1260, 4
      %v1262 = vmax.f32 %v1260, %v1261
      %v1263 = vrot.slane %v1262, 2
      %v1264 = vmax.f32 %v1262, %v1263
      %v1265 = vrot.slane %v1264, 1
      %v1266 = vmax.f32 %v1264, %v1265
      %v1267 = vsel %vm531, %v417, -inf
      %v1268 = vrot.slane %v1267, 4
      %v1269 = vmax.f32 %v1267, %v1268
      %v1270 = vrot.slane %v1269, 2
      %v1271 = vmax.f32 %v1269, %v1270
      %v1272 = vrot.slane %v1271, 1
      %v1273 = vmax.f32 %v1271, %v1272
      %v1274 = vsel %vm531, %v418, -inf
      %v1275 = vrot.slane %v1274, 4
      %v1276 = vmax.f32 %v1274, %v1275
      %v1277 = vrot.slane %v1276, 2
      %v1278 = vmax.f32 %v1276, %v1277
      %v1279 = vrot.slane %v1278, 1
      %v1280 = vmax.f32 %v1278, %v1279
      %v1281 = vsel %vm531, %v419, -inf
      %v1282 = vrot.slane %v1281, 4
      %v1283 = vmax.f32 %v1281, %v1282
      %v1284 = vrot.slane %v1283, 2
      %v1285 = vmax.f32 %v1283, %v1284
      %v1286 = vrot.slane %v1285, 1
      %v1287 = vmax.f32 %v1285, %v1286
      %v1288 = vsel %vm531, %v302, -inf
      %v1289 = vrot.slane %v1288, 4
      %v1290 = vmax.f32 %v1288, %v1289
      %v1291 = vrot.slane %v1290, 2
      %v1292 = vmax.f32 %v1290, %v1291
      %v1293 = vrot.slane %v1292, 1
      %v1294 = vmax.f32 %v1292, %v1293
      %v1295 = vsel %vm531, %v420, -inf
      %v1296 = vrot.slane %v1295, 4
      %v1297 = vmax.f32 %v1295, %v1296
      %v1298 = vrot.slane %v1297, 2
      %v1299 = vmax.f32 %v1297, %v1298
      %v1300 = vrot.slane %v1299, 1
      %v1301 = vmax.f32 %v1299, %v1300
      %v1302 = vsel %vm531, %v421, -inf
      %v1303 = vrot.slane %v1302, 4
      %v1304 = vmax.f32 %v1302, %v1303
      %v1305 = vrot.slane %v1304, 2
      %v1306 = vmax.f32 %v1304, %v1305
      %v1307 = vrot.slane %v1306, 1
      %v1308 = vmax.f32 %v1306, %v1307
      %v1309 = vsel %vm531, %v422, -inf
      %v1310 = vrot.slane %v1309, 4
      %v1311 = vmax.f32 %v1309, %v1310
      %v1312 = vrot.slane %v1311, 2
      %v1313 = vmax.f32 %v1311, %v1312
      %v1314 = vrot.slane %v1313, 1
      %v1315 = vmax.f32 %v1313, %v1314
      %v1316 = vsel %vm531, %v303, -inf
      %v1317 = vrot.slane %v1316, 4
      %v1318 = vmax.f32 %v1316, %v1317
      %v1319 = vrot.slane %v1318, 2
      %v1320 = vmax.f32 %v1318, %v1319
      %v1321 = vrot.slane %v1320, 1
      %v1322 = vmax.f32 %v1320, %v1321
      %v1323 = vsel %vm531, %v423, -inf
      %v1324 = vrot.slane %v1323, 4
      %v1325 = vmax.f32 %v1323, %v1324
      %v1326 = vrot.slane %v1325, 2
      %v1327 = vmax.f32 %v1325, %v1326
      %v1328 = vrot.slane %v1327, 1
      %v1329 = vmax.f32 %v1327, %v1328
      %v1330 = vsel %vm531, %v424, -inf
      %v1331 = vrot.slane %v1330, 4
      %v1332 = vmax.f32 %v1330, %v1331
      %v1333 = vrot.slane %v1332, 2
      %v1334 = vmax.f32 %v1332, %v1333
      %v1335 = vrot.slane %v1334, 1
      %v1336 = vmax.f32 %v1334, %v1335
      %v1337 = vsel %vm531, %v425, -inf
      %v1338 = vrot.slane %v1337, 4
      %v1339 = vmax.f32 %v1337, %v1338
      %v1340 = vrot.slane %v1339, 2
      %v1341 = vmax.f32 %v1339, %v1340
      %v1342 = vrot.slane %v1341, 1
      %v1343 = vmax.f32 %v1341, %v1342
      %v1344 = vsel %vm531, %v304, -inf
      %v1345 = vrot.slane %v1344, 4
      %v1346 = vmax.f32 %v1344, %v1345
      %v1347 = vrot.slane %v1346, 2
      %v1348 = vmax.f32 %v1346, %v1347
      %v1349 = vrot.slane %v1348, 1
      %v1350 = vmax.f32 %v1348, %v1349
      %v1351 = vsel %vm531, %v426, -inf
      %v1352 = vrot.slane %v1351, 4
      %v1353 = vmax.f32 %v1351, %v1352
      %v1354 = vrot.slane %v1353, 2
      %v1355 = vmax.f32 %v1353, %v1354
      %v1356 = vrot.slane %v1355, 1
      %v1357 = vmax.f32 %v1355, %v1356
      %v1358 = vsel %vm531, %v427, -inf
      %v1359 = vrot.slane %v1358, 4
      %v1360 = vmax.f32 %v1358, %v1359
      %v1361 = vrot.slane %v1360, 2
      %v1362 = vmax.f32 %v1360, %v1361
      %v1363 = vrot.slane %v1362, 1
      %v1364 = vmax.f32 %v1362, %v1363
      %v1365 = vsel %vm531, %v428, -inf
      %v1366 = vrot.slane %v1365, 4
      %v1367 = vmax.f32 %v1365, %v1366
      %v1368 = vrot.slane %v1367, 2
      %v1369 = vmax.f32 %v1367, %v1368
      %v1370 = vrot.slane %v1369, 1
      %v1371 = vmax.f32 %v1369, %v1370
      %v1372 = vsel %vm531, %v305, -inf
      %v1373 = vrot.slane %v1372, 4
      %v1374 = vmax.f32 %v1372, %v1373
      %v1375 = vrot.slane %v1374, 2
      %v1376 = vmax.f32 %v1374, %v1375
      %v1377 = vrot.slane %v1376, 1
      %v1378 = vmax.f32 %v1376, %v1377
      %v1379 = vsel %vm531, %v429, -inf
      %v1380 = vrot.slane %v1379, 4
      %v1381 = vmax.f32 %v1379, %v1380
      %v1382 = vrot.slane %v1381, 2
      %v1383 = vmax.f32 %v1381, %v1382
      %v1384 = vrot.slane %v1383, 1
      %v1385 = vmax.f32 %v1383, %v1384
      %v1386 = vsel %vm531, %v430, -inf
      %v1387 = vrot.slane %v1386, 4
      %v1388 = vmax.f32 %v1386, %v1387
      %v1389 = vrot.slane %v1388, 2
      %v1390 = vmax.f32 %v1388, %v1389
      %v1391 = vrot.slane %v1390, 1
      %v1392 = vmax.f32 %v1390, %v1391
      %v1393 = vsel %vm531, %v431, -inf
      %v1394 = vrot.slane %v1393, 4
      %v1395 = vmax.f32 %v1393, %v1394
      %v1396 = vrot.slane %v1395, 2
      %v1397 = vmax.f32 %v1395, %v1396
      %v1398 = vrot.slane %v1397, 1
      %v1399 = vmax.f32 %v1397, %v1398
      %v1400 = vsel %vm531, %v306, -inf
      %v1401 = vrot.slane %v1400, 4
      %v1402 = vmax.f32 %v1400, %v1401
      %v1403 = vrot.slane %v1402, 2
      %v1404 = vmax.f32 %v1402, %v1403
      %v1405 = vrot.slane %v1404, 1
      %v1406 = vmax.f32 %v1404, %v1405
      %v1407 = vsel %vm531, %v432, -inf
      %v1408 = vrot.slane %v1407, 4
      %v1409 = vmax.f32 %v1407, %v1408
      %v1410 = vrot.slane %v1409, 2
      %v1411 = vmax.f32 %v1409, %v1410
      %v1412 = vrot.slane %v1411, 1
      %v1413 = vmax.f32 %v1411, %v1412
      %v1414 = vsel %vm531, %v433, -inf
      %v1415 = vrot.slane %v1414, 4
      %v1416 = vmax.f32 %v1414, %v1415
      %v1417 = vrot.slane %v1416, 2
      %v1418 = vmax.f32 %v1416, %v1417
      %v1419 = vrot.slane %v1418, 1
      %v1420 = vmax.f32 %v1418, %v1419
      %v1421 = vsel %vm531, %v434, -inf
      %v1422 = vrot.slane %v1421, 4
      %v1423 = vmax.f32 %v1421, %v1422
      %v1424 = vrot.slane %v1423, 2
      %v1425 = vmax.f32 %v1423, %v1424
      %v1426 = vrot.slane %v1425, 1
      %v1427 = vmax.f32 %v1425, %v1426
      %vm1428 = vcmask 64512
      %v1429 = vsel %vm1428, %v538, -inf
      %v1430 = vsel %vm1428, %v594, -inf
      %v1431 = vmax.f32 %v1429, %v1430
      %v1432 = vsel %vm1428, %v545, -inf
      %v1433 = vsel %vm1428, %v601, -inf
      %v1434 = vmax.f32 %v1432, %v1433
      %v1435 = vsel %vm1428, %v552, -inf
      %v1436 = vsel %vm1428, %v608, -inf
      %v1437 = vmax.f32 %v1435, %v1436
      %v1438 = vsel %vm1428, %v559, -inf
      %v1439 = vsel %vm1428, %v615, -inf
      %v1440 = vmax.f32 %v1438, %v1439
      %v1441 = vsel %vm1428, %v566, -inf
      %v1442 = vsel %vm1428, %v622, -inf
      %v1443 = vmax.f32 %v1441, %v1442
      %v1444 = vsel %vm1428, %v573, -inf
      %v1445 = vsel %vm1428, %v629, -inf
      %v1446 = vmax.f32 %v1444, %v1445
      %v1447 = vsel %vm1428, %v580, -inf
      %v1448 = vsel %vm1428, %v636, -inf
      %v1449 = vmax.f32 %v1447, %v1448
      %v1450 = vsel %vm1428, %v587, -inf
      %v1451 = vsel %vm1428, %v643, -inf
      %v1452 = vmax.f32 %v1450, %v1451
      %v1453 = vsel %vm1428, %v650, -inf
      %v1454 = vsel %vm1428, %v706, -inf
      %v1455 = vmax.f32 %v1453, %v1454
      %v1456 = vsel %vm1428, %v657, -inf
      %v1457 = vsel %vm1428, %v713, -inf
      %v1458 = vmax.f32 %v1456, %v1457
      %v1459 = vsel %vm1428, %v664, -inf
      %v1460 = vsel %vm1428, %v720, -inf
      %v1461 = vmax.f32 %v1459, %v1460
      %v1462 = vsel %vm1428, %v671, -inf
      %v1463 = vsel %vm1428, %v727, -inf
      %v1464 = vmax.f32 %v1462, %v1463
      %v1465 = vsel %vm1428, %v678, -inf
      %v1466 = vsel %vm1428, %v734, -inf
      %v1467 = vmax.f32 %v1465, %v1466
      %v1468 = vsel %vm1428, %v685, -inf
      %v1469 = vsel %vm1428, %v741, -inf
      %v1470 = vmax.f32 %v1468, %v1469
      %v1471 = vsel %vm1428, %v692, -inf
      %v1472 = vsel %vm1428, %v748, -inf
      %v1473 = vmax.f32 %v1471, %v1472
      %v1474 = vsel %vm1428, %v699, -inf
      %v1475 = vsel %vm1428, %v755, -inf
      %v1476 = vmax.f32 %v1474, %v1475
      %v1477 = vsel %vm1428, %v762, -inf
      %v1478 = vsel %vm1428, %v818, -inf
      %v1479 = vmax.f32 %v1477, %v1478
      %v1480 = vsel %vm1428, %v769, -inf
      %v1481 = vsel %vm1428, %v825, -inf
      %v1482 = vmax.f32 %v1480, %v1481
      %v1483 = vsel %vm1428, %v776, -inf
      %v1484 = vsel %vm1428, %v832, -inf
      %v1485 = vmax.f32 %v1483, %v1484
      %v1486 = vsel %vm1428, %v783, -inf
      %v1487 = vsel %vm1428, %v839, -inf
      %v1488 = vmax.f32 %v1486, %v1487
      %v1489 = vsel %vm1428, %v790, -inf
      %v1490 = vsel %vm1428, %v846, -inf
      %v1491 = vmax.f32 %v1489, %v1490
      %v1492 = vsel %vm1428, %v797, -inf
      %v1493 = vsel %vm1428, %v853, -inf
      %v1494 = vmax.f32 %v1492, %v1493
      %v1495 = vsel %vm1428, %v804, -inf
      %v1496 = vsel %vm1428, %v860, -inf
      %v1497 = vmax.f32 %v1495, %v1496
      %v1498 = vsel %vm1428, %v811, -inf
      %v1499 = vsel %vm1428, %v867, -inf
      %v1500 = vmax.f32 %v1498, %v1499
      %v1501 = vsel %vm1428, %v874, -inf
      %v1502 = vsel %vm1428, %v930, -inf
      %v1503 = vmax.f32 %v1501, %v1502
      %v1504 = vsel %vm1428, %v881, -inf
      %v1505 = vsel %vm1428, %v937, -inf
      %v1506 = vmax.f32 %v1504, %v1505
      %v1507 = vsel %vm1428, %v888, -inf
      %v1508 = vsel %vm1428, %v944, -inf
      %v1509 = vmax.f32 %v1507, %v1508
      %v1510 = vsel %vm1428, %v895, -inf
      %v1511 = vsel %vm1428, %v951, -inf
      %v1512 = vmax.f32 %v1510, %v1511
      %v1513 = vsel %vm1428, %v902, -inf
      %v1514 = vsel %vm1428, %v958, -inf
      %v1515 = vmax.f32 %v1513, %v1514
      %v1516 = vsel %vm1428, %v909, -inf
      %v1517 = vsel %vm1428, %v965, -inf
      %v1518 = vmax.f32 %v1516, %v1517
      %v1519 = vsel %vm1428, %v916, -inf
      %v1520 = vsel %vm1428, %v972, -inf
      %v1521 = vmax.f32 %v1519, %v1520
      %v1522 = vsel %vm1428, %v923, -inf
      %v1523 = vsel %vm1428, %v979, -inf
      %v1524 = vmax.f32 %v1522, %v1523
      %v1525 = vsel %vm1428, %v986, -inf
      %v1526 = vsel %vm1428, %v1042, -inf
      %v1527 = vmax.f32 %v1525, %v1526
      %v1528 = vsel %vm1428, %v993, -inf
      %v1529 = vsel %vm1428, %v1049, -inf
      %v1530 = vmax.f32 %v1528, %v1529
      %v1531 = vsel %vm1428, %v1000, -inf
      %v1532 = vsel %vm1428, %v1056, -inf
      %v1533 = vmax.f32 %v1531, %v1532
      %v1534 = vsel %vm1428, %v1007, -inf
      %v1535 = vsel %vm1428, %v1063, -inf
      %v1536 = vmax.f32 %v1534, %v1535
      %v1537 = vsel %vm1428, %v1014, -inf
      %v1538 = vsel %vm1428, %v1070, -inf
      %v1539 = vmax.f32 %v1537, %v1538
      %v1540 = vsel %vm1428, %v1021, -inf
      %v1541 = vsel %vm1428, %v1077, -inf
      %v1542 = vmax.f32 %v1540, %v1541
      %v1543 = vsel %vm1428, %v1028, -inf
      %v1544 = vsel %vm1428, %v1084, -inf
      %v1545 = vmax.f32 %v1543, %v1544
      %v1546 = vsel %vm1428, %v1035, -inf
      %v1547 = vsel %vm1428, %v1091, -inf
      %v1548 = vmax.f32 %v1546, %v1547
      %v1549 = vsel %vm1428, %v1098, -inf
      %v1550 = vsel %vm1428, %v1154, -inf
      %v1551 = vmax.f32 %v1549, %v1550
      %v1552 = vsel %vm1428, %v1105, -inf
      %v1553 = vsel %vm1428, %v1161, -inf
      %v1554 = vmax.f32 %v1552, %v1553
      %v1555 = vsel %vm1428, %v1112, -inf
      %v1556 = vsel %vm1428, %v1168, -inf
      %v1557 = vmax.f32 %v1555, %v1556
      %v1558 = vsel %vm1428, %v1119, -inf
      %v1559 = vsel %vm1428, %v1175, -inf
      %v1560 = vmax.f32 %v1558, %v1559
      %v1561 = vsel %vm1428, %v1126, -inf
      %v1562 = vsel %vm1428, %v1182, -inf
      %v1563 = vmax.f32 %v1561, %v1562
      %v1564 = vsel %vm1428, %v1133, -inf
      %v1565 = vsel %vm1428, %v1189, -inf
      %v1566 = vmax.f32 %v1564, %v1565
      %v1567 = vsel %vm1428, %v1140, -inf
      %v1568 = vsel %vm1428, %v1196, -inf
      %v1569 = vmax.f32 %v1567, %v1568
      %v1570 = vsel %vm1428, %v1147, -inf
      %v1571 = vsel %vm1428, %v1203, -inf
      %v1572 = vmax.f32 %v1570, %v1571
      %v1573 = vsel %vm1428, %v1210, -inf
      %v1574 = vsel %vm1428, %v1266, -inf
      %v1575 = vmax.f32 %v1573, %v1574
      %v1576 = vsel %vm1428, %v1217, -inf
      %v1577 = vsel %vm1428, %v1273, -inf
      %v1578 = vmax.f32 %v1576, %v1577
      %v1579 = vsel %vm1428, %v1224, -inf
      %v1580 = vsel %vm1428, %v1280, -inf
      %v1581 = vmax.f32 %v1579, %v1580
      %v1582 = vsel %vm1428, %v1231, -inf
      %v1583 = vsel %vm1428, %v1287, -inf
      %v1584 = vmax.f32 %v1582, %v1583
      %v1585 = vsel %vm1428, %v1238, -inf
      %v1586 = vsel %vm1428, %v1294, -inf
      %v1587 = vmax.f32 %v1585, %v1586
      %v1588 = vsel %vm1428, %v1245, -inf
      %v1589 = vsel %vm1428, %v1301, -inf
      %v1590 = vmax.f32 %v1588, %v1589
      %v1591 = vsel %vm1428, %v1252, -inf
      %v1592 = vsel %vm1428, %v1308, -inf
      %v1593 = vmax.f32 %v1591, %v1592
      %v1594 = vsel %vm1428, %v1259, -inf
      %v1595 = vsel %vm1428, %v1315, -inf
      %v1596 = vmax.f32 %v1594, %v1595
      %v1597 = vsel %vm1428, %v1322, -inf
      %v1598 = vsel %vm1428, %v1378, -inf
      %v1599 = vmax.f32 %v1597, %v1598
      %v1600 = vsel %vm1428, %v1329, -inf
      %v1601 = vsel %vm1428, %v1385, -inf
      %v1602 = vmax.f32 %v1600, %v1601
      %v1603 = vsel %vm1428, %v1336, -inf
      %v1604 = vsel %vm1428, %v1392, -inf
      %v1605 = vmax.f32 %v1603, %v1604
      %v1606 = vsel %vm1428, %v1343, -inf
      %v1607 = vsel %vm1428, %v1399, -inf
      %v1608 = vmax.f32 %v1606, %v1607
      %v1609 = vsel %vm1428, %v1350, -inf
      %v1610 = vsel %vm1428, %v1406, -inf
      %v1611 = vmax.f32 %v1609, %v1610
      %v1612 = vsel %vm1428, %v1357, -inf
      %v1613 = vsel %vm1428, %v1413, -inf
      %v1614 = vmax.f32 %v1612, %v1613
      %v1615 = vsel %vm1428, %v1364, -inf
      %v1616 = vsel %vm1428, %v1420, -inf
      %v1617 = vmax.f32 %v1615, %v1616
      %v1618 = vsel %vm1428, %v1371, -inf
      %v1619 = vsel %vm1428, %v1427, -inf
      %v1620 = vmax.f32 %v1618, %v1619
      %vm1685 = vcmask 1041409
      %v1686 = vsel %vm1685, %v1434, %v1431
      %vm1687 = vcmask 1042434
      %v1688 = vsel %vm1687, %v1437, %v1686
      %vm1689 = vcmask 1043459
      %v1690 = vsel %vm1689, %v1440, %v1688
      %vm1691 = vcmask 1044484
      %v1692 = vsel %vm1691, %v1443, %v1690
      %vm1693 = vcmask 1045509
      %v1694 = vsel %vm1693, %v1446, %v1692
      %vm1695 = vcmask 1046534
      %v1696 = vsel %vm1695, %v1449, %v1694
      %vm1697 = vcmask 1047559
      %v1698 = vsel %vm1697, %v1452, %v1696
      %v1699 = vsel %vm1685, %v1458, %v1455
      %v1700 = vsel %vm1687, %v1461, %v1699
      %v1701 = vsel %vm1689, %v1464, %v1700
      %v1702 = vsel %vm1691, %v1467, %v1701
      %v1703 = vsel %vm1693, %v1470, %v1702
      %v1704 = vsel %vm1695, %v1473, %v1703
      %v1705 = vsel %vm1697, %v1476, %v1704
      %v1706 = vsel %vm1685, %v1482, %v1479
      %v1707 = vsel %vm1687, %v1485, %v1706
      %v1708 = vsel %vm1689, %v1488, %v1707
      %v1709 = vsel %vm1691, %v1491, %v1708
      %v1710 = vsel %vm1693, %v1494, %v1709
      %v1711 = vsel %vm1695, %v1497, %v1710
      %v1712 = vsel %vm1697, %v1500, %v1711
      %v1713 = vsel %vm1685, %v1506, %v1503
      %v1714 = vsel %vm1687, %v1509, %v1713
      %v1715 = vsel %vm1689, %v1512, %v1714
      %v1716 = vsel %vm1691, %v1515, %v1715
      %v1717 = vsel %vm1693, %v1518, %v1716
      %v1718 = vsel %vm1695, %v1521, %v1717
      %v1719 = vsel %vm1697, %v1524, %v1718
      %v1720 = vsel %vm1685, %v1530, %v1527
      %v1721 = vsel %vm1687, %v1533, %v1720
      %v1722 = vsel %vm1689, %v1536, %v1721
      %v1723 = vsel %vm1691, %v1539, %v1722
      %v1724 = vsel %vm1693, %v1542, %v1723
      %v1725 = vsel %vm1695, %v1545, %v1724
      %v1726 = vsel %vm1697, %v1548, %v1725
      %v1727 = vsel %vm1685, %v1554, %v1551
      %v1728 = vsel %vm1687, %v1557, %v1727
      %v1729 = vsel %vm1689, %v1560, %v1728
      %v1730 = vsel %vm1691, %v1563, %v1729
      %v1731 = vsel %vm1693, %v1566, %v1730
      %v1732 = vsel %vm1695, %v1569, %v1731
      %v1733 = vsel %vm1697, %v1572, %v1732
      %v1734 = vsel %vm1685, %v1578, %v1575
      %v1735 = vsel %vm1687, %v1581, %v1734
      %v1736 = vsel %vm1689, %v1584, %v1735
      %v1737 = vsel %vm1691, %v1587, %v1736
      %v1738 = vsel %vm1693, %v1590, %v1737
      %v1739 = vsel %vm1695, %v1593, %v1738
      %v1740 = vsel %vm1697, %v1596, %v1739
      %v1741 = vsel %vm1685, %v1602, %v1599
      %v1742 = vsel %vm1687, %v1605, %v1741
      %v1743 = vsel %vm1689, %v1608, %v1742
      %v1744 = vsel %vm1691, %v1611, %v1743
      %v1745 = vsel %vm1693, %v1614, %v1744
      %v1746 = vsel %vm1695, %v1617, %v1745
      %v1747 = vsel %vm1697, %v1620, %v1746
      %1756 = vst.msk [vmem:[%s170] sm:$0xff] %vm1428, %v1698
      %1757 = vst.msk [vmem:[%s170 + $0x8] sm:$0xff] %vm1428, %v1705
      %1758 = vst.msk [vmem:[%s170 + $0x10] sm:$0xff] %vm1428, %v1712
      %1759 = vst.msk [vmem:[%s170 + $0x18] sm:$0xff] %vm1428, %v1719
      %1760 = vst.msk [vmem:[%s170 + $0x20] sm:$0xff] %vm1428, %v1726
      %1761 = vst.msk [vmem:[%s170 + $0x28] sm:$0xff] %vm1428, %v1733
      %1762 = vst.msk [vmem:[%s170 + $0x30] sm:$0xff] %vm1428, %v1740
      %1763 = vst.msk [vmem:[%s170 + $0x38] sm:$0xff] %vm1428, %v1747
      %p1764 = scmp.lt.s32.totalorder %s14, 1
      %s1765 = scalar_select %p1764, %s14, 1
      %s1766 = smul.addr %s1765, 8
      %s1767 = smul.addr %s1766, 8
      %s1768 = scalar_lea.vmem %s3, %s1767
      // Predicated region
      $region33: #{conv_block_forward.3} parent=31 // pred_check
        %p1769 = pneg %p100
      $region34: #{conv_block_forward.3} parent=31 // pred_check_branch
        %1771 = sbr.rel (%p1769) target = $region36
      $region35: #{conv_block_forward.3} parent=31 // pred_region
        _
      $region36: #{conv_block_forward.3} parent=31 // pred_fallthru
        _
    $region32: #{conv_block_forward.3} parent=5 // pred_fallthru
      _
    %p1772 = scmp.le.s32.totalorder 2, %s9
    // Predicated region
    $region37: #{conv_block_forward.3} parent=5 // pred_check
      %p1773 = pneg %p1772
    $region38: #{conv_block_forward.3} parent=5 // pred_check_branch
      %1775 = sbr.rel (%p1773) target = $region40
    $region39: #{conv_block_forward.3} parent=5 // pred_region
      %s1776 = ssub.s32 %s9, 2
      // Predicated region
      $region41: #{conv_block_forward.3} parent=39 // pred_check
        %p1777 = pneg %p106
      $region42: #{conv_block_forward.3} parent=39 // pred_check_branch
        %1779 = sbr.rel (%p1777) target = $region44
      $region43: #{conv_block_forward.3} parent=39 // pred_region
        %p1780 = scmp.lt.s32.totalorder %s15, 1
        %s1781 = scalar_select %p1780, %s15, 1
        %s1782 = smul.addr %s1781, 8
        %s1783 = smul.addr %s1782, 8
        %s1784 = scalar_lea.vmem %s3, %s1783
      $region44: #{conv_block_forward.3} parent=39 // pred_fallthru
        _
    $region40: #{conv_block_forward.3} parent=5 // pred_fallthru
      _
  $region6: #{conv_block_forward.3} parent=0 // loop_footer
    %s13 = sadd.s32 1, %s9
  $region7: #{conv_block_forward.3} parent=0 // loop_footer_branch
    %8 = sbr.rel target = $region3
  $region8: #{conv_block_forward.3} parent=0 // loop_exit
    _

// kernel: conv_block_forward.2
$region0: #{conv_block_forward.2}
  #allocation0 [shape = 'u32[]', space=smem, size = 0x4, offset = 0x4, fixed_abs, tag = 'smem constant byte address 0x4 - core index']
  #allocation1 [shape = 'u32[72,128]{1,0:T(1,128)}', space=vmem, size = 0x9000, scoped, tag = 'internal scratch']
  %s0 = inlined_call_operand.vmem [shape: bf16[2,18,18,4], index: 0, kind: input, shape index: {}]
  %s1 = inlined_call_operand.vmem [shape: bf16[9,4,8], index: 1, kind: input, shape index: {}]
  %s2 = inlined_call_operand.vmem [shape: f32[2,256,8], index: 2, kind: output, shape index: {0}]
  %s3 = inlined_call_operand.vmem [shape: f32[2,1,8], index: 3, kind: output, shape index: {1}]
  %s4 = inlined_call_operand.vmem [shape: f32[2,1,8], index: 4, kind: output, shape index: {2}]
  %5 = xla_tuple %s2, %s3, %s4
  %s6 = sld [smem:[#allocation0]]
  $region57: #{conv_block_forward.2} parent=0
    _
  %s8 = ssub.s32 1, %s6
  %s9 = scalar_select 0, %s8, %s6
  loop: start=0, step=1, limit=4
  $region2: #{conv_block_forward.2} parent=0 // loop_pre_header
    _
  $region3: #{conv_block_forward.2} parent=0 // loop_header
    %s11 = sphi 0, %s15
    %p12 = scmp.ge.s32.totalorder %s11, 4
    %s21 = sphi 0, %s23
    %s24 = sphi 0, %s21
    %s25 = sphi 0, %s24
    %s41 = sphi 0, %s25
    %s45 = sphi 0, %s45
    %s47 = sphi 0, %s45
    %s48 = sphi 0, %s47
    %s62 = sphi 0, %s48
    %s68 = sphi 0, %s70
    %s71 = sphi 0, %s68
    %s72 = sphi 0, %s71
    %s88 = sphi 0, %s72
    %s94 = sphi 0, %s96
    %s97 = sphi 0, %s94
    %s98 = sphi 0, %s97
    %s114 = sphi 0, %s98
    %s120 = sphi 0, %s122
    %s123 = sphi 0, %s120
    %s124 = sphi 0, %s123
    %s140 = sphi 0, %s124
  $region4: #{conv_block_forward.2} parent=0 // loop_header_branch
    %14 = sbr.rel (%p12) target = $region8
  $region5: #{conv_block_forward.2} parent=0 // loop_body
    %s16 = ssub.s32 %s11, 1
    %s17 = ssub.s32 %s11, 2
    %s18 = sadd.s32 %s11, 1
    %s19 = ssub.s32 %s11, %s18
    %p20 = scmp.eq.s32.totalorder %s19, 0
    %s22 = sadd.s32 %s21, 1
    %s23 = scalar_select %p20, %s21, %s22
    %p26 = pneg %p20
    %p27 = scmp.eq.s32.totalorder %s11, 1
    %p28 = por %p26, %p27
    %p29 = scmp.ne.s32.totalorder %s21, %s24
    %p30 = scmp.eq.s32.totalorder %s11, 0
    %p31 = por %p29, %p30
    %p32 = scmp.ne.s32.totalorder %s21, %s24
    %p33 = scmp.eq.s32.totalorder %s16, 1
    %p34 = por %p32, %p33
    %p35 = scmp.ne.s32.totalorder %s24, %s25
    %p36 = scmp.eq.s32.totalorder %s16, 0
    %p37 = por %p35, %p36
    %p38 = scmp.ne.s32.totalorder %s24, %s25
    %p39 = scmp.eq.s32.totalorder %s17, 1
    %p40 = por %p38, %p39
    %p42 = scmp.ne.s32.totalorder %s25, %s41
    %p43 = scmp.eq.s32.totalorder %s17, 0
    %p44 = por %p42, %p43
    %s46 = sadd.s32 %s45, 1
    %p49 = scmp.eq.s32.totalorder %s11, 1
    %p50 = scmp.ne.s32.totalorder %s45, %s47
    %p51 = scmp.eq.s32.totalorder %s11, 0
    %p52 = por %p50, %p51
    %p53 = scmp.ne.s32.totalorder %s45, %s47
    %p54 = scmp.eq.s32.totalorder %s16, 1
    %p55 = por %p53, %p54
    %p56 = scmp.ne.s32.totalorder %s47, %s48
    %p57 = scmp.eq.s32.totalorder %s16, 0
    %p58 = por %p56, %p57
    %p59 = scmp.ne.s32.totalorder %s47, %s48
    %p60 = scmp.eq.s32.totalorder %s17, 1
    %p61 = por %p59, %p60
    %p63 = scmp.ne.s32.totalorder %s48, %s62
    %p64 = scmp.eq.s32.totalorder %s17, 0
    %p65 = por %p63, %p64
    %s66 = ssub.s32 %s11, %s18
    %p67 = scmp.eq.s32.totalorder %s66, 0
    %s69 = sadd.s32 %s68, 1
    %s70 = scalar_select %p67, %s68, %s69
    %p73 = pneg %p67
    %p74 = scmp.eq.s32.totalorder %s11, 1
    %p75 = por %p73, %p74
    %p76 = scmp.ne.s32.totalorder %s68, %s71
    %p77 = scmp.eq.s32.totalorder %s11, 0
    %p78 = por %p76, %p77
    %p79 = scmp.ne.s32.totalorder %s68, %s71
    %p80 = scmp.eq.s32.totalorder %s16, 1
    %p81 = por %p79, %p80
    %p82 = scmp.ne.s32.totalorder %s71, %s72
    %p83 = scmp.eq.s32.totalorder %s16, 0
    %p84 = por %p82, %p83
    %p85 = scmp.ne.s32.totalorder %s71, %s72
    %p86 = scmp.eq.s32.totalorder %s17, 1
    %p87 = por %p85, %p86
    %p89 = scmp.ne.s32.totalorder %s72, %s88
    %p90 = scmp.eq.s32.totalorder %s17, 0
    %p91 = por %p89, %p90
    %s92 = ssub.s32 %s11, %s18
    %p93 = scmp.eq.s32.totalorder %s92, 0
    %s95 = sadd.s32 %s94, 1
    %s96 = scalar_select %p93, %s94, %s95
    %p99 = pneg %p93
    %p100 = scmp.eq.s32.totalorder %s11, 1
    %p101 = por %p99, %p100
    %p102 = scmp.ne.s32.totalorder %s94, %s97
    %p103 = scmp.eq.s32.totalorder %s11, 0
    %p104 = por %p102, %p103
    %p105 = scmp.ne.s32.totalorder %s94, %s97
    %p106 = scmp.eq.s32.totalorder %s16, 1
    %p107 = por %p105, %p106
    %p108 = scmp.ne.s32.totalorder %s97, %s98
    %p109 = scmp.eq.s32.totalorder %s16, 0
    %p110 = por %p108, %p109
    %p111 = scmp.ne.s32.totalorder %s97, %s98
    %p112 = scmp.eq.s32.totalorder %s17, 1
    %p113 = por %p111, %p112
    %p115 = scmp.ne.s32.totalorder %s98, %s114
    %p116 = scmp.eq.s32.totalorder %s17, 0
    %p117 = por %p115, %p116
    %s118 = ssub.s32 %s11, %s18
    %p119 = scmp.eq.s32.totalorder %s118, 0
    %s121 = sadd.s32 %s120, 1
    %s122 = scalar_select %p119, %s120, %s121
    %p125 = pneg %p119
    %p126 = scmp.eq.s32.totalorder %s11, 1
    %p127 = por %p125, %p126
    %p128 = scmp.ne.s32.totalorder %s120, %s123
    %p129 = scmp.eq.s32.totalorder %s11, 0
    %p130 = por %p128, %p129
    %p131 = scmp.ne.s32.totalorder %s120, %s123
    %p132 = scmp.eq.s32.totalorder %s16, 1
    %p133 = por %p131, %p132
    %p134 = scmp.ne.s32.totalorder %s123, %s124
    %p135 = scmp.eq.s32.totalorder %s16, 0
    %p136 = por %p134, %p135
    %p137 = scmp.ne.s32.totalorder %s123, %s124
    %p138 = scmp.eq.s32.totalorder %s17, 1
    %p139 = por %p137, %p138
    %p141 = scmp.ne.s32.totalorder %s124, %s140
    %p142 = scmp.eq.s32.totalorder %s17, 0
    %p143 = por %p141, %p142
    %p144 = scmp.le.s32.totalorder 1, %s11
    %p145 = scmp.lt.s32.totalorder %s11, 3
    %p146 = pnand %p144, %p145
    %p147 = pneg %p146
    // Predicated region
    $region9: #{conv_block_forward.2} parent=5 // pred_check
      _
    $region10: #{conv_block_forward.2} parent=5 // pred_check_branch
      %149 = sbr.rel (%p146) target = $region12
    $region11: #{conv_block_forward.2} parent=5 // pred_region
      %s150 = ssub.s32 %s11, 1
      // Predicated region
      $region13: #{conv_block_forward.2} parent=11 // pred_check
        %p151 = pneg %p58
      $region14: #{conv_block_forward.2} parent=11 // pred_check_branch
        %153 = sbr.rel (%p151) target = $region16
      $region15: #{conv_block_forward.2} parent=11 // pred_region
        _
      $region16: #{conv_block_forward.2} parent=11 // pred_fallthru
        _
    $region12: #{conv_block_forward.2} parent=5 // pred_fallthru
      _
    %p154 = scmp.lt.s32.totalorder %s11, 2
    // Predicated region
    $region17: #{conv_block_forward.2} parent=5 // pred_check
      %p155 = pneg %p154
    $region18: #{conv_block_forward.2} parent=5 // pred_check_branch
      %157 = sbr.rel (%p155) target = $region20
    $region19: #{conv_block_forward.2} parent=5 // pred_region
      // Predicated region
      $region21: #{conv_block_forward.2} parent=19 // pred_check
        %p158 = pneg %p31
      $region22: #{conv_block_forward.2} parent=19 // pred_check_branch
        %160 = sbr.rel (%p158) target = $region24
      $region23: #{conv_block_forward.2} parent=19 // pred_region
        %p161 = scmp.lt.s32.totalorder %s11, 1
        %s162 = scalar_select %p161, %s11, 1
        %s163 = smul.addr %s162, 54
        %s164 = smul.addr %s163, 4
        %s165 = scalar_lea.vmem %s0, %s164
      $region24: #{conv_block_forward.2} parent=19 // pred_fallthru
        _
    $region20: #{conv_block_forward.2} parent=5 // pred_fallthru
      _
    %p166 = scmp.le.s32.totalorder 1, %s11
    %p167 = scmp.lt.s32.totalorder %s11, 3
    %p168 = pnand %p166, %p167
    %p169 = pneg %p168
    // Predicated region
    $region25: #{conv_block_forward.2} parent=5 // pred_check
      _
    $region26: #{conv_block_forward.2} parent=5 // pred_check_branch
      %171 = sbr.rel (%p168) target = $region28
    $region27: #{conv_block_forward.2} parent=5 // pred_region
      %s172 = ssub.s32 %s11, 1
      %p173 = scmp.lt.s32.totalorder %s16, 1
      %s174 = scalar_select %p173, %s16, 1
      %s175 = smul.addr %s174, 54
      %s176 = smul.addr %s175, 4
      %s177 = scalar_lea.vmem %s0, %s176
      %p178 = pneg %p37
      %p179 = pneg %p34
      %p180 = pneg %p58
      %p181 = pneg %p55
      %p182 = pneg %p84
      %p183 = pneg %p81
      %p184 = scmp.lt.s32.totalorder %s16, 1
      %s185 = scalar_select %p184, %s16, 1
      %s186 = smul.addr %s185, 32
      %s187 = smul.addr %s186, 8
      %s188 = scalar_lea.vmem %s2, %s187
      %p189 = pneg %p110
      %p190 = pneg %p107
      %p191 = scmp.lt.s32.totalorder %s16, 1
      %s192 = scalar_select %p191, %s16, 1
      %s193 = scalar_lea.vmem %s3, %s192
      %p194 = pneg %p136
      %p195 = pneg %p133
      %p196 = scmp.lt.s32.totalorder %s16, 1
      %s197 = scalar_select %p196, %s16, 1
      %s198 = scalar_lea.vmem %s4, %s197
      %p199 = scmp.lt.s32.totalorder %s16, 1
      %s200 = scalar_select %p199, %s16, 1
      %s201 = smul.addr %s200, 54
      %s202 = smul.addr %s201, 4
      %s203 = scalar_lea.vmem %s0, %s202
      %p204 = scmp.lt.s32.totalorder %s16, 1
      %s205 = scalar_select %p204, %s16, 1
      %s206 = smul.addr %s205, 32
      %s207 = smul.addr %s206, 8
      %s208 = scalar_lea.vmem %s2, %s207
      %p209 = scmp.lt.s32.totalorder %s16, 1
      %s210 = scalar_select %p209, %s16, 1
      %s211 = scalar_lea.vmem %s3, %s210
      %p212 = scmp.lt.s32.totalorder %s16, 1
      %s213 = scalar_select %p212, %s16, 1
      %s214 = scalar_lea.vmem %s4, %s213
      %v216 = vld [vmem:[%s203] sm:$0xf]
      %v217 = vld [vmem:[%s203 + $0x4] sm:$0xf]
      %v218 = vld [vmem:[%s203 + $0xc] sm:$0xf]
      %v219 = vld [vmem:[%s203 + $0x10] sm:$0xf]
      %v220 = vld [vmem:[%s203 + $0x18] sm:$0xf]
      %v221 = vld [vmem:[%s203 + $0x1c] sm:$0xf]
      %v222 = vld [vmem:[%s203 + $0x24] sm:$0xf]
      %v223 = vld [vmem:[%s203 + $0x28] sm:$0xf]
      %v224 = vld [vmem:[%s203 + $0x30] sm:$0xf]
      %v225 = vld [vmem:[%s203 + $0x34] sm:$0xf]
      %v226 = vld [vmem:[%s203 + $0x3c] sm:$0xf]
      %v227 = vld [vmem:[%s203 + $0x40] sm:$0xf]
      %v228 = vld [vmem:[%s203 + $0x48] sm:$0xf]
      %v229 = vld [vmem:[%s203 + $0x4c] sm:$0xf]
      %v230 = vld [vmem:[%s203 + $0x54] sm:$0xf]
      %v231 = vld [vmem:[%s203 + $0x58] sm:$0xf]
      %v232 = vld [vmem:[%s203 + $0x60] sm:$0xf]
      %v233 = vld [vmem:[%s203 + $0x64] sm:$0xf]
      %v234 = vld [vmem:[%s203 + $0x6c] sm:$0xf]
      %v235 = vld [vmem:[%s203 + $0x70] sm:$0xf]
      %v236 = vld [vmem:[%s203 + $0x78] sm:$0xf]
      %v237 = vld [vmem:[%s203 + $0x7c] sm:$0xf]
      %v238 = vld [vmem:[%s203 + $0x84] sm:$0xf]
      %v239 = vld [vmem:[%s203 + $0x88] sm:$0xf]
      %v240 = vld [vmem:[%s203 + $0x90] sm:$0xf]
      %v241 = vld [vmem:[%s203 + $0x94] sm:$0xf]
      %v242 = vld [vmem:[%s203 + $0x9c] sm:$0xf]
      %v243 = vld [vmem:[%s203 + $0xa0] sm:$0xf]
      %v244 = vld [vmem:[%s203 + $0xa8] sm:$0xf]
      %v245 = vld [vmem:[%s203 + $0xac] sm:$0xf]
      %v246 = vld [vmem:[%s203 + $0xb4] sm:$0xf]
      %v247 = vld [vmem:[%s203 + $0xb8] sm:$0xf]
      %v248 = vld [vmem:[%s203 + $0xc0] sm:$0xf]
      %v249 = vld [vmem:[%s203 + $0xc4] sm:$0xf]
      %v250 = vld [vmem:[%s203 + $0xcc] sm:$0xf]
      %v251 = vld [vmem:[%s203 + $0xd0] sm:$0xf]
      %v252 = vld [vmem:[%s1] sm:$0x3]
      %s253 = scalar_lea.vmem %s1, 6
      %v254 = vld [vmem:[%s253] sm:$0x3]
      %v287 = vunpack.c.l.b16 %v218
      %v288 = vunpack.c.l.b16 %v219
      %v289 = vunpack.c.l.b16 %v220
      %v290 = vunpack.c.l.b16 %v221
      %v291 = vunpack.c.l.b16 %v222
      %v292 = vunpack.c.l.b16 %v223
      %v293 = vunpack.c.l.b16 %v224
      %v294 = vunpack.c.l.b16 %v225
      %v295 = vunpack.c.l.b16 %v226
      %v296 = vunpack.c.l.b16 %v227
      %v297 = vunpack.c.l.b16 %v228
      %v298 = vunpack.c.l.b16 %v229
      %v299 = vunpack.c.l.b16 %v230
      %v300 = vunpack.c.l.b16 %v231
      %v301 = vunpack.c.l.b16 %v232
      %v302 = vunpack.c.l.b16 %v233
      %v303 = vunpack.c.l.b16 %v234
      %v304 = vunpack.c.l.b16 %v235
      %v305 = vunpack.c.l.b16 %v236
      %v306 = vunpack.c.l.b16 %v237
      %v307 = vunpack.c.l.b16 %v238
      %v308 = vunpack.c.l.b16 %v239
      %v309 = vunpack.c.l.b16 %v240
      %v310 = vunpack.c.l.b16 %v241
      %v311 = vunpack.c.l.b16 %v242
      %v312 = vunpack.c.l.b16 %v243
      %v313 = vunpack.c.l.b16 %v244
      %v314 = vunpack.c.l.b16 %v245
      %v315 = vunpack.c.l.b16 %v246
      %v316 = vunpack.c.l.b16 %v247
      %v317 = vunpack.c.l.b16 %v248
      %v318 = vunpack.c.l.b16 %v249
      %v319 = vpack.c.b16 %v288, %v287
      %v320 = vpack.c.b16 %v290, %v289
      %v321 = vpack.c.b16 %v292, %v291
      %v322 = vpack.c.b16 %v294, %v293
      %v323 = vpack.c.b16 %v296, %v295
      %v324 = vpack.c.b16 %v298, %v297
      %v325 = vpack.c.b16 %v300, %v299
      %v326 = vpack.c.b16 %v302, %v301
      %v327 = vpack.c.b16 %v304, %v303
      %v328 = vpack.c.b16 %v306, %v305
      %v329 = vpack.c.b16 %v308, %v307
      %v330 = vpack.c.b16 %v310, %v309
      %v331 = vpack.c.b16 %v312, %v311
      %v332 = vpack.c.b16 %v314, %v313
      %v333 = vpack.c.b16 %v316, %v315
      %v334 = vpack.c.b16 %v318, %v317
      %vm335 = vcmask 31744
      %v337 = vsel %vm335, %v319, 0
      %v340 = vsel %vm335, %v320, 0
      %v343 = vsel %vm335, %v321, 0
      %v346 = vsel %vm335, %v322, 0
      %v349 = vsel %vm335, %v323, 0
      %v352 = vsel %vm335, %v324, 0
      %v355 = vsel %vm335, %v325, 0
      %v358 = vsel %vm335, %v326, 0
      %v361 = vsel %vm335, %v327, 0
      %v364 = vsel %vm335, %v328, 0
      %v367 = vsel %vm335, %v329, 0
      %v370 = vsel %vm335, %v330, 0
      %v373 = vsel %vm335, %v331, 0
      %v376 = vsel %vm335, %v332, 0
      %v379 = vsel %vm335, %v333, 0
      %v382 = vsel %vm335, %v334, 0
      %vm384 = vcmask 1041408
      %v386 = vsel %vm384, %v254, 0
      %388 = vmatpush.bf16.msra.mxu0 0
      %389 = vmatpush.bf16.msra.mxu0 0
      %390 = vmatpush.bf16.msra.mxu0 0
      %391 = vmatpush.bf16.msra.mxu0 0
      %392 = vmatpush.bf16.msra.mxu0 0
      %393 = vmatpush.bf16.msra.mxu0 0
      %394 = vmatpush.bf16.msra.mxu0 0
      %395 = vmatpush.bf16.msra.mxu0 %v386
      %396 = vmatmul.bf16.gmra.mxu0 %v337
      %v397 = vpop.f32.mrf.mxu0
      %v398 = vadd.f32 0.0, %v397
      %v399 = vpop.f32.mrf.mxu0
      %v400 = vadd.f32 0.0, %v399
      %401 = vmatmul.bf16.gmra.mxu0 %v340
      %v402 = vpop.f32.mrf.mxu0
      %v403 = vadd.f32 0.0, %v402
      %v404 = vpop.f32.mrf.mxu0
      %v405 = vadd.f32 0.0, %v404
      %406 = vmatmul.bf16.gmra.mxu0 %v343
      %v407 = vpop.f32.mrf.mxu0
      %v408 = vadd.f32 0.0, %v407
      %v409 = vpop.f32.mrf.mxu0
      %v410 = vadd.f32 0.0, %v409
      %411 = vmatmul.bf16.gmra.mxu0 %v346
      %v412 = vpop.f32.mrf.mxu0
      %v413 = vadd.f32 0.0, %v412
      %v414 = vpop.f32.mrf.mxu0
      %v415 = vadd.f32 0.0, %v414
      %416 = vmatmul.bf16.gmra.mxu0 %v349
      %v417 = vpop.f32.mrf.mxu0
      %v418 = vadd.f32 0.0, %v417
      %v419 = vpop.f32.mrf.mxu0
      %v420 = vadd.f32 0.0, %v419
      %421 = vmatmul.bf16.gmra.mxu0 %v352
      %v422 = vpop.f32.mrf.mxu0
      %v423 = vadd.f32 0.0, %v422
      %v424 = vpop.f32.mrf.mxu0
      %v425 = vadd.f32 0.0, %v424
      %426 = vmatmul.bf16.gmra.mxu0 %v355
      %v427 = vpop.f32.mrf.mxu0
      %v428 = vadd.f32 0.0, %v427
      %v429 = vpop.f32.mrf.mxu0
      %v430 = vadd.f32 0.0, %v429
      %431 = vmatmul.bf16.gmra.mxu0 %v358
      %v432 = vpop.f32.mrf.mxu0
      %v433 = vadd.f32 0.0, %v432
      %v434 = vpop.f32.mrf.mxu0
      %v435 = vadd.f32 0.0, %v434
      %436 = vmatmul.bf16.gmra.mxu0 %v361
      %v437 = vpop.f32.mrf.mxu0
      %v438 = vadd.f32 0.0, %v437
      %v439 = vpop.f32.mrf.mxu0
      %v440 = vadd.f32 0.0, %v439
      %441 = vmatmul.bf16.gmra.mxu0 %v364
      %v442 = vpop.f32.mrf.mxu0
      %v443 = vadd.f32 0.0, %v442
      %v444 = vpop.f32.mrf.mxu0
      %v445 = vadd.f32 0.0, %v444
      %446 = vmatmul.bf16.gmra.mxu0 %v367
      %v447 = vpop.f32.mrf.mxu0
      %v448 = vadd.f32 0.0, %v447
      %v449 = vpop.f32.mrf.mxu0
      %v450 = vadd.f32 0.0, %v449
      %451 = vmatmul.bf16.gmra.mxu0 %v370
      %v452 = vpop.f32.mrf.mxu0
      %v453 = vadd.f32 0.0, %v452
      %v454 = vpop.f32.mrf.mxu0
      %v455 = vadd.f32 0.0, %v454
      %456 = vmatmul.bf16.gmra.mxu0 %v373
      %v457 = vpop.f32.mrf.mxu0
      %v458 = vadd.f32 0.0, %v457
      %v459 = vpop.f32.mrf.mxu0
      %v460 = vadd.f32 0.0, %v459
      %461 = vmatmul.bf16.gmra.mxu0 %v376
      %v462 = vpop.f32.mrf.mxu0
      %v463 = vadd.f32 0.0, %v462
      %v464 = vpop.f32.mrf.mxu0
      %v465 = vadd.f32 0.0, %v464
      %466 = vmatmul.bf16.gmra.mxu0 %v379
      %v467 = vpop.f32.mrf.mxu0
      %v468 = vadd.f32 0.0, %v467
      %v469 = vpop.f32.mrf.mxu0
      %v470 = vadd.f32 0.0, %v469
      %471 = vmatmul.bf16.gmra.mxu0 %v382
      %v472 = vpop.f32.mrf.mxu0
      %v473 = vadd.f32 0.0, %v472
      %v474 = vpop.f32.mrf.mxu0
      %v475 = vadd.f32 0.0, %v474
      %476 = vdwg.mxu0
      %v479 = vunpack.c.l.b16 %v216
      %v480 = vunpack.c.l.b16 %v217
      %v481 = vpack.c.b16 %v480, %v479
      %v483 = vsel %vm335, %v481, 0
      %v486 = vsel %vm384, %v252, 0
      %488 = vmatpush.bf16.msra.mxu0 0
      %489 = vmatpush.bf16.msra.mxu0 0
      %490 = vmatpush.bf16.msra.mxu0 0
      %491 = vmatpush.bf16.msra.mxu0 0
      %492 = vmatpush.bf16.msra.mxu0 0
      %493 = vmatpush.bf16.msra.mxu0 0
      %494 = vmatpush.bf16.msra.mxu0 0
      %495 = vmatpush.bf16.msra.mxu0 %v486
      %496 = vmatmul.bf16.gmra.mxu0 %v483
      %v497 = vpop.f32.mrf.mxu0
      %v498 = vadd.f32 %v398, %v497
      %v499 = vpop.f32.mrf.mxu0
      %v500 = vadd.f32 %v400, %v499
      %501 = vmatmul.bf16.gmra.mxu0 %v337
      %v502 = vpop.f32.mrf.mxu0
      %v503 = vadd.f32 %v403, %v502
      %v504 = vpop.f32.mrf.mxu0
      %v505 = vadd.f32 %v405, %v504
      %506 = vmatmul.bf16.gmra.mxu0 %v340
      %v507 = vpop.f32.mrf.mxu0
      %v508 = vadd.f32 %v408, %v507
      %v509 = vpop.f32.mrf.mxu0
      %v510 = vadd.f32 %v410, %v509
      %511 = vmatmul.bf16.gmra.mxu0 %v343
      %v512 = vpop.f32.mrf.mxu0
      %v513 = vadd.f32 %v413, %v512
      %v514 = vpop.f32.mrf.mxu0
      %v515 = vadd.f32 %v415, %v514
      %516 = vmatmul.bf16.gmra.mxu0 %v346
      %v517 = vpop.f32.mrf.mxu0
      %v518 = vadd.f32 %v418, %v517
      %v519 = vpop.f32.mrf.mxu0
      %v520 = vadd.f32 %v420, %v519
      %521 = vmatmul.bf16.gmra.mxu0 %v349
      %v522 = vpop.f32.mrf.mxu0
      %v523 = vadd.f32 %v423, %v522
      %v524 = vpop.f32.mrf.mxu0
      %v525 = vadd.f32 %v425, %v524
      %526 = vmatmul.bf16.gmra.mxu0 %v352
      %v527 = vpop.f32.mrf.mxu0
      %v528 = vadd.f32 %v428, %v527
      %v529 = vpop.f32.mrf.mxu0
      %v530 = vadd.f32 %v430, %v529
      %531 = vmatmul.bf16.gmra.mxu0 %v355
      %v532 = vpop.f32.mrf.mxu0
      %v533 = vadd.f32 %v433, %v532
      %v534 = vpop.f32.mrf.mxu0
      %v535 = vadd.f32 %v435, %v534
      %536 = vmatmul.bf16.gmra.mxu0 %v358
      %v537 = vpop.f32.mrf.mxu0
      %v538 = vadd.f32 %v438, %v537
      %v539 = vpop.f32.mrf.mxu0
      %v540 = vadd.f32 %v440, %v539
      %541 = vmatmul.bf16.gmra.mxu0 %v361
      %v542 = vpop.f32.mrf.mxu0
      %v543 = vadd.f32 %v443, %v542
      %v544 = vpop.f32.mrf.mxu0
      %v545 = vadd.f32 %v445, %v544
      %546 = vmatmul.bf16.gmra.mxu0 %v364
      %v547 = vpop.f32.mrf.mxu0
      %v548 = vadd.f32 %v448, %v547
      %v549 = vpop.f32.mrf.mxu0
      %v550 = vadd.f32 %v450, %v549
      %551 = vmatmul.bf16.gmra.mxu0 %v367
      %v552 = vpop.f32.mrf.mxu0
      %v553 = vadd.f32 %v453, %v552
      %v554 = vpop.f32.mrf.mxu0
      %v555 = vadd.f32 %v455, %v554
      %556 = vmatmul.bf16.gmra.mxu0 %v370
      %v557 = vpop.f32.mrf.mxu0
      %v558 = vadd.f32 %v458, %v557
      %v559 = vpop.f32.mrf.mxu0
      %v560 = vadd.f32 %v460, %v559
      %561 = vmatmul.bf16.gmra.mxu0 %v373
      %v562 = vpop.f32.mrf.mxu0
      %v563 = vadd.f32 %v463, %v562
      %v564 = vpop.f32.mrf.mxu0
      %v565 = vadd.f32 %v465, %v564
      %566 = vmatmul.bf16.gmra.mxu0 %v376
      %v567 = vpop.f32.mrf.mxu0
      %v568 = vadd.f32 %v468, %v567
      %v569 = vpop.f32.mrf.mxu0
      %v570 = vadd.f32 %v470, %v569
      %571 = vmatmul.bf16.gmra.mxu0 %v379
      %v572 = vpop.f32.mrf.mxu0
      %v573 = vadd.f32 %v473, %v572
      %v574 = vpop.f32.mrf.mxu0
      %v575 = vadd.f32 %v475, %v574
      %576 = vdwg.mxu0
      %s577 = scalar_lea.vmem %s1, 12
      %v578 = vld [vmem:[%s577] sm:$0x3]
      %v581 = vunpack.c.l.b16 %v250
      %v582 = vunpack.c.l.b16 %v251
      %v583 = vpack.c.b16 %v582, %v581
      %v585 = vsel %vm335, %v583, 0
      %v588 = vsel %vm384, %v578, 0
      %590 = vmatpush.bf16.msra.mxu0 0
      %591 = vmatpush.bf16.msra.mxu0 0
      %592 = vmatpush.bf16.msra.mxu0 0
      %593 = vmatpush.bf16.msra.mxu0 0
      %594 = vmatpush.bf16.msra.mxu0 0
      %595 = vmatpush.bf16.msra.mxu0 0
      %596 = vmatpush.bf16.msra.mxu0 0
      %597 = vmatpush.bf16.msra.mxu0 %v588
      %598 = vmatmul.bf16.gmra.mxu0 %v340
      %v599 = vpop.f32.mrf.mxu0
      %v600 = vadd.f32 0.0, %v599
      %v601 = vpop.f32.mrf.mxu0
      %v602 = vadd.f32 0.0, %v601
      %603 = vmatmul.bf16.gmra.mxu0 %v343
      %v604 = vpop.f32.mrf.mxu0
      %v605 = vadd.f32 0.0, %v604
      %v606 = vpop.f32.mrf.mxu0
      %v607 = vadd.f32 0.0, %v606
      %608 = vmatmul.bf16.gmra.mxu0 %v346
      %v609 = vpop.f32.mrf.mxu0
      %v610 = vadd.f32 0.0, %v609
      %v611 = vpop.f32.mrf.mxu0
      %v612 = vadd.f32 0.0, %v611
      %613 = vmatmul.bf16.gmra.mxu0 %v349
      %v614 = vpop.f32.mrf.mxu0
      %v615 = vadd.f32 0.0, %v614
      %v616 = vpop.f32.mrf.mxu0
      %v617 = vadd.f32 0.0, %v616
      %618 = vmatmul.bf16.gmra.mxu0 %v352
      %v619 = vpop.f32.mrf.mxu0
      %v620 = vadd.f32 0.0, %v619
      %v621 = vpop.f32.mrf.mxu0
      %v622 = vadd.f32 0.0, %v621
      %623 = vmatmul.bf16.gmra.mxu0 %v355
      %v624 = vpop.f32.mrf.mxu0
      %v625 = vadd.f32 0.0, %v624
      %v626 = vpop.f32.mrf.mxu0
      %v627 = vadd.f32 0.0, %v626
      %628 = vmatmul.bf16.gmra.mxu0 %v358
      %v629 = vpop.f32.mrf.mxu0
      %v630 = vadd.f32 0.0, %v629
      %v631 = vpop.f32.mrf.mxu0
      %v632 = vadd.f32 0.0, %v631
      %633 = vmatmul.bf16.gmra.mxu0 %v361
      %v634 = vpop.f32.mrf.mxu0
      %v635 = vadd.f32 0.0, %v634
      %v636 = vpop.f32.mrf.mxu0
      %v637 = vadd.f32 0.0, %v636
      %638 = vmatmul.bf16.gmra.mxu0 %v364
      %v639 = vpop.f32.mrf.mxu0
      %v640 = vadd.f32 0.0, %v639
      %v641 = vpop.f32.mrf.mxu0
      %v642 = vadd.f32 0.0, %v641
      %643 = vmatmul.bf16.gmra.mxu0 %v367
      %v644 = vpop.f32.mrf.mxu0
      %v645 = vadd.f32 0.0, %v644
      %v646 = vpop.f32.mrf.mxu0
      %v647 = vadd.f32 0.0, %v646
      %648 = vmatmul.bf16.gmra.mxu0 %v370
      %v649 = vpop.f32.mrf.mxu0
      %v650 = vadd.f32 0.0, %v649
      %v651 = vpop.f32.mrf.mxu0
      %v652 = vadd.f32 0.0, %v651
      %653 = vmatmul.bf16.gmra.mxu0 %v373
      %v654 = vpop.f32.mrf.mxu0
      %v655 = vadd.f32 0.0, %v654
      %v656 = vpop.f32.mrf.mxu0
      %v657 = vadd.f32 0.0, %v656
      %658 = vmatmul.bf16.gmra.mxu0 %v376
      %v659 = vpop.f32.mrf.mxu0
      %v660 = vadd.f32 0.0, %v659
      %v661 = vpop.f32.mrf.mxu0
      %v662 = vadd.f32 0.0, %v661
      %663 = vmatmul.bf16.gmra.mxu0 %v379
      %v664 = vpop.f32.mrf.mxu0
      %v665 = vadd.f32 0.0, %v664
      %v666 = vpop.f32.mrf.mxu0
      %v667 = vadd.f32 0.0, %v666
      %668 = vmatmul.bf16.gmra.mxu0 %v382
      %v669 = vpop.f32.mrf.mxu0
      %v670 = vadd.f32 0.0, %v669
      %v671 = vpop.f32.mrf.mxu0
      %v672 = vadd.f32 0.0, %v671
      %673 = vmatmul.bf16.gmra.mxu0 %v585
      %v674 = vpop.f32.mrf.mxu0
      %v675 = vadd.f32 0.0, %v674
      %v676 = vpop.f32.mrf.mxu0
      %v677 = vadd.f32 0.0, %v676
      %678 = vdwg.mxu0
      %v679 = vadd.f32 %v498, %v600
      %v680 = vadd.f32 %v500, %v602
      %v681 = vadd.f32 %v503, %v605
      %v682 = vadd.f32 %v505, %v607
      %v683 = vadd.f32 %v508, %v610
      %v684 = vadd.f32 %v510, %v612
      %v685 = vadd.f32 %v513, %v615
      %v686 = vadd.f32 %v515, %v617
      %v687 = vadd.f32 %v518, %v620
      %v688 = vadd.f32 %v520, %v622
      %v689 = vadd.f32 %v523, %v625
      %v690 = vadd.f32 %v525, %v627
      %v691 = vadd.f32 %v528, %v630
      %v692 = vadd.f32 %v530, %v632
      %v693 = vadd.f32 %v533, %v635
      %v694 = vadd.f32 %v535, %v637
      %v695 = vadd.f32 %v538, %v640
      %v696 = vadd.f32 %v540, %v642
      %v697 = vadd.f32 %v543, %v645
      %v698 = vadd.f32 %v545, %v647
      %v699 = vadd.f32 %v548, %v650
      %v700 = vadd.f32 %v550, %v652
      %v701 = vadd.f32 %v553, %v655
      %v702 = vadd.f32 %v555, %v657
      %v703 = vadd.f32 %v558, %v660
      %v704 = vadd.f32 %v560, %v662
      %v705 = vadd.f32 %v563, %v665
      %v706 = vadd.f32 %v565, %v667
      %v707 = vadd.f32 %v568, %v670
      %v708 = vadd.f32 %v570, %v672
      %v709 = vadd.f32 %v573, %v675
      %v710 = vadd.f32 %v575, %v677
      %v711 = vld [vmem:[%s203] sm:$0xf]
      %v712 = vld [vmem:[%s203 + $0x4] sm:$0xf]
      %v713 = vld [vmem:[%s203 + $0x8] sm:$0x1]
      %v714 = vld [vmem:[%s203 + $0xc] sm:$0xf]
      %v715 = vld [vmem:[%s203 + $0x10] sm:$0xf]
      %v716 = vld [vmem:[%s203 + $0x14] sm:$0x1]
      %v717 = vld [vmem:[%s203 + $0x18] sm:$0xf]
      %v718 = vld [vmem:[%s203 + $0x1c] sm:$0xf]
      %v719 = vld [vmem:[%s203 + $0x20] sm:$0x1]
      %v720 = vld [vmem:[%s203 + $0x24] sm:$0xf]
      %v721 = vld [vmem:[%s203 + $0x28] sm:$0xf]
      %v722 = vld [vmem:[%s203 + $0x2c] sm:$0x1]
      %v723 = vld [vmem:[%s203 + $0x30] sm:$0xf]
      %v724 = vld [vmem:[%s203 + $0x34] sm:$0xf]
      %v725 = vld [vmem:[%s203 + $0x38] sm:$0x1]
      %v726 = vld [vmem:[%s203 + $0x3c] sm:$0xf]
      %v727 = vld [vmem:[%s203 + $0x40] sm:$0xf]
      %v728 = vld [vmem:[%s203 + $0x44] sm:$0x1]
      %v729 = vld [vmem:[%s203 + $0x48] sm:$0xf]
      %v730 = vld [vmem:[%s203 + $0x4c] sm:$0xf]
      %v731 = vld [vmem:[%s203 + $0x50] sm:$0x1]
      %v732 = vld [vmem:[%s203 + $0x54] sm:$0xf]
      %v733 = vld [vmem:[%s203 + $0x58] sm:$0xf]
      %v734 = vld [vmem:[%s203 + $0x5c] sm:$0x1]
      %v735 = vld [vmem:[%s203 + $0x60] sm:$0xf]
      %v736 = vld [vmem:[%s203 + $0x64] sm:$0xf]
      %v737 = vld [vmem:[%s203 + $0x68] sm:$0x1]
      %v738 = vld [vmem:[%s203 + $0x6c] sm:$0xf]
      %v739 = vld [vmem:[%s203 + $0x70] sm:$0xf]
      %v740 = vld [vmem:[%s203 + $0x74] sm:$0x1]
      %v741 = vld [vmem:[%s203 + $0x78] sm:$0xf]
      %v742 = vld [vmem:[%s203 + $0x7c] sm:$0xf]
      %v743 = vld [vmem:[%s203 + $0x80] sm:$0x1]
      %v744 = vld [vmem:[%s203 + $0x84] sm:$0xf]
      %v745 = vld [vmem:[%s203 + $0x88] sm:$0xf]
      %v746 = vld [vmem:[%s203 + $0x8c] sm:$0x1]
      %v747 = vld [vmem:[%s203 + $0x90] sm:$0xf]
      %v748 = vld [vmem:[%s203 + $0x94] sm:$0xf]
      %v749 = vld [vmem:[%s203 + $0x98] sm:$0x1]
      %v750 = vld [vmem:[%s203 + $0x9c] sm:$0xf]
      %v751 = vld [vmem:[%s203 + $0xa0] sm:$0xf]
      %v752 = vld [vmem:[%s203 + $0xa4] sm:$0x1]
      %v753 = vld [vmem:[%s203 + $0xa8] sm:$0xf]
      %v754 = vld [vmem:[%s203 + $0xac] sm:$0xf]
      %v755 = vld [vmem:[%s203 + $0xb0] sm:$0x1]
      %v756 = vld [vmem:[%s203 + $0xb4] sm:$0xf]
      %v757 = vld [vmem:[%s203 + $0xb8] sm:$0xf]
      %v758 = vld [vmem:[%s203 + $0xbc] sm:$0x1]
      %v759 = vld [vmem:[%s203 + $0xc0] sm:$0xf]
      %v760 = vld [vmem:[%s203 + $0xc4] sm:$0xf]
      %v761 = vld [vmem:[%s203 + $0xc8] sm:$0x1]
      %v762 = vld [vmem:[%s203 + $0xcc] sm:$0xf]
      %v763 = vld [vmem:[%s203 + $0xd0] sm:$0xf]
      %v764 = vld [vmem:[%s203 + $0xd4] sm:$0x1]
      %vm765 = vsmask.f32 3328
      %vm766 = vsmask.f32 7440
      %vm767 = vmor %vm765, %vm766
      %v769 = vshrl.u32 %v711, 16
      %v771 = vrot.slane %v769, 4
      %v772 = vshll.u32 %v711, 16
      %v774 = vrot.slane %v772, 5
      %v775 = vor.u32 %v771, %v774
      %v776 = vrot.slane %v775, 4
      %v778 = vshll.u32 %v712, 16
      %v780 = vrot.slane %v778, 5
      %v781 = vsel %vm767, %v776, %v780
      %v782 = vshrl.u32 %v712, 16
      %v784 = vrot.slane %v782, 4
      %v785 = vor.u32 %v784, %v780
      %v786 = vrot.slane %v785, 4
      %v788 = vshll.u32 %v713, 16
      %v790 = vrot.slane %v788, 5
      %v791 = vsel %vm767, %v786, %v790
      %v793 = vshrl.u32 %v714, 16
      %v795 = vrot.slane %v793, 4
      %v796 = vshll.u32 %v714, 16
      %v798 = vrot.slane %v796, 5
      %v799 = vor.u32 %v795, %v798
      %v800 = vrot.slane %v799, 4
      %v802 = vshll.u32 %v715, 16
      %v804 = vrot.slane %v802, 5
      %v805 = vsel %vm767, %v800, %v804
      %v806 = vshrl.u32 %v715, 16
      %v808 = vrot.slane %v806, 4
      %v809 = vor.u32 %v808, %v804
      %v810 = vrot.slane %v809, 4
      %v812 = vshll.u32 %v716, 16
      %v814 = vrot.slane %v812, 5
      %v815 = vsel %vm767, %v810, %v814
      %v817 = vshrl.u32 %v717, 16
      %v819 = vrot.slane %v817, 4
      %v820 = vshll.u32 %v717, 16
      %v822 = vrot.slane %v820, 5
      %v823 = vor.u32 %v819, %v822
      %v824 = vrot.slane %v823, 4
      %v826 = vshll.u32 %v718, 16
      %v828 = vrot.slane %v826, 5
      %v829 = vsel %vm767, %v824, %v828
      %v830 = vshrl.u32 %v718, 16
      %v832 = vrot.slane %v830, 4
      %v833 = vor.u32 %v832, %v828
      %v834 = vrot.slane %v833, 4
      %v836 = vshll.u32 %v719, 16
      %v838 = vrot.slane %v836, 5
      %v839 = vsel %vm767, %v834, %v838
      %v841 = vshrl.u32 %v720, 16
      %v843 = vrot.slane %v841, 4
      %v844 = vshll.u32 %v720, 16
      %v846 = vrot.slane %v844, 5
      %v847 = vor.u32 %v843, %v846
      %v848 = vrot.slane %v847, 4
      %v850 = vshll.u32 %v721, 16
      %v852 = vrot.slane %v850, 5
      %v853 = vsel %vm767, %v848, %v852
      %v854 = vshrl.u32 %v721, 16
      %v856 = vrot.slane %v854, 4
      %v857 = vor.u32 %v856, %v852
      %v858 = vrot.slane %v857, 4
      %v860 = vshll.u32 %v722, 16
      %v862 = vrot.slane %v860, 5
      %v863 = vsel %vm767, %v858, %v862
      %v865 = vshrl.u32 %v723, 16
      %v867 = vrot.slane %v865, 4
      %v868 = vshll.u32 %v723, 16
      %v870 = vrot.slane %v868, 5
      %v871 = vor.u32 %v867, %v870
      %v872 = vrot.slane %v871, 4
      %v874 = vshll.u32 %v724, 16
      %v876 = vrot.slane %v874, 5
      %v877 = vsel %vm767, %v872, %v876
      %v878 = vshrl.u32 %v724, 16
      %v880 = vrot.slane %v878, 4
      %v881 = vor.u32 %v880, %v876
      %v882 = vrot.slane %v881, 4
      %v884 = vshll.u32 %v725, 16
      %v886 = vrot.slane %v884, 5
      %v887 = vsel %vm767, %v882, %v886
      %v889 = vshrl.u32 %v726, 16
      %v891 = vrot.slane %v889, 4
      %v892 = vshll.u32 %v726, 16
      %v894 = vrot.slane %v892, 5
      %v895 = vor.u32 %v891, %v894
      %v896 = vrot.slane %v895, 4
      %v898 = vshll.u32 %v727, 16
      %v900 = vrot.slane %v898, 5
      %v901 = vsel %vm767, %v896, %v900
      %v902 = vshrl.u32 %v727, 16
      %v904 = vrot.slane %v902, 4
      %v905 = vor.u32 %v904, %v900
      %v906 = vrot.slane %v905, 4
      %v908 = vshll.u32 %v728, 16
      %v910 = vrot.slane %v908, 5
      %v911 = vsel %vm767, %v906, %v910
      %v913 = vshrl.u32 %v729, 16
      %v915 = vrot.slane %v913, 4
      %v916 = vshll.u32 %v729, 16
      %v918 = vrot.slane %v916, 5
      %v919 = vor.u32 %v915, %v918
      %v920 = vrot.slane %v919, 4
      %v922 = vshll.u32 %v730, 16
      %v924 = vrot.slane %v922, 5
      %v925 = vsel %vm767, %v920, %v924
      %v926 = vshrl.u32 %v730, 16
      %v928 = vrot.slane %v926, 4
      %v929 = vor.u32 %v928, %v924
      %v930 = vrot.slane %v929, 4
      %v932 = vshll.u32 %v731, 16
      %v934 = vrot.slane %v932, 5
      %v935 = vsel %vm767, %v930, %v934
      %v937 = vshrl.u32 %v732, 16
      %v939 = vrot.slane %v937, 4
      %v940 = vshll.u32 %v732, 16
      %v942 = vrot.slane %v940, 5
      %v943 = vor.u32 %v939, %v942
      %v944 = vrot.slane %v943, 4
      %v946 = vshll.u32 %v733, 16
      %v948 = vrot.slane %v946, 5
      %v949 = vsel %vm767, %v944, %v948
      %v950 = vshrl.u32 %v733, 16
      %v952 = vrot.slane %v950, 4
      %v953 = vor.u32 %v952, %v948
      %v954 = vrot.slane %v953, 4
      %v956 = vshll.u32 %v734, 16
      %v958 = vrot.slane %v956, 5
      %v959 = vsel %vm767, %v954, %v958
      %v961 = vshrl.u32 %v735, 16
      %v963 = vrot.slane %v961, 4
      %v964 = vshll.u32 %v735, 16
      %v966 = vrot.slane %v964, 5
      %v967 = vor.u32 %v963, %v966
      %v968 = vrot.slane %v967, 4
      %v970 = vshll.u32 %v736, 16
      %v972 = vrot.slane %v970, 5
      %v973 = vsel %vm767, %v968, %v972
      %v974 = vshrl.u32 %v736, 16
      %v976 = vrot.slane %v974, 4
      %v977 = vor.u32 %v976, %v972
      %v978 = vrot.slane %v977, 4
      %v980 = vshll.u32 %v737, 16
      %v982 = vrot.slane %v980, 5
      %v983 = vsel %vm767, %v978, %v982
      %v985 = vshrl.u32 %v738, 16
      %v987 = vrot.slane %v985, 4
      %v988 = vshll.u32 %v738, 16
      %v990 = vrot.slane %v988, 5
      %v991 = vor.u32 %v987, %v990
      %v992 = vrot.slane %v991, 4
      %v994 = vshll.u32 %v739, 16
      %v996 = vrot.slane %v994, 5
      %v997 = vsel %vm767, %v992, %v996
      %v998 = vshrl.u32 %v739, 16
      %v1000 = vrot.slane %v998, 4
      %v1001 = vor.u32 %v1000, %v996
      %v1002 = vrot.slane %v1001, 4
      %v1004 = vshll.u32 %v740, 16
      %v1006 = vrot.slane %v1004, 5
      %v1007 = vsel %vm767, %v1002, %v1006
      %v1009 = vshrl.u32 %v741, 16
      %v1011 = vrot.slane %v1009, 4
      %v1012 = vshll.u32 %v741, 16
      %v1014 = vrot.slane %v1012, 5
      %v1015 = vor.u32 %v1011, %v1014
      %v1016 = vrot.slane %v1015, 4
      %v1018 = vshll.u32 %v742, 16
      %v1020 = vrot.slane %v1018, 5
      %v1021 = vsel %vm767, %v1016, %v1020
      %v1022 = vshrl.u32 %v742, 16
      %v1024 = vrot.slane %v1022, 4
      %v1025 = vor.u32 %v1024, %v1020
      %v1026 = vrot.slane %v1025, 4
      %v1028 = vshll.u32 %v743, 16
      %v1030 = vrot.slane %v1028, 5
      %v1031 = vsel %vm767, %v1026, %v1030
      %v1033 = vshrl.u32 %v744, 16
      %v1035 = vrot.slane %v1033, 4
      %v1036 = vshll.u32 %v744, 16
      %v1038 = vrot.slane %v1036, 5
      %v1039 = vor.u32 %v1035, %v1038
      %v1040 = vrot.slane %v1039, 4
      %v1042 = vshll.u32 %v745, 16
      %v1044 = vrot.slane %v1042, 5
      %v1045 = vsel %vm767, %v1040, %v1044
      %v1046 = vshrl.u32 %v745, 16
      %v1048 = vrot.slane %v1046, 4
      %v1049 = vor.u32 %v1048, %v1044
      %v1050 = vrot.slane %v1049, 4
      %v1052 = vshll.u32 %v746, 16
      %v1054 = vrot.slane %v1052, 5
      %v1055 = vsel %vm767, %v1050, %v1054
      %v1057 = vshrl.u32 %v747, 16
      %v1059 = vrot.slane %v1057, 4
      %v1060 = vshll.u32 %v747, 16
      %v1062 = vrot.slane %v1060, 5
      %v1063 = vor.u32 %v1059, %v1062
      %v1064 = vrot.slane %v1063, 4
      %v1066 = vshll.u32 %v748, 16
      %v1068 = vrot.slane %v1066, 5
      %v1069 = vsel %vm767, %v1064, %v1068
      %v1070 = vshrl.u32 %v748, 16
      %v1072 = vrot.slane %v1070, 4
      %v1073 = vor.u32 %v1072, %v1068
      %v1074 = vrot.slane %v1073, 4
      %v1076 = vshll.u32 %v749, 16
      %v1078 = vrot.slane %v1076, 5
      %v1079 = vsel %vm767, %v1074, %v1078
      %v1081 = vshrl.u32 %v750, 16
      %v1083 = vrot.slane %v1081, 4
      %v1084 = vshll.u32 %v750, 16
      %v1086 = vrot.slane %v1084, 5
      %v1087 = vor.u32 %v1083, %v1086
      %v1088 = vrot.slane %v1087, 4
      %v1090 = vshll.u32 %v751, 16
      %v1092 = vrot.slane %v1090, 5
      %v1093 = vsel %vm767, %v1088, %v1092
      %v1094 = vshrl.u32 %v751, 16
      %v1096 = vrot.slane %v1094, 4
      %v1097 = vor.u32 %v1096, %v1092
      %v1098 = vrot.slane %v1097, 4
      %v1100 = vshll.u32 %v752, 16
      %v1102 = vrot.slane %v1100, 5
      %v1103 = vsel %vm767, %v1098, %v1102
      %v1105 = vshrl.u32 %v753, 16
      %v1107 = vrot.slane %v1105, 4
      %v1108 = vshll.u32 %v753, 16
      %v1110 = vrot.slane %v1108, 5
      %v1111 = vor.u32 %v1107, %v1110
      %v1112 = vrot.slane %v1111, 4
      %v1114 = vshll.u32 %v754, 16
      %v1116 = vrot.slane %v1114, 5
      %v1117 = vsel %vm767, %v1112, %v1116
      %v1118 = vshrl.u32 %v754, 16
      %v1120 = vrot.slane %v1118, 4
      %v1121 = vor.u32 %v1120, %v1116
      %v1122 = vrot.slane %v1121, 4
      %v1124 = vshll.u32 %v755, 16
      %v1126 = vrot.slane %v1124, 5
      %v1127 = vsel %vm767, %v1122, %v1126
      %v1129 = vshrl.u32 %v756, 16
      %v1131 = vrot.slane %v1129, 4
      %v1132 = vshll.u32 %v756, 16
      %v1134 = vrot.slane %v1132, 5
      %v1135 = vor.u32 %v1131, %v1134
      %v1136 = vrot.slane %v1135, 4
      %v1138 = vshll.u32 %v757, 16
      %v1140 = vrot.slane %v1138, 5
      %v1141 = vsel %vm767, %v1136, %v1140
      %v1142 = vshrl.u32 %v757, 16
      %v1144 = vrot.slane %v1142, 4
      %v1145 = vor.u32 %v1144, %v1140
      %v1146 = vrot.slane %v1145, 4
      %v1148 = vshll.u32 %v758, 16
      %v1150 = vrot.slane %v1148, 5
      %v1151 = vsel %vm767, %v1146, %v1150
      %v1153 = vshrl.u32 %v759, 16
      %v1155 = vrot.slane %v1153, 4
      %v1156 = vshll.u32 %v759, 16
      %v1158 = vrot.slane %v1156, 5
      %v1159 = vor.u32 %v1155, %v1158
      %v1160 = vrot.slane %v1159, 4
      %v1162 = vshll.u32 %v760, 16
      %v1164 = vrot.slane %v1162, 5
      %v1165 = vsel %vm767, %v1160, %v1164
      %v1166 = vshrl.u32 %v760, 16
      %v1168 = vrot.slane %v1166, 4
      %v1169 = vor.u32 %v1168, %v1164
      %v1170 = vrot.slane %v1169, 4
      %v1172 = vshll.u32 %v761, 16
      %v1174 = vrot.slane %v1172, 5
      %v1175 = vsel %vm767, %v1170, %v1174
      %v1177 = vshrl.u32 %v762, 16
      %v1179 = vrot.slane %v1177, 4
      %v1180 = vshll.u32 %v762, 16
      %v1182 = vrot.slane %v1180, 5
      %v1183 = vor.u32 %v1179, %v1182
      %v1184 = vrot.slane %v1183, 4
      %v1186 = vshll.u32 %v763, 16
      %v1188 = vrot.slane %v1186, 5
      %v1189 = vsel %vm767, %v1184, %v1188
      %v1190 = vshrl.u32 %v763, 16
      %v1192 = vrot.slane %v1190, 4
      %v1193 = vor.u32 %v1192, %v1188
      %v1194 = vrot.slane %v1193, 4
      %v1196 = vshll.u32 %v764, 16
      %v1198 = vrot.slane %v1196, 5
      %v1199 = vsel %vm767, %v1194, %v1198
      %s1200 = scalar_lea.vmem %s1, 2
      %v1201 = vld [vmem:[%s1200] sm:$0x3]
      %v1202 = vunpack.c.l.b16 %v781
      %v1203 = vunpack.c.l.b16 %v791
      %v1204 = vunpack.c.l.b16 %v805
      %v1205 = vunpack.c.l.b16 %v815
      %v1206 = vunpack.c.l.b16 %v829
      %v1207 = vunpack.c.l.b16 %v839
      %v1208 = vunpack.c.l.b16 %v853
      %v1209 = vunpack.c.l.b16 %v863
      %v1210 = vunpack.c.l.b16 %v877
      %v1211 = vunpack.c.l.b16 %v887
      %v1212 = vunpack.c.l.b16 %v901
      %v1213 = vunpack.c.l.b16 %v911
      %v1214 = vunpack.c.l.b16 %v925
      %v1215 = vunpack.c.l.b16 %v935
      %v1216 = vunpack.c.l.b16 %v949
      %v1217 = vunpack.c.l.b16 %v959
      %v1218 = vunpack.c.l.b16 %v973
      %v1219 = vunpack.c.l.b16 %v983
      %v1220 = vunpack.c.l.b16 %v997
      %v1221 = vunpack.c.l.b16 %v1007
      %v1222 = vunpack.c.l.b16 %v1021
      %v1223 = vunpack.c.l.b16 %v1031
      %v1224 = vunpack.c.l.b16 %v1045
      %v1225 = vunpack.c.l.b16 %v1055
      %v1226 = vunpack.c.l.b16 %v1069
      %v1227 = vunpack.c.l.b16 %v1079
      %v1228 = vunpack.c.l.b16 %v1093
      %v1229 = vunpack.c.l.b16 %v1103
      %v1230 = vunpack.c.l.b16 %v1117
      %v1231 = vunpack.c.l.b16 %v1127
      %v1232 = vunpack.c.l.b16 %v1141
      %v1233 = vunpack.c.l.b16 %v1151
      %v1234 = vpack.c.b16 %v1203, %v1202
      %v1235 = vpack.c.b16 %v1205, %v1204
      %v1236 = vpack.c.b16 %v1207, %v1206
      %v1237 = vpack.c.b16 %v1209, %v1208
      %v1238 = vpack.c.b16 %v1211, %v1210
      %v1239 = vpack.c.b16 %v1213, %v1212
      %v1240 = vpack.c.b16 %v1215, %v1214
      %v1241 = vpack.c.b16 %v1217, %v1216
      %v1242 = vpack.c.b16 %v1219, %v1218
      %v1243 = vpack.c.b16 %v1221, %v1220
      %v1244 = vpack.c.b16 %v1223, %v1222
      %v1245 = vpack.c.b16 %v1225, %v1224
      %v1246 = vpack.c.b16 %v1227, %v1226
      %v1247 = vpack.c.b16 %v1229, %v1228
      %v1248 = vpack.c.b16 %v1231, %v1230
      %v1249 = vpack.c.b16 %v1233, %v1232
      %v1251 = vsel %vm335, %v1234, 0
      %v1254 = vsel %vm335, %v1235, 0
      %v1257 = vsel %vm335, %v1236, 0
      %v1260 = vsel %vm335, %v1237, 0
      %v1263 = vsel %vm335, %v1238, 0
      %v1266 = vsel %vm335, %v1239, 0
      %v1269 = vsel %vm335, %v1240, 0
      %v1272 = vsel %vm335, %v1241, 0
      %v1275 = vsel %vm335, %v1242, 0
      %v1278 = vsel %vm335, %v1243, 0
      %v1281 = vsel %vm335, %v1244, 0
      %v1284 = vsel %vm335, %v1245, 0
      %v1287 = vsel %vm335, %v1246, 0
      %v1290 = vsel %vm335, %v1247, 0
      %v1293 = vsel %vm335, %v1248, 0
      %v1296 = vsel %vm335, %v1249, 0
      %v1299 = vsel %vm384, %v1201, 0
      %1301 = vmatpush.bf16.msra.mxu0 0
      %1302 = vmatpush.bf16.msra.mxu0 0
      %1303 = vmatpush.bf16.msra.mxu0 0
      %1304 = vmatpush.bf16.msra.mxu0 0
      %1305 = vmatpush.bf16.msra.mxu0 0
      %1306 = vmatpush.bf16.msra.mxu0 0
      %1307 = vmatpush.bf16.msra.mxu0 0
      %1308 = vmatpush.bf16.msra.mxu0 %v1299
      %1309 = vmatmul.bf16.gmra.mxu0 %v1251
      %v1310 = vpop.f32.mrf.mxu0
      %v1311 = vadd.f32 0.0, %v1310
      %v1312 = vpop.f32.mrf.mxu0
      %v1313 = vadd.f32 0.0, %v1312
      %1314 = vmatmul.bf16.gmra.mxu0 %v1254
      %v1315 = vpop.f32.mrf.mxu0
      %v1316 = vadd.f32 0.0, %v1315
      %v1317 = vpop.f32.mrf.mxu0
      %v1318 = vadd.f32 0.0, %v1317
      %1319 = vmatmul.bf16.gmra.mxu0 %v1257
      %v1320 = vpop.f32.mrf.mxu0
      %v1321 = vadd.f32 0.0, %v1320
      %v1322 = vpop.f32.mrf.mxu0
      %v1323 = vadd.f32 0.0, %v1322
      %1324 = vmatmul.bf16.gmra.mxu0 %v1260
      %v1325 = vpop.f32.mrf.mxu0
      %v1326 = vadd.f32 0.0, %v1325
      %v1327 = vpop.f32.mrf.mxu0
      %v1328 = vadd.f32 0.0, %v1327
      %1329 = vmatmul.bf16.gmra.mxu0 %v1263
      %v1330 = vpop.f32.mrf.mxu0
      %v1331 = vadd.f32 0.0, %v1330
      %v1332 = vpop.f32.mrf.mxu0
      %v1333 = vadd.f32 0.0, %v1332
      %1334 = vmatmul.bf16.gmra.mxu0 %v1266
      %v1335 = vpop.f32.mrf.mxu0
      %v1336 = vadd.f32 0.0, %v1335
      %v1337 = vpop.f32.mrf.mxu0
      %v1338 = vadd.f32 0.0, %v1337
      %1339 = vmatmul.bf16.gmra.mxu0 %v1269
      %v1340 = vpop.f32.mrf.mxu0
      %v1341 = vadd.f32 0.0, %v1340
      %v1342 = vpop.f32.mrf.mxu0
      %v1343 = vadd.f32 0.0, %v1342
      %1344 = vmatmul.bf16.gmra.mxu0 %v1272
      %v1345 = vpop.f32.mrf.mxu0
      %v1346 = vadd.f32 0.0, %v1345
      %v1347 = vpop.f32.mrf.mxu0
      %v1348 = vadd.f32 0.0, %v1347
      %1349 = vmatmul.bf16.gmra.mxu0 %v1275
      %v1350 = vpop.f32.mrf.mxu0
      %v1351 = vadd.f32 0.0, %v1350
      %v1352 = vpop.f32.mrf.mxu0
      %v1353 = vadd.f32 0.0, %v1352
      %1354 = vmatmul.bf16.gmra.mxu0 %v1278
      %v1355 = vpop.f32.mrf.mxu0
      %v1356 = vadd.f32 0.0, %v1355
      %v1357 = vpop.f32.mrf.mxu0
      %v1358 = vadd.f32 0.0, %v1357
      %1359 = vmatmul.bf16.gmra.mxu0 %v1281
      %v1360 = vpop.f32.mrf.mxu0
      %v1361 = vadd.f32 0.0, %v1360
      %v1362 = vpop.f32.mrf.mxu0
      %v1363 = vadd.f32 0.0, %v1362
      %1364 = vmatmul.bf16.gmra.mxu0 %v1284
      %v1365 = vpop.f32.mrf.mxu0
      %v1366 = vadd.f32 0.0, %v1365
      %v1367 = vpop.f32.mrf.mxu0
      %v1368 = vadd.f32 0.0, %v1367
      %1369 = vmatmul.bf16.gmra.mxu0 %v1287
      %v1370 = vpop.f32.mrf.mxu0
      %v1371 = vadd.f32 0.0, %v1370
      %v1372 = vpop.f32.mrf.mxu0
      %v1373 = vadd.f32 0.0, %v1372
      %1374 = vmatmul.bf16.gmra.mxu0 %v1290
      %v1375 = vpop.f32.mrf.mxu0
      %v1376 = vadd.f32 0.0, %v1375
      %v1377 = vpop.f32.mrf.mxu0
      %v1378 = vadd.f32 0.0, %v1377
      %1379 = vmatmul.bf16.gmra.mxu0 %v1293
      %v1380 = vpop.f32.mrf.mxu0
      %v1381 = vadd.f32 0.0, %v1380
      %v1382 = vpop.f32.mrf.mxu0
      %v1383 = vadd.f32 0.0, %v1382
      %1384 = vmatmul.bf16.gmra.mxu0 %v1296
      %v1385 = vpop.f32.mrf.mxu0
      %v1386 = vadd.f32 0.0, %v1385
      %v1387 = vpop.f32.mrf.mxu0
      %v1388 = vadd.f32 0.0, %v1387
      %1389 = vdwg.mxu0
      %v1390 = vadd.f32 %v679, %v1311
      %v1391 = vadd.f32 %v680, %v1313
      %v1392 = vadd.f32 %v681, %v1316
      %v1393 = vadd.f32 %v682, %v1318
      %v1394 = vadd.f32 %v683, %v1321
      %v1395 = vadd.f32 %v684, %v1323
      %v1396 = vadd.f32 %v685, %v1326
      %v1397 = vadd.f32 %v686, %v1328
      %v1398 = vadd.f32 %v687, %v1331
      %v1399 = vadd.f32 %v688, %v1333
      %v1400 = vadd.f32 %v689, %v1336
      %v1401 = vadd.f32 %v690, %v1338
      %v1402 = vadd.f32 %v691, %v1341
      %v1403 = vadd.f32 %v692, %v1343
      %v1404 = vadd.f32 %v693, %v1346
      %v1405 = vadd.f32 %v694, %v1348
      %v1406 = vadd.f32 %v695, %v1351
      %v1407 = vadd.f32 %v696, %v1353
      %v1408 = vadd.f32 %v697, %v1356
      %v1409 = vadd.f32 %v698, %v1358
      %v1410 = vadd.f32 %v699, %v1361
      %v1411 = vadd.f32 %v700, %v1363
      %v1412 = vadd.f32 %v701, %v1366
      %v1413 = vadd.f32 %v702, %v1368
      %v1414 = vadd.f32 %v703, %v1371
      %v1415 = vadd.f32 %v704, %v1373
      %v1416 = vadd.f32 %v705, %v1376
      %v1417 = vadd.f32 %v706, %v1378
      %v1418 = vadd.f32 %v707, %v1381
      %v1419 = vadd.f32 %v708, %v1383
      %v1420 = vadd.f32 %v709, %v1386
      %v1421 = vadd.f32 %v710, %v1388
      %s1422 = scalar_lea.vmem %s1, 8
      %v1423 = vld [vmem:[%s1422] sm:$0x3]
      %v1424 = vunpack.c.l.b16 %v1165
      %v1425 = vunpack.c.l.b16 %v1175
      %v1426 = vpack.c.b16 %v1425, %v1424
      %v1428 = vsel %vm335, %v1426, 0
      %v1431 = vsel %vm384, %v1423, 0
      %1433 = vmatpush.bf16.msra.mxu0 0
      %1434 = vmatpush.bf16.msra.mxu0 0
      %1435 = vmatpush.bf16.msra.mxu0 0
      %1436 = vmatpush.bf16.msra.mxu0 0
      %1437 = vmatpush.bf16.msra.mxu0 0
      %1438 = vmatpush.bf16.msra.mxu0 0
      %1439 = vmatpush.bf16.msra.mxu0 0
      %1440 = vmatpush.bf16.msra.mxu0 %v1431
      %1441 = vmatmul.bf16.gmra.mxu0 %v1254
      %v1442 = vpop.f32.mrf.mxu0
      %v1443 = vadd.f32 0.0, %v1442
      %v1444 = vpop.f32.mrf.mxu0
      %v1445 = vadd.f32 0.0, %v1444
      %1446 = vmatmul.bf16.gmra.mxu0 %v1257
      %v1447 = vpop.f32.mrf.mxu0
      %v1448 = vadd.f32 0.0, %v1447
      %v1449 = vpop.f32.mrf.mxu0
      %v1450 = vadd.f32 0.0, %v1449
      %1451 = vmatmul.bf16.gmra.mxu0 %v1260
      %v1452 = vpop.f32.mrf.mxu0
      %v1453 = vadd.f32 0.0, %v1452
      %v1454 = vpop.f32.mrf.mxu0
      %v1455 = vadd.f32 0.0, %v1454
      %1456 = vmatmul.bf16.gmra.mxu0 %v1263
      %v1457 = vpop.f32.mrf.mxu0
      %v1458 = vadd.f32 0.0, %v1457
      %v1459 = vpop.f32.mrf.mxu0
      %v1460 = vadd.f32 0.0, %v1459
      %1461 = vmatmul.bf16.gmra.mxu0 %v1266
      %v1462 = vpop.f32.mrf.mxu0
      %v1463 = vadd.f32 0.0, %v1462
      %v1464 = vpop.f32.mrf.mxu0
      %v1465 = vadd.f32 0.0, %v1464
      %1466 = vmatmul.bf16.gmra.mxu0 %v1269
      %v1467 = vpop.f32.mrf.mxu0
      %v1468 = vadd.f32 0.0, %v1467
      %v1469 = vpop.f32.mrf.mxu0
      %v1470 = vadd.f32 0.0, %v1469
      %1471 = vmatmul.bf16.gmra.mxu0 %v1272
      %v1472 = vpop.f32.mrf.mxu0
      %v1473 = vadd.f32 0.0, %v1472
      %v1474 = vpop.f32.mrf.mxu0
      %v1475 = vadd.f32 0.0, %v1474
      %1476 = vmatmul.bf16.gmra.mxu0 %v1275
      %v1477 = vpop.f32.mrf.mxu0
      %v1478 = vadd.f32 0.0, %v1477
      %v1479 = vpop.f32.mrf.mxu0
      %v1480 = vadd.f32 0.0, %v1479
      %1481 = vmatmul.bf16.gmra.mxu0 %v1278
      %v1482 = vpop.f32.mrf.mxu0
      %v1483 = vadd.f32 0.0, %v1482
      %v1484 = vpop.f32.mrf.mxu0
      %v1485 = vadd.f32 0.0, %v1484
      %1486 = vmatmul.bf16.gmra.mxu0 %v1281
      %v1487 = vpop.f32.mrf.mxu0
      %v1488 = vadd.f32 0.0, %v1487
      %v1489 = vpop.f32.mrf.mxu0
      %v1490 = vadd.f32 0.0, %v1489
      %1491 = vmatmul.bf16.gmra.mxu0 %v1284
      %v1492 = vpop.f32.mrf.mxu0
      %v1493 = vadd.f32 0.0, %v1492
      %v1494 = vpop.f32.mrf.mxu0
      %v1495 = vadd.f32 0.0, %v1494
      %1496 = vmatmul.bf16.gmra.mxu0 %v1287
      %v1497 = vpop.f32.mrf.mxu0
      %v1498 = vadd.f32 0.0, %v1497
      %v1499 = vpop.f32.mrf.mxu0
      %v1500 = vadd.f32 0.0, %v1499
      %1501 = vmatmul.bf16.gmra.mxu0 %v1290
      %v1502 = vpop.f32.mrf.mxu0
      %v1503 = vadd.f32 0.0, %v1502
      %v1504 = vpop.f32.mrf.mxu0
      %v1505 = vadd.f32 0.0, %v1504
      %1506 = vmatmul.bf16.gmra.mxu0 %v1293
      %v1507 = vpop.f32.mrf.mxu0
      %v1508 = vadd.f32 0.0, %v1507
      %v1509 = vpop.f32.mrf.mxu0
      %v1510 = vadd.f32 0.0, %v1509
      %1511 = vmatmul.bf16.gmra.mxu0 %v1296
      %v1512 = vpop.f32.mrf.mxu0
      %v1513 = vadd.f32 0.0, %v1512
      %v1514 = vpop.f32.mrf.mxu0
      %v1515 = vadd.f32 0.0, %v1514
      %1516 = vmatmul.bf16.gmra.mxu0 %v1428
      %v1517 = vpop.f32.mrf.mxu0
      %v1518 = vadd.f32 0.0, %v1517
      %v1519 = vpop.f32.mrf.mxu0
      %v1520 = vadd.f32 0.0, %v1519
      %1521 = vdwg.mxu0
      %v1522 = vadd.f32 %v1390, %v1443
      %v1523 = vadd.f32 %v1391, %v1445
      %v1524 = vadd.f32 %v1392, %v1448
      %v1525 = vadd.f32 %v1393, %v1450
      %v1526 = vadd.f32 %v1394, %v1453
      %v1527 = vadd.f32 %v1395, %v1455
      %v1528 = vadd.f32 %v1396, %v1458
      %v1529 = vadd.f32 %v1397, %v1460
      %v1530 = vadd.f32 %v1398, %v1463
      %v1531 = vadd.f32 %v1399, %v1465
      %v1532 = vadd.f32 %v1400, %v1468
      %v1533 = vadd.f32 %v1401, %v1470
      %v1534 = vadd.f32 %v1402, %v1473
      %v1535 = vadd.f32 %v1403, %v1475
      %v1536 = vadd.f32 %v1404, %v1478
      %v1537 = vadd.f32 %v1405, %v1480
      %v1538 = vadd.f32 %v1406, %v1483
      %v1539 = vadd.f32 %v1407, %v1485
      %v1540 = vadd.f32 %v1408, %v1488
      %v1541 = vadd.f32 %v1409, %v1490
      %v1542 = vadd.f32 %v1410, %v1493
      %v1543 = vadd.f32 %v1411, %v1495
      %v1544 = vadd.f32 %v1412, %v1498
      %v1545 = vadd.f32 %v1413, %v1500
      %v1546 = vadd.f32 %v1414, %v1503
      %v1547 = vadd.f32 %v1415, %v1505
      %v1548 = vadd.f32 %v1416, %v1508
      %v1549 = vadd.f32 %v1417, %v1510
      %v1550 = vadd.f32 %v1418, %v1513
      %v1551 = vadd.f32 %v1419, %v1515
      %v1552 = vadd.f32 %v1420, %v1518
      %v1553 = vadd.f32 %v1421, %v1520
      %s1554 = scalar_lea.vmem %s1, 14
      %v1555 = vld [vmem:[%s1554] sm:$0x3]
      %v1556 = vunpack.c.l.b16 %v1189
      %v1557 = vunpack.c.l.b16 %v1199
      %v1558 = vpack.c.b16 %v1557, %v1556
      %v1560 = vsel %vm335, %v1558, 0
      %v1563 = vsel %vm384, %v1555, 0
      %1565 = vmatpush.bf16.msra.mxu0 0
      %1566 = vmatpush.bf16.msra.mxu0 0
      %1567 = vmatpush.bf16.msra.mxu0 0
      %1568 = vmatpush.bf16.msra.mxu0 0
      %1569 = vmatpush.bf16.msra.mxu0 0
      %1570 = vmatpush.bf16.msra.mxu0 0
      %1571 = vmatpush.bf16.msra.mxu0 0
      %1572 = vmatpush.bf16.msra.mxu0 %v1563
      %1573 = vmatmul.bf16.gmra.mxu0 %v1257
      %v1574 = vpop.f32.mrf.mxu0
      %v1575 = vadd.f32 0.0, %v1574
      %v1576 = vpop.f32.mrf.mxu0
      %v1577 = vadd.f32 0.0, %v1576
      %1578 = vmatmul.bf16.gmra.mxu0 %v1260
      %v1579 = vpop.f32.mrf.mxu0
      %v1580 = vadd.f32 0.0, %v1579
      %v1581 = vpop.f32.mrf.mxu0
      %v1582 = vadd.f32 0.0, %v1581
      %1583 = vmatmul.bf16.gmra.mxu0 %v1263
      %v1584 = vpop.f32.mrf.mxu0
      %v1585 = vadd.f32 0.0, %v1584
      %v1586 = vpop.f32.mrf.mxu0
      %v1587 = vadd.f32 0.0, %v1586
      %1588 = vmatmul.bf16.gmra.mxu0 %v1266
      %v1589 = vpop.f32.mrf.mxu0
      %v1590 = vadd.f32 0.0, %v1589
      %v1591 = vpop.f32.mrf.mxu0
      %v1592 = vadd.f32 0.0, %v1591
      %1593 = vmatmul.bf16.gmra.mxu0 %v1269
      %v1594 = vpop.f32.mrf.mxu0
      %v1595 = vadd.f32 0.0, %v1594
      %v1596 = vpop.f32.mrf.mxu0
      %v1597 = vadd.f32 0.0, %v1596
      %1598 = vmatmul.bf16.gmra.mxu0 %v1272
      %v1599 = vpop.f32.mrf.mxu0
      %v1600 = vadd.f32 0.0, %v1599
      %v1601 = vpop.f32.mrf.mxu0
      %v1602 = vadd.f32 0.0, %v1601
      %1603 = vmatmul.bf16.gmra.mxu0 %v1275
      %v1604 = vpop.f32.mrf.mxu0
      %v1605 = vadd.f32 0.0, %v1604
      %v1606 = vpop.f32.mrf.mxu0
      %v1607 = vadd.f32 0.0, %v1606
      %1608 = vmatmul.bf16.gmra.mxu0 %v1278
      %v1609 = vpop.f32.mrf.mxu0
      %v1610 = vadd.f32 0.0, %v1609
      %v1611 = vpop.f32.mrf.mxu0
      %v1612 = vadd.f32 0.0, %v1611
      %1613 = vmatmul.bf16.gmra.mxu0 %v1281
      %v1614 = vpop.f32.mrf.mxu0
      %v1615 = vadd.f32 0.0, %v1614
      %v1616 = vpop.f32.mrf.mxu0
      %v1617 = vadd.f32 0.0, %v1616
      %1618 = vmatmul.bf16.gmra.mxu0 %v1284
      %v1619 = vpop.f32.mrf.mxu0
      %v1620 = vadd.f32 0.0, %v1619
      %v1621 = vpop.f32.mrf.mxu0
      %v1622 = vadd.f32 0.0, %v1621
      %1623 = vmatmul.bf16.gmra.mxu0 %v1287
      %v1624 = vpop.f32.mrf.mxu0
      %v1625 = vadd.f32 0.0, %v1624
      %v1626 = vpop.f32.mrf.mxu0
      %v1627 = vadd.f32 0.0, %v1626
      %1628 = vmatmul.bf16.gmra.mxu0 %v1290
      %v1629 = vpop.f32.mrf.mxu0
      %v1630 = vadd.f32 0.0, %v1629
      %v1631 = vpop.f32.mrf.mxu0
      %v1632 = vadd.f32 0.0, %v1631
      %1633 = vmatmul.bf16.gmra.mxu0 %v1293
      %v1634 = vpop.f32.mrf.mxu0
      %v1635 = vadd.f32 0.0, %v1634
      %v1636 = vpop.f32.mrf.mxu0
      %v1637 = vadd.f32 0.0, %v1636
      %1638 = vmatmul.bf16.gmra.mxu0 %v1296
      %v1639 = vpop.f32.mrf.mxu0
      %v1640 = vadd.f32 0.0, %v1639
      %v1641 = vpop.f32.mrf.mxu0
      %v1642 = vadd.f32 0.0, %v1641
      %1643 = vmatmul.bf16.gmra.mxu0 %v1428
      %v1644 = vpop.f32.mrf.mxu0
      %v1645 = vadd.f32 0.0, %v1644
      %v1646 = vpop.f32.mrf.mxu0
      %v1647 = vadd.f32 0.0, %v1646
      %1648 = vmatmul.bf16.gmra.mxu0 %v1560
      %v1649 = vpop.f32.mrf.mxu0
      %v1650 = vadd.f32 0.0, %v1649
      %v1651 = vpop.f32.mrf.mxu0
      %v1652 = vadd.f32 0.0, %v1651
      %1653 = vdwg.mxu0
      %v1654 = vadd.f32 %v1522, %v1575
      %v1655 = vadd.f32 %v1523, %v1577
      %v1656 = vadd.f32 %v1524, %v1580
      %v1657 = vadd.f32 %v1525, %v1582
      %v1658 = vadd.f32 %v1526, %v1585
      %v1659 = vadd.f32 %v1527, %v1587
      %v1660 = vadd.f32 %v1528, %v1590
      %v1661 = vadd.f32 %v1529, %v1592
      %v1662 = vadd.f32 %v1530, %v1595
      %v1663 = vadd.f32 %v1531, %v1597
      %v1664 = vadd.f32 %v1532, %v1600
      %v1665 = vadd.f32 %v1533, %v1602
      %v1666 = vadd.f32 %v1534, %v1605
      %v1667 = vadd.f32 %v1535, %v1607
      %v1668 = vadd.f32 %v1536, %v1610
      %v1669 = vadd.f32 %v1537, %v1612
      %v1670 = vadd.f32 %v1538, %v1615
      %v1671 = vadd.f32 %v1539, %v1617
      %v1672 = vadd.f32 %v1540, %v1620
      %v1673 = vadd.f32 %v1541, %v1622
      %v1674 = vadd.f32 %v1542, %v1625
      %v1675 = vadd.f32 %v1543, %v1627
      %v1676 = vadd.f32 %v1544, %v1630
      %v1677 = vadd.f32 %v1545, %v1632
      %v1678 = vadd.f32 %v1546, %v1635
      %v1679 = vadd.f32 %v1547, %v1637
      %v1680 = vadd.f32 %v1548, %v1640
      %v1681 = vadd.f32 %v1549, %v1642
      %v1682 = vadd.f32 %v1550, %v1645
      %v1683 = vadd.f32 %v1551, %v1647
      %v1684 = vadd.f32 %v1552, %v1650
      %v1685 = vadd.f32 %v1553, %v1652
      %v1686 = vld [vmem:[%s203] sm:$0xe]
      %v1687 = vld [vmem:[%s203 + $0xc] sm:$0xe]
      %v1688 = vld [vmem:[%s203 + $0x18] sm:$0xe]
      %v1689 = vld [vmem:[%s203 + $0x24] sm:$0xe]
      %v1690 = vld [vmem:[%s203 + $0x30] sm:$0xe]
      %v1691 = vld [vmem:[%s203 + $0x3c] sm:$0xe]
      %v1692 = vld [vmem:[%s203 + $0x48] sm:$0xe]
      %v1693 = vld [vmem:[%s203 + $0x54] sm:$0xe]
      %v1694 = vld [vmem:[%s203 + $0x60] sm:$0xe]
      %v1695 = vld [vmem:[%s203 + $0x6c] sm:$0xe]
      %v1696 = vld [vmem:[%s203 + $0x78] sm:$0xe]
      %v1697 = vld [vmem:[%s203 + $0x84] sm:$0xe]
      %v1698 = vld [vmem:[%s203 + $0x90] sm:$0xe]
      %v1699 = vld [vmem:[%s203 + $0x9c] sm:$0xe]
      %v1700 = vld [vmem:[%s203 + $0xa8] sm:$0xe]
      %v1701 = vld [vmem:[%s203 + $0xb4] sm:$0xe]
      %v1702 = vld [vmem:[%s203 + $0xc0] sm:$0xe]
      %v1703 = vld [vmem:[%s203 + $0xcc] sm:$0xe]
      %vm1758 = vcmask 1042432
      %vm1759 = vcmask 1046532
      %vm1760 = vmor %vm1758, %vm1759
      %v1761 = vrot.slane %v1686, 5
      %v1762 = vrot.slane %v1761, 4
      %v1763 = vrot.slane %v712, 5
      %v1764 = vsel %vm1760, %v1762, %v1763
      %v1765 = vrot.slane %v1763, 4
      %v1766 = vrot.slane %v713, 5
      %v1767 = vsel %vm1760, %v1765, %v1766
      %v1768 = vrot.slane %v1687, 5
      %v1769 = vrot.slane %v1768, 4
      %v1770 = vrot.slane %v715, 5
      %v1771 = vsel %vm1760, %v1769, %v1770
      %v1772 = vrot.slane %v1770, 4
      %v1773 = vrot.slane %v716, 5
      %v1774 = vsel %vm1760, %v1772, %v1773
      %v1775 = vrot.slane %v1688, 5
      %v1776 = vrot.slane %v1775, 4
      %v1777 = vrot.slane %v718, 5
      %v1778 = vsel %vm1760, %v1776, %v1777
      %v1779 = vrot.slane %v1777, 4
      %v1780 = vrot.slane %v719, 5
      %v1781 = vsel %vm1760, %v1779, %v1780
      %v1782 = vrot.slane %v1689, 5
      %v1783 = vrot.slane %v1782, 4
      %v1784 = vrot.slane %v721, 5
      %v1785 = vsel %vm1760, %v1783, %v1784
      %v1786 = vrot.slane %v1784, 4
      %v1787 = vrot.slane %v722, 5
      %v1788 = vsel %vm1760, %v1786, %v1787
      %v1789 = vrot.slane %v1690, 5
      %v1790 = vrot.slane %v1789, 4
      %v1791 = vrot.slane %v724, 5
      %v1792 = vsel %vm1760, %v1790, %v1791
      %v1793 = vrot.slane %v1791, 4
      %v1794 = vrot.slane %v725, 5
      %v1795 = vsel %vm1760, %v1793, %v1794
      %v1796 = vrot.slane %v1691, 5
      %v1797 = vrot.slane %v1796, 4
      %v1798 = vrot.slane %v727, 5
      %v1799 = vsel %vm1760, %v1797, %v1798
      %v1800 = vrot.slane %v1798, 4
      %v1801 = vrot.slane %v728, 5
      %v1802 = vsel %vm1760, %v1800, %v1801
      %v1803 = vrot.slane %v1692, 5
      %v1804 = vrot.slane %v1803, 4
      %v1805 = vrot.slane %v730, 5
      %v1806 = vsel %vm1760, %v1804, %v1805
      %v1807 = vrot.slane %v1805, 4
      %v1808 = vrot.slane %v731, 5
      %v1809 = vsel %vm1760, %v1807, %v1808
      %v1810 = vrot.slane %v1693, 5
      %v1811 = vrot.slane %v1810, 4
      %v1812 = vrot.slane %v733, 5
      %v1813 = vsel %vm1760, %v1811, %v1812
      %v1814 = vrot.slane %v1812, 4
      %v1815 = vrot.slane %v734, 5
      %v1816 = vsel %vm1760, %v1814, %v1815
      %v1817 = vrot.slane %v1694, 5
      %v1818 = vrot.slane %v1817, 4
      %v1819 = vrot.slane %v736, 5
      %v1820 = vsel %vm1760, %v1818, %v1819
      %v1821 = vrot.slane %v1819, 4
      %v1822 = vrot.slane %v737, 5
      %v1823 = vsel %vm1760, %v1821, %v1822
      %v1824 = vrot.slane %v1695, 5
      %v1825 = vrot.slane %v1824, 4
      %v1826 = vrot.slane %v739, 5
      %v1827 = vsel %vm1760, %v1825, %v1826
      %v1828 = vrot.slane %v1826, 4
      %v1829 = vrot.slane %v740, 5
      %v1830 = vsel %vm1760, %v1828, %v1829
      %v1831 = vrot.slane %v1696, 5
      %v1832 = vrot.slane %v1831, 4
      %v1833 = vrot.slane %v742, 5
      %v1834 = vsel %vm1760, %v1832, %v1833
      %v1835 = vrot.slane %v1833, 4
      %v1836 = vrot.slane %v743, 5
      %v1837 = vsel %vm1760, %v1835, %v1836
      %v1838 = vrot.slane %v1697, 5
      %v1839 = vrot.slane %v1838, 4
      %v1840 = vrot.slane %v745, 5
      %v1841 = vsel %vm1760, %v1839, %v1840
      %v1842 = vrot.slane %v1840, 4
      %v1843 = vrot.slane %v746, 5
      %v1844 = vsel %vm1760, %v1842, %v1843
      %v1845 = vrot.slane %v1698, 5
      %v1846 = vrot.slane %v1845, 4
      %v1847 = vrot.slane %v748, 5
      %v1848 = vsel %vm1760, %v1846, %v1847
      %v1849 = vrot.slane %v1847, 4
      %v1850 = vrot.slane %v749, 5
      %v1851 = vsel %vm1760, %v1849, %v1850
      %v1852 = vrot.slane %v1699, 5
      %v1853 = vrot.slane %v1852, 4
      %v1854 = vrot.slane %v751, 5
      %v1855 = vsel %vm1760, %v1853, %v1854
      %v1856 = vrot.slane %v1854, 4
      %v1857 = vrot.slane %v752, 5
      %v1858 = vsel %vm1760, %v1856, %v1857
      %v1859 = vrot.slane %v1700, 5
      %v1860 = vrot.slane %v1859, 4
      %v1861 = vrot.slane %v754, 5
      %v1862 = vsel %vm1760, %v1860, %v1861
      %v1863 = vrot.slane %v1861, 4
      %v1864 = vrot.slane %v755, 5
      %v1865 = vsel %vm1760, %v1863, %v1864
      %v1866 = vrot.slane %v1701, 5
      %v1867 = vrot.slane %v1866, 4
      %v1868 = vrot.slane %v757, 5
      %v1869 = vsel %vm1760, %v1867, %v1868
      %v1870 = vrot.slane %v1868, 4
      %v1871 = vrot.slane %v758, 5
      %v1872 = vsel %vm1760, %v1870, %v1871
      %v1873 = vrot.slane %v1702, 5
      %v1874 = vrot.slane %v1873, 4
      %v1875 = vrot.slane %v760, 5
      %v1876 = vsel %vm1760, %v1874, %v1875
      %v1877 = vrot.slane %v1875, 4
      %v1878 = vrot.slane %v761, 5
      %v1879 = vsel %vm1760, %v1877, %v1878
      %v1880 = vrot.slane %v1703, 5
      %v1881 = vrot.slane %v1880, 4
      %v1882 = vrot.slane %v763, 5
      %v1883 = vsel %vm1760, %v1881, %v1882
      %v1884 = vrot.slane %v1882, 4
      %v1885 = vrot.slane %v764, 5
      %v1886 = vsel %vm1760, %v1884, %v1885
      %s1887 = scalar_lea.vmem %s1, 4
      %v1888 = vld [vmem:[%s1887] sm:$0x3]
      %v1889 = vunpack.c.l.b16 %v1764
      %v1890 = vunpack.c.l.b16 %v1767
      %v1891 = vunpack.c.l.b16 %v1771
      %v1892 = vunpack.c.l.b16 %v1774
      %v1893 = vunpack.c.l.b16 %v1778
      %v1894 = vunpack.c.l.b16 %v1781
      %v1895 = vunpack.c.l.b16 %v1785
      %v1896 = vunpack.c.l.b16 %v1788
      %v1897 = vunpack.c.l.b16 %v1792
      %v1898 = vunpack.c.l.b16 %v1795
      %v1899 = vunpack.c.l.b16 %v1799
      %v1900 = vunpack.c.l.b16 %v1802
      %v1901 = vunpack.c.l.b16 %v1806
      %v1902 = vunpack.c.l.b16 %v1809
      %v1903 = vunpack.c.l.b16 %v1813
      %v1904 = vunpack.c.l.b16 %v1816
      %v1905 = vunpack.c.l.b16 %v1820
      %v1906 = vunpack.c.l.b16 %v1823
      %v1907 = vunpack.c.l.b16 %v1827
      %v1908 = vunpack.c.l.b16 %v1830
      %v1909 = vunpack.c.l.b16 %v1834
      %v1910 = vunpack.c.l.b16 %v1837
      %v1911 = vunpack.c.l.b16 %v1841
      %v1912 = vunpack.c.l.b16 %v1844
      %v1913 = vunpack.c.l.b16 %v1848
      %v1914 = vunpack.c.l.b16 %v1851
      %v1915 = vunpack.c.l.b16 %v1855
      %v1916 = vunpack.c.l.b16 %v1858
      %v1917 = vunpack.c.l.b16 %v1862
      %v1918 = vunpack.c.l.b16 %v1865
      %v1919 = vunpack.c.l.b16 %v1869
      %v1920 = vunpack.c.l.b16 %v1872
      %v1921 = vpack.c.b16 %v1890, %v1889
      %v1922 = vpack.c.b16 %v1892, %v1891
      %v1923 = vpack.c.b16 %v1894, %v1893
      %v1924 = vpack.c.b16 %v1896, %v1895
      %v1925 = vpack.c.b16 %v1898, %v1897
      %v1926 = vpack.c.b16 %v1900, %v1899
      %v1927 = vpack.c.b16 %v1902, %v1901
      %v1928 = vpack.c.b16 %v1904, %v1903
      %v1929 = vpack.c.b16 %v1906, %v1905
      %v1930 = vpack.c.b16 %v1908, %v1907
      %v1931 = vpack.c.b16 %v1910, %v1909
      %v1932 = vpack.c.b16 %v1912, %v1911
      %v1933 = vpack.c.b16 %v1914, %v1913
      %v1934 = vpack.c.b16 %v1916, %v1915
      %v1935 = vpack.c.b16 %v1918, %v1917
      %v1936 = vpack.c.b16 %v1920, %v1919
      %v1938 = vsel %vm335, %v1921, 0
      %v1941 = vsel %vm335, %v1922, 0
      %v1944 = vsel %vm335, %v1923, 0
      %v1947 = vsel %vm335, %v1924, 0
      %v1950 = vsel %vm335, %v1925, 0
      %v1953 = vsel %vm335, %v1926, 0
      %v1956 = vsel %vm335, %v1927, 0
      %v1959 = vsel %vm335, %v1928, 0
      %v1962 = vsel %vm335, %v1929, 0
      %v1965 = vsel %vm335, %v1930, 0
      %v1968 = vsel %vm335, %v1931, 0
      %v1971 = vsel %vm335, %v1932, 0
      %v1974 = vsel %vm335, %v1933, 0
      %v1977 = vsel %vm335, %v1934, 0
      %v1980 = vsel %vm335, %v1935, 0
      %v1983 = vsel %vm335, %v1936, 0
      %v1986 = vsel %vm384, %v1888, 0
      %1988 = vmatpush.bf16.msra.mxu0 0
      %1989 = vmatpush.bf16.msra.mxu0 0
      %1990 = vmatpush.bf16.msra.mxu0 0
      %1991 = vmatpush.bf16.msra.mxu0 0
      %1992 = vmatpush.bf16.msra.mxu0 0
      %1993 = vmatpush.bf16.msra.mxu0 0
      %1994 = vmatpush.bf16.msra.mxu0 0
      %1995 = vmatpush.bf16.msra.mxu0 %v1986
      %1996 = vmatmul.bf16.gmra.mxu0 %v1938
      %v1997 = vpop.f32.mrf.mxu0
      %v1998 = vadd.f32 0.0, %v1997
      %v1999 = vpop.f32.mrf.mxu0
      %v2000 = vadd.f32 0.0, %v1999
      %2001 = vmatmul.bf16.gmra.mxu0 %v1941
      %v2002 = vpop.f32.mrf.mxu0
      %v2003 = vadd.f32 0.0, %v2002
      %v2004 = vpop.f32.mrf.mxu0
      %v2005 = vadd.f32 0.0, %v2004
      %2006 = vmatmul.bf16.gmra.mxu0 %v1944
      %v2007 = vpop.f32.mrf.mxu0
      %v2008 = vadd.f32 0.0, %v2007
      %v2009 = vpop.f32.mrf.mxu0
      %v2010 = vadd.f32 0.0, %v2009
      %2011 = vmatmul.bf16.gmra.mxu0 %v1947
      %v2012 = vpop.f32.mrf.mxu0
      %v2013 = vadd.f32 0.0, %v2012
      %v2014 = vpop.f32.mrf.mxu0
      %v2015 = vadd.f32 0.0, %v2014
      %2016 = vmatmul.bf16.gmra.mxu0 %v1950
      %v2017 = vpop.f32.mrf.mxu0
      %v2018 = vadd.f32 0.0, %v2017
      %v2019 = vpop.f32.mrf.mxu0
      %v2020 = vadd.f32 0.0, %v2019
      %2021 = vmatmul.bf16.gmra.mxu0 %v1953
      %v2022 = vpop.f32.mrf.mxu0
      %v2023 = vadd.f32 0.0, %v2022
      %v2024 = vpop.f32.mrf.mxu0
      %v2025 = vadd.f32 0.0, %v2024
      %2026 = vmatmul.bf16.gmra.mxu0 %v1956
      %v2027 = vpop.f32.mrf.mxu0
      %v2028 = vadd.f32 0.0, %v2027
      %v2029 = vpop.f32.mrf.mxu0
      %v2030 = vadd.f32 0.0, %v2029
      %2031 = vmatmul.bf16.gmra.mxu0 %v1959
      %v2032 = vpop.f32.mrf.mxu0
      %v2033 = vadd.f32 0.0, %v2032
      %v2034 = vpop.f32.mrf.mxu0
      %v2035 = vadd.f32 0.0, %v2034
      %2036 = vmatmul.bf16.gmra.mxu0 %v1962
      %v2037 = vpop.f32.mrf.mxu0
      %v2038 = vadd.f32 0.0, %v2037
      %v2039 = vpop.f32.mrf.mxu0
      %v2040 = vadd.f32 0.0, %v2039
      %2041 = vmatmul.bf16.gmra.mxu0 %v1965
      %v2042 = vpop.f32.mrf.mxu0
      %v2043 = vadd.f32 0.0, %v2042
      %v2044 = vpop.f32.mrf.mxu0
      %v2045 = vadd.f32 0.0, %v2044
      %2046 = vmatmul.bf16.gmra.mxu0 %v1968
      %v2047 = vpop.f32.mrf.mxu0
      %v2048 = vadd.f32 0.0, %v2047
      %v2049 = vpop.f32.mrf.mxu0
      %v2050 = vadd.f32 0.0, %v2049
      %2051 = vmatmul.bf16.gmra.mxu0 %v1971
      %v2052 = vpop.f32.mrf.mxu0
      %v2053 = vadd.f32 0.0, %v2052
      %v2054 = vpop.f32.mrf.mxu0
      %v2055 = vadd.f32 0.0, %v2054
      %2056 = vmatmul.bf16.gmra.mxu0 %v1974
      %v2057 = vpop.f32.mrf.mxu0
      %v2058 = vadd.f32 0.0, %v2057
      %v2059 = vpop.f32.mrf.mxu0
      %v2060 = vadd.f32 0.0, %v2059
      %2061 = vmatmul.bf16.gmra.mxu0 %v1977
      %v2062 = vpop.f32.mrf.mxu0
      %v2063 = vadd.f32 0.0, %v2062
      %v2064 = vpop.f32.mrf.mxu0
      %v2065 = vadd.f32 0.0, %v2064
      %2066 = vmatmul.bf16.gmra.mxu0 %v1980
      %v2067 = vpop.f32.mrf.mxu0
      %v2068 = vadd.f32 0.0, %v2067
      %v2069 = vpop.f32.mrf.mxu0
      %v2070 = vadd.f32 0.0, %v2069
      %2071 = vmatmul.bf16.gmra.mxu0 %v1983
      %v2072 = vpop.f32.mrf.mxu0
      %v2073 = vadd.f32 0.0, %v2072
      %v2074 = vpop.f32.mrf.mxu0
      %v2075 = vadd.f32 0.0, %v2074
      %2076 = vdwg.mxu0
      %v2077 = vadd.f32 %v1654, %v1998
      %v2078 = vadd.f32 %v1655, %v2000
      %v2079 = vadd.f32 %v1656, %v2003
      %v2080 = vadd.f32 %v1657, %v2005
      %v2081 = vadd.f32 %v1658, %v2008
      %v2082 = vadd.f32 %v1659, %v2010
      %v2083 = vadd.f32 %v1660, %v2013
      %v2084 = vadd.f32 %v1661, %v2015
      %v2085 = vadd.f32 %v1662, %v2018
      %v2086 = vadd.f32 %v1663, %v2020
      %v2087 = vadd.f32 %v1664, %v2023
      %v2088 = vadd.f32 %v1665, %v2025
      %v2089 = vadd.f32 %v1666, %v2028
      %v2090 = vadd.f32 %v1667, %v2030
      %v2091 = vadd.f32 %v1668, %v2033
      %v2092 = vadd.f32 %v1669, %v2035
      %v2093 = vadd.f32 %v1670, %v2038
      %v2094 = vadd.f32 %v1671, %v2040
      %v2095 = vadd.f32 %v1672, %v2043
      %v2096 = vadd.f32 %v1673, %v2045
      %v2097 = vadd.f32 %v1674, %v2048
      %v2098 = vadd.f32 %v1675, %v2050
      %v2099 = vadd.f32 %v1676, %v2053
      %v2100 = vadd.f32 %v1677, %v2055
      %v2101 = vadd.f32 %v1678, %v2058
      %v2102 = vadd.f32 %v1679, %v2060
      %v2103 = vadd.f32 %v1680, %v2063
      %v2104 = vadd.f32 %v1681, %v2065
      %v2105 = vadd.f32 %v1682, %v2068
      %v2106 = vadd.f32 %v1683, %v2070
      %v2107 = vadd.f32 %v1684, %v2073
      %v2108 = vadd.f32 %v1685, %v2075
      %s2109 = scalar_lea.vmem %s1, 10
      %v2110 = vld [vmem:[%s2109] sm:$0x3]
      %v2111 = vunpack.c.l.b16 %v1876
      %v2112 = vunpack.c.l.b16 %v1879
      %v2113 = vpack.c.b16 %v2112, %v2111
      %v2115 = vsel %vm335, %v2113, 0
      %v2118 = vsel %vm384, %v2110, 0
      %2120 = vmatpush.bf16.msra.mxu0 0
      %2121 = vmatpush.bf16.msra.mxu0 0
      %2122 = vmatpush.bf16.msra.mxu0 0
      %2123 = vmatpush.bf16.msra.mxu0 0
      %2124 = vmatpush.bf16.msra.mxu0 0
      %2125 = vmatpush.bf16.msra.mxu0 0
      %2126 = vmatpush.bf16.msra.mxu0 0
      %2127 = vmatpush.bf16.msra.mxu0 %v2118
      %2128 = vmatmul.bf16.gmra.mxu0 %v1941
      %v2129 = vpop.f32.mrf.mxu0
      %v2130 = vadd.f32 0.0, %v2129
      %v2131 = vpop.f32.mrf.mxu0
      %v2132 = vadd.f32 0.0, %v2131
      %2133 = vmatmul.bf16.gmra.mxu0 %v1944
      %v2134 = vpop.f32.mrf.mxu0
      %v2135 = vadd.f32 0.0, %v2134
      %v2136 = vpop.f32.mrf.mxu0
      %v2137 = vadd.f32 0.0, %v2136
      %2138 = vmatmul.bf16.gmra.mxu0 %v1947
      %v2139 = vpop.f32.mrf.mxu0
      %v2140 = vadd.f32 0.0, %v2139
      %v2141 = vpop.f32.mrf.mxu0
      %v2142 = vadd.f32 0.0, %v2141
      %2143 = vmatmul.bf16.gmra.mxu0 %v1950
      %v2144 = vpop.f32.mrf.mxu0
      %v2145 = vadd.f32 0.0, %v2144
      %v2146 = vpop.f32.mrf.mxu0
      %v2147 = vadd.f32 0.0, %v2146
      %2148 = vmatmul.bf16.gmra.mxu0 %v1953
      %v2149 = vpop.f32.mrf.mxu0
      %v2150 = vadd.f32 0.0, %v2149
      %v2151 = vpop.f32.mrf.mxu0
      %v2152 = vadd.f32 0.0, %v2151
      %2153 = vmatmul.bf16.gmra.mxu0 %v1956
      %v2154 = vpop.f32.mrf.mxu0
      %v2155 = vadd.f32 0.0, %v2154
      %v2156 = vpop.f32.mrf.mxu0
      %v2157 = vadd.f32 0.0, %v2156
      %2158 = vmatmul.bf16.gmra.mxu0 %v1959
      %v2159 = vpop.f32.mrf.mxu0
      %v2160 = vadd.f32 0.0, %v2159
      %v2161 = vpop.f32.mrf.mxu0
      %v2162 = vadd.f32 0.0, %v2161
      %2163 = vmatmul.bf16.gmra.mxu0 %v1962
      %v2164 = vpop.f32.mrf.mxu0
      %v2165 = vadd.f32 0.0, %v2164
      %v2166 = vpop.f32.mrf.mxu0
      %v2167 = vadd.f32 0.0, %v2166
      %2168 = vmatmul.bf16.gmra.mxu0 %v1965
      %v2169 = vpop.f32.mrf.mxu0
      %v2170 = vadd.f32 0.0, %v2169
      %v2171 = vpop.f32.mrf.mxu0
      %v2172 = vadd.f32 0.0, %v2171
      %2173 = vmatmul.bf16.gmra.mxu0 %v1968
      %v2174 = vpop.f32.mrf.mxu0
      %v2175 = vadd.f32 0.0, %v2174
      %v2176 = vpop.f32.mrf.mxu0
      %v2177 = vadd.f32 0.0, %v2176
      %2178 = vmatmul.bf16.gmra.mxu0 %v1971
      %v2179 = vpop.f32.mrf.mxu0
      %v2180 = vadd.f32 0.0, %v2179
      %v2181 = vpop.f32.mrf.mxu0
      %v2182 = vadd.f32 0.0, %v2181
      %2183 = vmatmul.bf16.gmra.mxu0 %v1974
      %v2184 = vpop.f32.mrf.mxu0
      %v2185 = vadd.f32 0.0, %v2184
      %v2186 = vpop.f32.mrf.mxu0
      %v2187 = vadd.f32 0.0, %v2186
      %2188 = vmatmul.bf16.gmra.mxu0 %v1977
      %v2189 = vpop.f32.mrf.mxu0
      %v2190 = vadd.f32 0.0, %v2189
      %v2191 = vpop.f32.mrf.mxu0
      %v2192 = vadd.f32 0.0, %v2191
      %2193 = vmatmul.bf16.gmra.mxu0 %v1980
      %v2194 = vpop.f32.mrf.mxu0
      %v2195 = vadd.f32 0.0, %v2194
      %v2196 = vpop.f32.mrf.mxu0
      %v2197 = vadd.f32 0.0, %v2196
      %2198 = vmatmul.bf16.gmra.mxu0 %v1983
      %v2199 = vpop.f32.mrf.mxu0
      %v2200 = vadd.f32 0.0, %v2199
      %v2201 = vpop.f32.mrf.mxu0
      %v2202 = vadd.f32 0.0, %v2201
      %2203 = vmatmul.bf16.gmra.mxu0 %v2115
      %v2204 = vpop.f32.mrf.mxu0
      %v2205 = vadd.f32 0.0, %v2204
      %v2206 = vpop.f32.mrf.mxu0
      %v2207 = vadd.f32 0.0, %v2206
      %2208 = vdwg.mxu0
      %v2209 = vadd.f32 %v2077, %v2130
      %v2210 = vadd.f32 %v2078, %v2132
      %v2211 = vadd.f32 %v2079, %v2135
      %v2212 = vadd.f32 %v2080, %v2137
      %v2213 = vadd.f32 %v2081, %v2140
      %v2214 = vadd.f32 %v2082, %v2142
      %v2215 = vadd.f32 %v2083, %v2145
      %v2216 = vadd.f32 %v2084, %v2147
      %v2217 = vadd.f32 %v2085, %v2150
      %v2218 = vadd.f32 %v2086, %v2152
      %v2219 = vadd.f32 %v2087, %v2155
      %v2220 = vadd.f32 %v2088, %v2157
      %v2221 = vadd.f32 %v2089, %v2160
      %v2222 = vadd.f32 %v2090, %v2162
      %v2223 = vadd.f32 %v2091, %v2165
      %v2224 = vadd.f32 %v2092, %v2167
      %v2225 = vadd.f32 %v2093, %v2170
      %v2226 = vadd.f32 %v2094, %v2172
      %v2227 = vadd.f32 %v2095, %v2175
      %v2228 = vadd.f32 %v2096, %v2177
      %v2229 = vadd.f32 %v2097, %v2180
      %v2230 = vadd.f32 %v2098, %v2182
      %v2231 = vadd.f32 %v2099, %v2185
      %v2232 = vadd.f32 %v2100, %v2187
      %v2233 = vadd.f32 %v2101, %v2190
      %v2234 = vadd.f32 %v2102, %v2192
      %v2235 = vadd.f32 %v2103, %v2195
      %v2236 = vadd.f32 %v2104, %v2197
      %v2237 = vadd.f32 %v2105, %v2200
      %v2238 = vadd.f32 %v2106, %v2202
      %v2239 = vadd.f32 %v2107, %v2205
      %v2240 = vadd.f32 %v2108, %v2207
      %s2241 = scalar_lea.vmem %s1, 16
      %v2242 = vld [vmem:[%s2241] sm:$0x3]
      %v2243 = vunpack.c.l.b16 %v1883
      %v2244 = vunpack.c.l.b16 %v1886
      %v2245 = vpack.c.b16 %v2244, %v2243
      %v2247 = vsel %vm335, %v2245, 0
      %v2250 = vsel %vm384, %v2242, 0
      %2252 = vmatpush.bf16.msra.mxu0 0
      %2253 = vmatpush.bf16.msra.mxu0 0
      %2254 = vmatpush.bf16.msra.mxu0 0
      %2255 = vmatpush.bf16.msra.mxu0 0
      %2256 = vmatpush.bf16.msra.mxu0 0
      %2257 = vmatpush.bf16.msra.mxu0 0
      %2258 = vmatpush.bf16.msra.mxu0 0
      %2259 = vmatpush.bf16.msra.mxu0 %v2250
      %2260 = vmatmul.bf16.gmra.mxu0 %v1944
      %v2261 = vpop.f32.mrf.mxu0
      %v2262 = vadd.f32 0.0, %v2261
      %v2263 = vpop.f32.mrf.mxu0
      %v2264 = vadd.f32 0.0, %v2263
      %2265 = vmatmul.bf16.gmra.mxu0 %v1947
      %v2266 = vpop.f32.mrf.mxu0
      %v2267 = vadd.f32 0.0, %v2266
      %v2268 = vpop.f32.mrf.mxu0
      %v2269 = vadd.f32 0.0, %v2268
      %2270 = vmatmul.bf16.gmra.mxu0 %v1950
      %v2271 = vpop.f32.mrf.mxu0
      %v2272 = vadd.f32 0.0, %v2271
      %v2273 = vpop.f32.mrf.mxu0
      %v2274 = vadd.f32 0.0, %v2273
      %2275 = vmatmul.bf16.gmra.mxu0 %v1953
      %v2276 = vpop.f32.mrf.mxu0
      %v2277 = vadd.f32 0.0, %v2276
      %v2278 = vpop.f32.mrf.mxu0
      %v2279 = vadd.f32 0.0, %v2278
      %2280 = vmatmul.bf16.gmra.mxu0 %v1956
      %v2281 = vpop.f32.mrf.mxu0
      %v2282 = vadd.f32 0.0, %v2281
      %v2283 = vpop.f32.mrf.mxu0
      %v2284 = vadd.f32 0.0, %v2283
      %2285 = vmatmul.bf16.gmra.mxu0 %v1959
      %v2286 = vpop.f32.mrf.mxu0
      %v2287 = vadd.f32 0.0, %v2286
      %v2288 = vpop.f32.mrf.mxu0
      %v2289 = vadd.f32 0.0, %v2288
      %2290 = vmatmul.bf16.gmra.mxu0 %v1962
      %v2291 = vpop.f32.mrf.mxu0
      %v2292 = vadd.f32 0.0, %v2291
      %v2293 = vpop.f32.mrf.mxu0
      %v2294 = vadd.f32 0.0, %v2293
      %2295 = vmatmul.bf16.gmra.mxu0 %v1965
      %v2296 = vpop.f32.mrf.mxu0
      %v2297 = vadd.f32 0.0, %v2296
      %v2298 = vpop.f32.mrf.mxu0
      %v2299 = vadd.f32 0.0, %v2298
      %2300 = vmatmul.bf16.gmra.mxu0 %v1968
      %v2301 = vpop.f32.mrf.mxu0
      %v2302 = vadd.f32 0.0, %v2301
      %v2303 = vpop.f32.mrf.mxu0
      %v2304 = vadd.f32 0.0, %v2303
      %2305 = vmatmul.bf16.gmra.mxu0 %v1971
      %v2306 = vpop.f32.mrf.mxu0
      %v2307 = vadd.f32 0.0, %v2306
      %v2308 = vpop.f32.mrf.mxu0
      %v2309 = vadd.f32 0.0, %v2308
      %2310 = vmatmul.bf16.gmra.mxu0 %v1974
      %v2311 = vpop.f32.mrf.mxu0
      %v2312 = vadd.f32 0.0, %v2311
      %v2313 = vpop.f32.mrf.mxu0
      %v2314 = vadd.f32 0.0, %v2313
      %2315 = vmatmul.bf16.gmra.mxu0 %v1977
      %v2316 = vpop.f32.mrf.mxu0
      %v2317 = vadd.f32 0.0, %v2316
      %v2318 = vpop.f32.mrf.mxu0
      %v2319 = vadd.f32 0.0, %v2318
      %2320 = vmatmul.bf16.gmra.mxu0 %v1980
      %v2321 = vpop.f32.mrf.mxu0
      %v2322 = vadd.f32 0.0, %v2321
      %v2323 = vpop.f32.mrf.mxu0
      %v2324 = vadd.f32 0.0, %v2323
      %2325 = vmatmul.bf16.gmra.mxu0 %v1983
      %v2326 = vpop.f32.mrf.mxu0
      %v2327 = vadd.f32 0.0, %v2326
      %v2328 = vpop.f32.mrf.mxu0
      %v2329 = vadd.f32 0.0, %v2328
      %2330 = vmatmul.bf16.gmra.mxu0 %v2115
      %v2331 = vpop.f32.mrf.mxu0
      %v2332 = vadd.f32 0.0, %v2331
      %v2333 = vpop.f32.mrf.mxu0
      %v2334 = vadd.f32 0.0, %v2333
      %2335 = vmatmul.bf16.gmra.mxu0 %v2247
      %v2336 = vpop.f32.mrf.mxu0
      %v2337 = vadd.f32 0.0, %v2336
      %v2338 = vpop.f32.mrf.mxu0
      %v2339 = vadd.f32 0.0, %v2338
      %2340 = vdwg.mxu0
      %v2341 = vadd.f32 %v2209, %v2262
      %v2342 = vadd.f32 %v2210, %v2264
      %v2343 = vadd.f32 %v2211, %v2267
      %v2344 = vadd.f32 %v2212, %v2269
      %v2345 = vadd.f32 %v2213, %v2272
      %v2346 = vadd.f32 %v2214, %v2274
      %v2347 = vadd.f32 %v2215, %v2277
      %v2348 = vadd.f32 %v2216, %v2279
      %v2349 = vadd.f32 %v2217, %v2282
      %v2350 = vadd.f32 %v2218, %v2284
      %v2351 = vadd.f32 %v2219, %v2287
      %v2352 = vadd.f32 %v2220, %v2289
      %v2353 = vadd.f32 %v2221, %v2292
      %v2354 = vadd.f32 %v2222, %v2294
      %v2355 = vadd.f32 %v2223, %v2297
      %v2356 = vadd.f32 %v2224, %v2299
      %v2357 = vadd.f32 %v2225, %v2302
      %v2358 = vadd.f32 %v2226, %v2304
      %v2359 = vadd.f32 %v2227, %v2307
      %v2360 = vadd.f32 %v2228, %v2309
      %v2361 = vadd.f32 %v2229, %v2312
      %v2362 = vadd.f32 %v2230, %v2314
      %v2363 = vadd.f32 %v2231, %v2317
      %v2364 = vadd.f32 %v2232, %v2319
      %v2365 = vadd.f32 %v2233, %v2322
      %v2366 = vadd.f32 %v2234, %v2324
      %v2367 = vadd.f32 %v2235, %v2327
      %v2368 = vadd.f32 %v2236, %v2329
      %v2369 = vadd.f32 %v2237, %v2332
      %v2370 = vadd.f32 %v2238, %v2334
      %v2371 = vadd.f32 %v2239, %v2337
      %v2372 = vadd.f32 %v2240, %v2339
      %vm2373 = vcmask 64512
      %2374 = vst.msk [vmem:[%s208] sm:$0xff] %vm2373, %v2341
      %2375 = vst.msk [vmem:[%s208 + $0x8] sm:$0xff] %vm2373, %v2342
      %2376 = vst.msk [vmem:[%s208 + $0x10] sm:$0xff] %vm2373, %v2343
      %2377 = vst.msk [vmem:[%s208 + $0x18] sm:$0xff] %vm2373, %v2344
      %2378 = vst.msk [vmem:[%s208 + $0x20] sm:$0xff] %vm2373, %v2345
      %2379 = vst.msk [vmem:[%s208 + $0x28] sm:$0xff] %vm2373, %v2346
      %2380 = vst.msk [vmem:[%s208 + $0x30] sm:$0xff] %vm2373, %v2347
      %2381 = vst.msk [vmem:[%s208 + $0x38] sm:$0xff] %vm2373, %v2348
      %2382 = vst.msk [vmem:[%s208 + $0x40] sm:$0xff] %vm2373, %v2349
      %2383 = vst.msk [vmem:[%s208 + $0x48] sm:$0xff] %vm2373, %v2350
      %2384 = vst.msk [vmem:[%s208 + $0x50] sm:$0xff] %vm2373, %v2351
      %2385 = vst.msk [vmem:[%s208 + $0x58] sm:$0xff] %vm2373, %v2352
      %2386 = vst.msk [vmem:[%s208 + $0x60] sm:$0xff] %vm2373, %v2353
      %2387 = vst.msk [vmem:[%s208 + $0x68] sm:$0xff] %vm2373, %v2354
      %2388 = vst.msk [vmem:[%s208 + $0x70] sm:$0xff] %vm2373, %v2355
      %2389 = vst.msk [vmem:[%s208 + $0x78] sm:$0xff] %vm2373, %v2356
      %2390 = vst.msk [vmem:[%s208 + $0x80] sm:$0xff] %vm2373, %v2357
      %2391 = vst.msk [vmem:[%s208 + $0x88] sm:$0xff] %vm2373, %v2358
      %2392 = vst.msk [vmem:[%s208 + $0x90] sm:$0xff] %vm2373, %v2359
      %2393 = vst.msk [vmem:[%s208 + $0x98] sm:$0xff] %vm2373, %v2360
      %2394 = vst.msk [vmem:[%s208 + $0xa0] sm:$0xff] %vm2373, %v2361
      %2395 = vst.msk [vmem:[%s208 + $0xa8] sm:$0xff] %vm2373, %v2362
      %2396 = vst.msk [vmem:[%s208 + $0xb0] sm:$0xff] %vm2373, %v2363
      %2397 = vst.msk [vmem:[%s208 + $0xb8] sm:$0xff] %vm2373, %v2364
      %2398 = vst.msk [vmem:[%s208 + $0xc0] sm:$0xff] %vm2373, %v2365
      %2399 = vst.msk [vmem:[%s208 + $0xc8] sm:$0xff] %vm2373, %v2366
      %2400 = vst.msk [vmem:[%s208 + $0xd0] sm:$0xff] %vm2373, %v2367
      %2401 = vst.msk [vmem:[%s208 + $0xd8] sm:$0xff] %vm2373, %v2368
      %2402 = vst.msk [vmem:[%s208 + $0xe0] sm:$0xff] %vm2373, %v2369
      %2403 = vst.msk [vmem:[%s208 + $0xe8] sm:$0xff] %vm2373, %v2370
      %2404 = vst.msk [vmem:[%s208 + $0xf0] sm:$0xff] %vm2373, %v2371
      %2405 = vst.msk [vmem:[%s208 + $0xf8] sm:$0xff] %vm2373, %v2372
      %v2406 = vsel %vm2373, %v2341, 0.0
      %v2407 = vsel %vm2373, %v2342, 0.0
      %v2408 = vadd.f32 %v2406, %v2407
      %v2409 = vsel %vm2373, %v2343, 0.0
      %v2410 = vadd.f32 %v2408, %v2409
      %v2411 = vsel %vm2373, %v2344, 0.0
      %v2412 = vadd.f32 %v2410, %v2411
      %v2413 = vsel %vm2373, %v2345, 0.0
      %v2414 = vadd.f32 %v2412, %v2413
      %v2415 = vsel %vm2373, %v2346, 0.0
      %v2416 = vadd.f32 %v2414, %v2415
      %v2417 = vsel %vm2373, %v2347, 0.0
      %v2418 = vadd.f32 %v2416, %v2417
      %v2419 = vsel %vm2373, %v2348, 0.0
      %v2420 = vadd.f32 %v2418, %v2419
      %v2421 = vsel %vm2373, %v2349, 0.0
      %v2422 = vadd.f32 %v2420, %v2421
      %v2423 = vsel %vm2373, %v2350, 0.0
      %v2424 = vadd.f32 %v2422, %v2423
      %v2425 = vsel %vm2373, %v2351, 0.0
      %v2426 = vadd.f32 %v2424, %v2425
      %v2427 = vsel %vm2373, %v2352, 0.0
      %v2428 = vadd.f32 %v2426, %v2427
      %v2429 = vsel %vm2373, %v2353, 0.0
      %v2430 = vadd.f32 %v2428, %v2429
      %v2431 = vsel %vm2373, %v2354, 0.0
      %v2432 = vadd.f32 %v2430, %v2431
      %v2433 = vsel %vm2373, %v2355, 0.0
      %v2434 = vadd.f32 %v2432, %v2433
      %v2435 = vsel %vm2373, %v2356, 0.0
      %v2436 = vadd.f32 %v2434, %v2435
      %v2437 = vsel %vm2373, %v2357, 0.0
      %v2438 = vadd.f32 %v2436, %v2437
      %v2439 = vsel %vm2373, %v2358, 0.0
      %v2440 = vadd.f32 %v2438, %v2439
      %v2441 = vsel %vm2373, %v2359, 0.0
      %v2442 = vadd.f32 %v2440, %v2441
      %v2443 = vsel %vm2373, %v2360, 0.0
      %v2444 = vadd.f32 %v2442, %v2443
      %v2445 = vsel %vm2373, %v2361, 0.0
      %v2446 = vadd.f32 %v2444, %v2445
      %v2447 = vsel %vm2373, %v2362, 0.0
      %v2448 = vadd.f32 %v2446, %v2447
      %v2449 = vsel %vm2373, %v2363, 0.0
      %v2450 = vadd.f32 %v2448, %v2449
      %v2451 = vsel %vm2373, %v2364, 0.0
      %v2452 = vadd.f32 %v2450, %v2451
      %v2453 = vsel %vm2373, %v2365, 0.0
      %v2454 = vadd.f32 %v2452, %v2453
      %v2455 = vsel %vm2373, %v2366, 0.0
      %v2456 = vadd.f32 %v2454, %v2455
      %v2457 = vsel %vm2373, %v2367, 0.0
      %v2458 = vadd.f32 %v2456, %v2457
      %v2459 = vsel %vm2373, %v2368, 0.0
      %v2460 = vadd.f32 %v2458, %v2459
      %v2461 = vsel %vm2373, %v2369, 0.0
      %v2462 = vadd.f32 %v2460, %v2461
      %v2463 = vsel %vm2373, %v2370, 0.0
      %v2464 = vadd.f32 %v2462, %v2463
      %v2465 = vsel %vm2373, %v2371, 0.0
      %v2466 = vadd.f32 %v2464, %v2465
      %v2467 = vsel %vm2373, %v2372, 0.0
      %v2468 = vadd.f32 %v2466, %v2467
      %v2469 = vrot.slane %v2468, 4
      %v2470 = vadd.f32 %v2468, %v2469
      %v2471 = vrot.slane %v2470, 2
      %v2472 = vadd.f32 %v2470, %v2471
      %v2473 = vrot.slane %v2472, 1
      %v2474 = vadd.f32 %v2472, %v2473
      %vm2475 = vcmask 57344
      %2476 = vst.msk [vmem:[%s211] sm:$0x1] %vm2475, %v2474
      %v2477 = vmul.f32 %v2341, %v2341
      %v2478 = vmul.f32 %v2342, %v2342
      %v2479 = vmul.f32 %v2343, %v2343
      %v2480 = vmul.f32 %v2344, %v2344
      %v2481 = vmul.f32 %v2345, %v2345
      %v2482 = vmul.f32 %v2346, %v2346
      %v2483 = vmul.f32 %v2347, %v2347
      %v2484 = vmul.f32 %v2348, %v2348
      %v2485 = vmul.f32 %v2349, %v2349
      %v2486 = vmul.f32 %v2350, %v2350
      %v2487 = vmul.f32 %v2351, %v2351
      %v2488 = vmul.f32 %v2352, %v2352
      %v2489 = vmul.f32 %v2353, %v2353
      %v2490 = vmul.f32 %v2354, %v2354
      %v2491 = vmul.f32 %v2355, %v2355
      %v2492 = vmul.f32 %v2356, %v2356
      %v2493 = vmul.f32 %v2357, %v2357
      %v2494 = vmul.f32 %v2358, %v2358
      %v2495 = vmul.f32 %v2359, %v2359
      %v2496 = vmul.f32 %v2360, %v2360
      %v2497 = vmul.f32 %v2361, %v2361
      %v2498 = vmul.f32 %v2362, %v2362
      %v2499 = vmul.f32 %v2363, %v2363
      %v2500 = vmul.f32 %v2364, %v2364
      %v2501 = vmul.f32 %v2365, %v2365
      %v2502 = vmul.f32 %v2366, %v2366
      %v2503 = vmul.f32 %v2367, %v2367
      %v2504 = vmul.f32 %v2368, %v2368
      %v2505 = vmul.f32 %v2369, %v2369
      %v2506 = vmul.f32 %v2370, %v2370
      %v2507 = vmul.f32 %v2371, %v2371
      %v2508 = vmul.f32 %v2372, %v2372
      %v2509 = vsel %vm2373, %v2477, 0.0
      %v2510 = vsel %vm2373, %v2478, 0.0
      %v2511 = vadd.f32 %v2509, %v2510
      %v2512 = vsel %vm2373, %v2479, 0.0
      %v2513 = vadd.f32 %v2511, %v2512
      %v2514 = vsel %vm2373, %v2480, 0.0
      %v2515 = vadd.f32 %v2513, %v2514
      %v2516 = vsel %vm2373, %v2481, 0.0
      %v2517 = vadd.f32 %v2515, %v2516
      %v2518 = vsel %vm2373, %v2482, 0.0
      %v2519 = vadd.f32 %v2517, %v2518
      %v2520 = vsel %vm2373, %v2483, 0.0
      %v2521 = vadd.f32 %v2519, %v2520
      %v2522 = vsel %vm2373, %v2484, 0.0
      %v2523 = vadd.f32 %v2521, %v2522
      %v2524 = vsel %vm2373, %v2485, 0.0
      %v2525 = vadd.f32 %v2523, %v2524
      %v2526 = vsel %vm2373, %v2486, 0.0
      %v2527 = vadd.f32 %v2525, %v2526
      %v2528 = vsel %vm2373, %v2487, 0.0
      %v2529 = vadd.f32 %v2527, %v2528
      %v2530 = vsel %vm2373, %v2488, 0.0
      %v2531 = vadd.f32 %v2529, %v2530
      %v2532 = vsel %vm2373, %v2489, 0.0
      %v2533 = vadd.f32 %v2531, %v2532
      %v2534 = vsel %vm2373, %v2490, 0.0
      %v2535 = vadd.f32 %v2533, %v2534
      %v2536 = vsel %vm2373, %v2491, 0.0
      %v2537 = vadd.f32 %v2535, %v2536
      %v2538 = vsel %vm2373, %v2492, 0.0
      %v2539 = vadd.f32 %v2537, %v2538
      %v2540 = vsel %vm2373, %v2493, 0.0
      %v2541 = vadd.f32 %v2539, %v2540
      %v2542 = vsel %vm2373, %v2494, 0.0
      %v2543 = vadd.f32 %v2541, %v2542
      %v2544 = vsel %vm2373, %v2495, 0.0
      %v2545 = vadd.f32 %v2543, %v2544
      %v2546 = vsel %vm2373, %v2496, 0.0
      %v2547 = vadd.f32 %v2545, %v2546
      %v2548 = vsel %vm2373, %v2497, 0.0
      %v2549 = vadd.f32 %v2547, %v2548
      %v2550 = vsel %vm2373, %v2498, 0.0
      %v2551 = vadd.f32 %v2549, %v2550
      %v2552 = vsel %vm2373, %v2499, 0.0
      %v2553 = vadd.f32 %v2551, %v2552
      %v2554 = vsel %vm2373, %v2500, 0.0
      %v2555 = vadd.f32 %v2553, %v2554
      %v2556 = vsel %vm2373, %v2501, 0.0
      %v2557 = vadd.f32 %v2555, %v2556
      %v2558 = vsel %vm2373, %v2502, 0.0
      %v2559 = vadd.f32 %v2557, %v2558
      %v2560 = vsel %vm2373, %v2503, 0.0
      %v2561 = vadd.f32 %v2559, %v2560
      %v2562 = vsel %vm2373, %v2504, 0.0
      %v2563 = vadd.f32 %v2561, %v2562
      %v2564 = vsel %vm2373, %v2505, 0.0
      %v2565 = vadd.f32 %v2563, %v2564
      %v2566 = vsel %vm2373, %v2506, 0.0
      %v2567 = vadd.f32 %v2565, %v2566
      %v2568 = vsel %vm2373, %v2507, 0.0
      %v2569 = vadd.f32 %v2567, %v2568
      %v2570 = vsel %vm2373, %v2508, 0.0
      %v2571 = vadd.f32 %v2569, %v2570
      %v2572 = vrot.slane %v2571, 4
      %v2573 = vadd.f32 %v2571, %v2572
      %v2574 = vrot.slane %v2573, 2
      %v2575 = vadd.f32 %v2573, %v2574
      %v2576 = vrot.slane %v2575, 1
      %v2577 = vadd.f32 %v2575, %v2576
      %2578 = vst.msk [vmem:[%s214] sm:$0x1] %vm2475, %v2577
      %p2579 = scmp.lt.s32.totalorder %s16, 1
      %s2580 = scalar_select %p2579, %s16, 1
      %s2581 = smul.addr %s2580, 32
      %s2582 = smul.addr %s2581, 8
      %s2583 = scalar_lea.vmem %s2, %s2582
      %p2584 = scmp.lt.s32.totalorder %s16, 1
      %s2585 = scalar_select %p2584, %s16, 1
      %s2586 = scalar_lea.vmem %s3, %s2585
      %p2587 = scmp.lt.s32.totalorder %s16, 1
      %s2588 = scalar_select %p2587, %s16, 1
      %s2589 = scalar_lea.vmem %s4, %s2588
      // Predicated region
      $region29: #{conv_block_forward.2} parent=27 // pred_check
        %p2590 = pneg %p81
      $region30: #{conv_block_forward.2} parent=27 // pred_check_branch
        %2592 = sbr.rel (%p2590) target = $region32
      $region31: #{conv_block_forward.2} parent=27 // pred_region
        _
      $region32: #{conv_block_forward.2} parent=27 // pred_fallthru
        _
      // Predicated region
      $region33: #{conv_block_forward.2} parent=27 // pred_check
        %p2593 = pneg %p107
      $region34: #{conv_block_forward.2} parent=27 // pred_check_branch
        %2595 = sbr.rel (%p2593) target = $region36
      $region35: #{conv_block_forward.2} parent=27 // pred_region
        _
      $region36: #{conv_block_forward.2} parent=27 // pred_fallthru
        _
      // Predicated region
      $region37: #{conv_block_forward.2} parent=27 // pred_check
        %p2596 = pneg %p133
      $region38: #{conv_block_forward.2} parent=27 // pred_check_branch
        %2598 = sbr.rel (%p2596) target = $region40
      $region39: #{conv_block_forward.2} parent=27 // pred_region
        _
      $region40: #{conv_block_forward.2} parent=27 // pred_fallthru
        _
    $region28: #{conv_block_forward.2} parent=5 // pred_fallthru
      _
    %p2599 = scmp.le.s32.totalorder 2, %s11
    // Predicated region
    $region41: #{conv_block_forward.2} parent=5 // pred_check
      %p2600 = pneg %p2599
    $region42: #{conv_block_forward.2} parent=5 // pred_check_branch
      %2602 = sbr.rel (%p2600) target = $region44
    $region43: #{conv_block_forward.2} parent=5 // pred_region
      %s2603 = ssub.s32 %s11, 2
      // Predicated region
      $region45: #{conv_block_forward.2} parent=43 // pred_check
        %p2604 = pneg %p87
      $region46: #{conv_block_forward.2} parent=43 // pred_check_branch
        %2606 = sbr.rel (%p2604) target = $region48
      $region47: #{conv_block_forward.2} parent=43 // pred_region
        %p2607 = scmp.lt.s32.totalorder %s17, 1
        %s2608 = scalar_select %p2607, %s17, 1
        %s2609 = smul.addr %s2608, 32
        %s2610 = smul.addr %s2609, 8
        %s2611 = scalar_lea.vmem %s2, %s2610
      $region48: #{conv_block_forward.2} parent=43 // pred_fallthru
        _
      // Predicated region
      $region49: #{conv_block_forward.2} parent=43 // pred_check
        %p2612 = pneg %p113
      $region50: #{conv_block_forward.2} parent=43 // pred_check_branch
        %2614 = sbr.rel (%p2612) target = $region52
      $region51: #{conv_block_forward.2} parent=43 // pred_region
        %p2615 = scmp.lt.s32.totalorder %s17, 1
        %s2616 = scalar_select %p2615, %s17, 1
        %s2617 = scalar_lea.vmem %s3, %s2616
      $region52: #{conv_block_forward.2} parent=43 // pred_fallthru
        _
      // Predicated region
      $region53: #{conv_block_forward.2} parent=43 // pred_check
        %p2618 = pneg %p139
      $region54: #{conv_block_forward.2} parent=43 // pred_check_branch
        %2620 = sbr.rel (%p2618) target = $region56
      $region55: #{conv_block_forward.2} parent=43 // pred_region
        %p2621 = scmp.lt.s32.totalorder %s17, 1
        %s2622 = scalar_select %p2621, %s17, 1
        %s2623 = scalar_lea.vmem %s4, %s2622
      $region56: #{conv_block_forward.2} parent=43 // pred_fallthru
        _
    $region44: #{conv_block_forward.2} parent=5 // pred_fallthru
      _
  $region6: #{conv_block_forward.2} parent=0 // loop_footer
    %s15 = sadd.s32 1, %s11
  $region7: #{conv_block_forward.2} parent=0 // loop_footer_branch
    %10 = sbr.rel target = $region3
  $region8: #{conv_block_forward.2} parent=0 // loop_exit
    _

</llo_original>
